<compile_context>
chip_gen: v7x
topology: tpu7x:2x2x1
jax: 0.10.0
libtpu: 0.0.40
codegen_flags: <defaults>
</compile_context>

<pallas_src>
import functools

import jax
import jax.numpy as jnp
from jax import lax
from jax.experimental import pallas as pl
from jax.experimental.pallas import tpu as pltpu


# ----------------------------------------------------------------------------
# Fused kernel: one grid step = one batch element, intervals unrolled inside.
# ----------------------------------------------------------------------------
def egconv_fused_kernel(x_ref, mean_ref, init_ref, wih_ref, whh_ref, bih_ref,
                        bhh_ref, w1_ref, b1_ref, w2_ref, b2_ref, mixw_ref,
                        mixb_ref, o_ref, *, gdep, alpha, n_int):
    # x_ref:    [1, n_int, N, Ti*C]   (flat node-major interval chunks)
    # mean_ref: [1, n_int*N, C]       (exact interval means, precomputed)
    # init_ref: [N, D]                (dy_node_fea, batch-shared initial state)
    # mixw_ref: [gdep+1, Ti*C, Ti*C_out]  (block-diagonal per-hop mix weights)
    # o_ref:    [1, N, n_int*Ti*C_out]
    N, _ = init_ref.shape

    # --- hoisted, batched over all intervals: GRU input-gate products --------
    means = mean_ref[0]                               # [n_int*N, C]
    gx_r = jnp.dot(means, wih_ref[0], preferred_element_type=jnp.float32) + bih_ref[0]
    gx_z = jnp.dot(means, wih_ref[1], preferred_element_type=jnp.float32) + bih_ref[1]
    gx_n = jnp.dot(means, wih_ref[2], preferred_element_type=jnp.float32) + bih_ref[2]

    ridx = lax.broadcasted_iota(jnp.int32, (N, N), 0)
    cidx = lax.broadcasted_iota(jnp.int32, (N, N), 1)
    eye = (ridx == cidx).astype(jnp.float32)

    dn = (((1,), (1,)), ((), ()))                     # contract last dims == A @ B.T

    h = init_ref[...]                                 # [N, D] GRU state carry
    outs = []
    for i in range(n_int):                            # static unroll (n_int small)
        sl = slice(i * N, (i + 1) * N)

        # ---- EvolvingGraphLearner: nn.GRUCell (recurrent part only) --------
        ghr = jnp.dot(h, whh_ref[0], preferred_element_type=jnp.float32) + bhh_ref[0]
        ghz = jnp.dot(h, whh_ref[1], preferred_element_type=jnp.float32) + bhh_ref[1]
        ghn = jnp.dot(h, whh_ref[2], preferred_element_type=jnp.float32) + bhh_ref[2]
        r = jax.nn.sigmoid(gx_r[sl] + ghr)
        z = jax.nn.sigmoid(gx_z[sl] + ghz)
        n_gate = jnp.tanh(gx_n[sl] + r * ghn)         # b_hn correctly inside r*( )
        h = (1.0 - z) * n_gate + z * h                # [N, D]

        # ---- graph constructor: ReLU(tanh(M1 M2^T - M2 M1^T)) --------------
        m1 = jnp.tanh(jnp.dot(h, w1_ref[...], preferred_element_type=jnp.float32)
                      + b1_ref[...])
        m2 = jnp.tanh(jnp.dot(h, w2_ref[...], preferred_element_type=jnp.float32)
                      + b2_ref[...])
        s12 = lax.dot_general(m1, m2, dn, preferred_element_type=jnp.float32)
        s21 = lax.dot_general(m2, m1, dn, preferred_element_type=jnp.float32)
        adj = jax.nn.relu(jnp.tanh(s12 - s21))        # [N, N]
        a = adj + eye                                 # A + I
        a_norm = a * pl.reciprocal(jnp.sum(a, axis=-1, keepdims=True), approx=True)

        # ---- MixProp: per-hop matmul-accumulate, zero in-kernel relayout ----
        x_i = x_ref[0, i]                             # [N, Ti*C] flat (Ti, C) lanes
        hk = x_i
        acc = jnp.dot(hk, mixw_ref[0], preferred_element_type=jnp.float32)
        for k in range(1, gdep + 1):
            prop = jnp.dot(a_norm, hk, preferred_element_type=jnp.float32)
            hk = alpha * x_i + (1.0 - alpha) * prop   # [N, Ti*C]
            acc = acc + jnp.dot(hk, mixw_ref[k], preferred_element_type=jnp.float32)
        outs.append(acc + mixb_ref[...])              # [N, Ti*C_out]

    # Single lane-dense store (n_int*Ti*C_out lanes) per batch element.
    o_ref[0] = jnp.concatenate(outs, axis=-1)


# ----------------------------------------------------------------------------
# Parameters (GRU gate weights stored pre-split: index 0=r, 1=z, 2=n).
# ----------------------------------------------------------------------------
def init_params(key, conv_channels, residual_channels, gcn_depth, st_dim, dy_dim):
    ks = jax.random.split(key, 12)

    def w(k, shape, scale=0.1):
        return jax.random.normal(k, shape, jnp.float32) * scale

    return dict(
        s2d_w=w(ks[0], (dy_dim, st_dim)),                    # nn.Linear(st, dy)
        s2d_b=w(ks[1], (dy_dim,)),
        w_ih=w(ks[2], (3, conv_channels, dy_dim)),           # GRUCell W_i{r,z,n}^T
        w_hh=w(ks[3], (3, dy_dim, dy_dim)),                  # GRUCell W_h{r,z,n}^T
        b_ih=w(ks[4], (3, 1, dy_dim)),
        b_hh=w(ks[5], (3, 1, dy_dim)),
        w1_t=w(ks[6], (dy_dim, dy_dim)),                     # graph lin1^T
        b1=w(ks[7], (1, dy_dim)),
        w2_t=w(ks[8], (dy_dim, dy_dim)),                     # graph lin2^T
        b2=w(ks[9], (1, dy_dim)),
        mix_w_t=w(ks[10], ((gcn_depth + 1) * conv_channels, residual_channels)),
        mix_b2d=w(ks[11], (1, residual_channels)),
    )


# ----------------------------------------------------------------------------
# Wrapper: layout / weight prep once in XLA + one fused pallas_call, grid=(B,).
# ----------------------------------------------------------------------------
def evolving_gconv_forward(x, st_node_fea, params, *, dy_interval, gcn_depth,
                           propalpha):
    """x: [B, C, N, T] (PyTorch NCHW layout), st_node_fea: [N, st_dim]."""
    B, C, N, T = x.shape
    C_out = params["mix_w_t"].shape[1]
    Ti = dy_interval

    # linear_s2d (cheap glue); states are batch-shared at t=0 -> single [N, D].
    dy_node_fea = (st_node_fea @ params["s2d_w"].T + params["s2d_b"]).astype(jnp.float32)

    # Pad T to a multiple of dy_interval; exact means use true interval lengths.
    n_int = -(-T // Ti)
    Tp = n_int * Ti
    if Tp != T:
        x = jnp.pad(x, ((0, 0), (0, 0), (0, 0), (0, Tp - T)))

    # [B, C, N, Tp] -> [B, n_int, N, Ti, C]  (node-major kernel layout)
    x_k = jnp.transpose(x, (0, 2, 3, 1)).reshape(B, N, n_int, Ti, C)
    x_k = jnp.transpose(x_k, (0, 2, 1, 3, 4)).astype(jnp.float32)

    # Exact interval means (padded steps are zero; divide by true lengths).
    lens = jnp.minimum(Ti, T - jnp.arange(n_int) * Ti).astype(jnp.float32)
    means = jnp.sum(x_k, axis=3) / lens[None, :, None, None]     # [B, n_int, N, C]
    means = means.reshape(B, n_int * N, C)

    x_flat = x_k.reshape(B, n_int, N, Ti * C)

    # Per-hop mix weights expanded block-diagonally over the Ti lane groups so
    # the kernel's channel mix works directly on the flat [N, Ti*C] layout.
    w_hops = params["mix_w_t"].reshape(gcn_depth + 1, C, C_out)
    eye_t = jnp.eye(Ti, dtype=jnp.float32)
    mix_wb = (eye_t[None, :, None, :, None] * w_hops[:, None, :, None, :])
    mix_wb = mix_wb.reshape(gcn_depth + 1, Ti * C, Ti * C_out)
    mix_bb = jnp.tile(params["mix_b2d"], (1, Ti))                # [1, Ti*C_out]

    kern = functools.partial(egconv_fused_kernel, gdep=gcn_depth,
                             alpha=propalpha, n_int=n_int)

    def const_spec(arr):
        nd = arr.ndim
        return pl.BlockSpec(tuple(arr.shape), lambda b, nd=nd: (0,) * nd)

    in_specs = [
        pl.BlockSpec((1, n_int, N, Ti * C), lambda b: (b, 0, 0, 0)),
        pl.BlockSpec((1, n_int * N, C), lambda b: (b, 0, 0)),
        const_spec(dy_node_fea),
        const_spec(params["w_ih"]), const_spec(params["w_hh"]),
        const_spec(params["b_ih"]), const_spec(params["b_hh"]),
        const_spec(params["w1_t"]), const_spec(params["b1"]),
        const_spec(params["w2_t"]), const_spec(params["b2"]),
        const_spec(mix_wb), const_spec(mix_bb),
    ]
    out_spec = pl.BlockSpec((1, N, n_int * Ti * C_out), lambda b: (b, 0, 0))

    out = pl.pallas_call(
        kern,
        out_shape=jax.ShapeDtypeStruct((B, N, n_int * Ti * C_out), jnp.float32),
        grid=(B,),
        in_specs=in_specs,
        out_specs=out_spec,
        compiler_params=pltpu.CompilerParams(
            dimension_semantics=("parallel",)),
    )(x_flat, means, dy_node_fea,
      params["w_ih"], params["w_hh"], params["b_ih"], params["b_hh"],
      params["w1_t"], params["b1"], params["w2_t"], params["b2"],
      mix_wb, mix_bb)

    # [B, N, n_int*Ti*C_out] -> [B, C_out, N, T]
    out = out.reshape(B, N, n_int, Ti, C_out)
    out = jnp.transpose(out, (0, 4, 1, 2, 3)).reshape(B, C_out, N, Tp)
    return out[..., :T]


if __name__ == "__main__":
    B = 2
    conv_channels = 8
    residual_channels = 16
    num_nodes = 16
    T = 8
    gcn_depth = 2
    st_embedding_dim = 16
    dy_embedding_dim = 16
    dy_interval = 4
    propalpha = 0.05
    scale_set = 1.0  # stored-but-unused in the reference forward

    key = jax.random.PRNGKey(0)
    kx, kf, kp = jax.random.split(key, 3)
    x = jax.random.normal(kx, (B, conv_channels, num_nodes, T), jnp.float32)
    st_node_fea = jax.random.normal(kf, (num_nodes, st_embedding_dim), jnp.float32)
    params = init_params(kp, conv_channels, residual_channels, gcn_depth,
                         st_embedding_dim, dy_embedding_dim)

    fwd = jax.jit(functools.partial(evolving_gconv_forward,
                                    dy_interval=dy_interval,
                                    gcn_depth=gcn_depth,
                                    propalpha=propalpha))
    out = fwd(x, st_node_fea, params)
    out = jax.block_until_ready(out)
    assert out.shape == (B, residual_channels, num_nodes, T), out.shape
    assert bool(jnp.all(jnp.isfinite(out)))
    print("KERNEL_OK")
</pallas_src>

<mosaic_0001>
module attributes {stable_mosaic.version = 11 : i64} {
  func.func @egconv_fused_kernel(%arg0: i32, %arg1: memref<1x2x16x32xf32, #tpu.memory_space<vmem>>, %arg2: memref<1x32x8xf32, #tpu.memory_space<vmem>>, %arg3: memref<16x16xf32, #tpu.memory_space<vmem>>, %arg4: memref<3x8x16xf32, #tpu.memory_space<vmem>>, %arg5: memref<3x16x16xf32, #tpu.memory_space<vmem>>, %arg6: memref<3x1x16xf32, #tpu.memory_space<vmem>>, %arg7: memref<3x1x16xf32, #tpu.memory_space<vmem>>, %arg8: memref<16x16xf32, #tpu.memory_space<vmem>>, %arg9: memref<1x16xf32, #tpu.memory_space<vmem>>, %arg10: memref<16x16xf32, #tpu.memory_space<vmem>>, %arg11: memref<1x16xf32, #tpu.memory_space<vmem>>, %arg12: memref<3x32x64xf32, #tpu.memory_space<vmem>>, %arg13: memref<1x64xf32, #tpu.memory_space<vmem>>, %arg14: memref<1x16x128xf32, #tpu.memory_space<vmem>>) attributes {dimension_semantics = [#tpu.dimension_semantics<parallel>], iteration_bounds = array<i64: 2>, scalar_prefetch = 0 : i64, scratch_operands = 0 : i64, tpu.core_type = #tpu.core_type<tc>, window_params = [{transform_indices = @transform_0, window_bounds = array<i64: 1, 2, 16, 32>}, {transform_indices = @transform_1, window_bounds = array<i64: 1, 32, 8>}, {pipeline_mode = #tpu.pipeline_mode<synchronous>, transform_indices = @transform_2, window_bounds = array<i64: 16, 16>}, {pipeline_mode = #tpu.pipeline_mode<synchronous>, transform_indices = @transform_3, window_bounds = array<i64: 3, 8, 16>}, {pipeline_mode = #tpu.pipeline_mode<synchronous>, transform_indices = @transform_4, window_bounds = array<i64: 3, 16, 16>}, {pipeline_mode = #tpu.pipeline_mode<synchronous>, transform_indices = @transform_5, window_bounds = array<i64: 3, 1, 16>}, {pipeline_mode = #tpu.pipeline_mode<synchronous>, transform_indices = @transform_6, window_bounds = array<i64: 3, 1, 16>}, {pipeline_mode = #tpu.pipeline_mode<synchronous>, transform_indices = @transform_7, window_bounds = array<i64: 16, 16>}, {pipeline_mode = #tpu.pipeline_mode<synchronous>, transform_indices = @transform_8, window_bounds = array<i64: 1, 16>}, {pipeline_mode = #tpu.pipeline_mode<synchronous>, transform_indices = @transform_9, window_bounds = array<i64: 16, 16>}, {pipeline_mode = #tpu.pipeline_mode<synchronous>, transform_indices = @transform_10, window_bounds = array<i64: 1, 16>}, {pipeline_mode = #tpu.pipeline_mode<synchronous>, transform_indices = @transform_11, window_bounds = array<i64: 3, 32, 64>}, {pipeline_mode = #tpu.pipeline_mode<synchronous>, transform_indices = @transform_12, window_bounds = array<i64: 1, 64>}, {transform_indices = @transform_13, window_bounds = array<i64: 1, 16, 128>}]} {
    %c0 = arith.constant 0 : index
    %c0_0 = arith.constant 0 : index
    %c0_1 = arith.constant 0 : index
    %0 = vector.load %arg2[%c0, %c0_0, %c0_1] : memref<1x32x8xf32, #tpu.memory_space<vmem>>, vector<1x32x8xf32>
    %1 = vector.shape_cast %0 : vector<1x32x8xf32> to vector<32x8xf32>
    %c0_2 = arith.constant 0 : index
    %c0_3 = arith.constant 0 : index
    %c0_4 = arith.constant 0 : index
    %2 = vector.load %arg4[%c0_2, %c0_3, %c0_4] : memref<3x8x16xf32, #tpu.memory_space<vmem>>, vector<1x8x16xf32>
    %3 = vector.shape_cast %2 : vector<1x8x16xf32> to vector<8x16xf32>
    %cst = arith.constant dense<0.000000e+00> : vector<32x16xf32>
    %4 = tpu.matmul %1, %3, %cst {dimension_numbers = #tpu.dot_dimension_numbers<[1], [0], [0], [1], [0, 0, 1, 1], [], []>} : vector<32x8xf32>, vector<8x16xf32>, vector<32x16xf32> -> vector<32x16xf32>
    %c0_5 = arith.constant 0 : index
    %c0_6 = arith.constant 0 : index
    %c0_7 = arith.constant 0 : index
    %5 = vector.load %arg6[%c0_5, %c0_6, %c0_7] : memref<3x1x16xf32, #tpu.memory_space<vmem>>, vector<1x1x16xf32>
    %6 = vector.shape_cast %5 : vector<1x1x16xf32> to vector<1x16xf32>
    %7 = vector.broadcast %6 : vector<1x16xf32> to vector<32x16xf32>
    %8 = arith.addf %4, %7 : vector<32x16xf32>
    %c1 = arith.constant 1 : index
    %c0_8 = arith.constant 0 : index
    %c0_9 = arith.constant 0 : index
    %9 = vector.load %arg4[%c1, %c0_8, %c0_9] : memref<3x8x16xf32, #tpu.memory_space<vmem>>, vector<1x8x16xf32>
    %10 = vector.shape_cast %9 : vector<1x8x16xf32> to vector<8x16xf32>
    %cst_10 = arith.constant dense<0.000000e+00> : vector<32x16xf32>
    %11 = tpu.matmul %1, %10, %cst_10 {dimension_numbers = #tpu.dot_dimension_numbers<[1], [0], [0], [1], [0, 0, 1, 1], [], []>} : vector<32x8xf32>, vector<8x16xf32>, vector<32x16xf32> -> vector<32x16xf32>
    %c1_11 = arith.constant 1 : index
    %c0_12 = arith.constant 0 : index
    %c0_13 = arith.constant 0 : index
    %12 = vector.load %arg6[%c1_11, %c0_12, %c0_13] : memref<3x1x16xf32, #tpu.memory_space<vmem>>, vector<1x1x16xf32>
    %13 = vector.shape_cast %12 : vector<1x1x16xf32> to vector<1x16xf32>
    %14 = vector.broadcast %13 : vector<1x16xf32> to vector<32x16xf32>
    %15 = arith.addf %11, %14 : vector<32x16xf32>
    %c2 = arith.constant 2 : index
    %c0_14 = arith.constant 0 : index
    %c0_15 = arith.constant 0 : index
    %16 = vector.load %arg4[%c2, %c0_14, %c0_15] : memref<3x8x16xf32, #tpu.memory_space<vmem>>, vector<1x8x16xf32>
    %17 = vector.shape_cast %16 : vector<1x8x16xf32> to vector<8x16xf32>
    %cst_16 = arith.constant dense<0.000000e+00> : vector<32x16xf32>
    %18 = tpu.matmul %1, %17, %cst_16 {dimension_numbers = #tpu.dot_dimension_numbers<[1], [0], [0], [1], [0, 0, 1, 1], [], []>} : vector<32x8xf32>, vector<8x16xf32>, vector<32x16xf32> -> vector<32x16xf32>
    %c2_17 = arith.constant 2 : index
    %c0_18 = arith.constant 0 : index
    %c0_19 = arith.constant 0 : index
    %19 = vector.load %arg6[%c2_17, %c0_18, %c0_19] : memref<3x1x16xf32, #tpu.memory_space<vmem>>, vector<1x1x16xf32>
    %20 = vector.shape_cast %19 : vector<1x1x16xf32> to vector<1x16xf32>
    %21 = vector.broadcast %20 : vector<1x16xf32> to vector<32x16xf32>
    %22 = arith.addf %18, %21 : vector<32x16xf32>
    %23 = tpu.iota {dimensions = array<i32: 0>} : vector<16x16xi32>
    %24 = tpu.iota {dimensions = array<i32: 1>} : vector<16x16xi32>
    %25 = arith.cmpi eq, %23, %24 : vector<16x16xi32>
    %26 = arith.extui %25 : vector<16x16xi1> to vector<16x16xi32>
    %27 = arith.sitofp %26 : vector<16x16xi32> to vector<16x16xf32>
    %c0_20 = arith.constant 0 : index
    %c0_21 = arith.constant 0 : index
    %28 = vector.load %arg3[%c0_20, %c0_21] : memref<16x16xf32, #tpu.memory_space<vmem>>, vector<16x16xf32>
    %c0_22 = arith.constant 0 : index
    %c0_23 = arith.constant 0 : index
    %c0_24 = arith.constant 0 : index
    %29 = vector.load %arg5[%c0_22, %c0_23, %c0_24] : memref<3x16x16xf32, #tpu.memory_space<vmem>>, vector<1x16x16xf32>
    %30 = vector.shape_cast %29 : vector<1x16x16xf32> to vector<16x16xf32>
    %cst_25 = arith.constant dense<0.000000e+00> : vector<16x16xf32>
    %31 = tpu.matmul %28, %30, %cst_25 {dimension_numbers = #tpu.dot_dimension_numbers<[1], [0], [0], [1], [0, 0, 1, 1], [], []>} : vector<16x16xf32>, vector<16x16xf32>, vector<16x16xf32> -> vector<16x16xf32>
    %c0_26 = arith.constant 0 : index
    %c0_27 = arith.constant 0 : index
    %c0_28 = arith.constant 0 : index
    %32 = vector.load %arg7[%c0_26, %c0_27, %c0_28] : memref<3x1x16xf32, #tpu.memory_space<vmem>>, vector<1x1x16xf32>
    %33 = vector.shape_cast %32 : vector<1x1x16xf32> to vector<1x16xf32>
    %34 = vector.broadcast %33 : vector<1x16xf32> to vector<16x16xf32>
    %35 = arith.addf %31, %34 : vector<16x16xf32>
    %c1_29 = arith.constant 1 : index
    %c0_30 = arith.constant 0 : index
    %c0_31 = arith.constant 0 : index
    %36 = vector.load %arg5[%c1_29, %c0_30, %c0_31] : memref<3x16x16xf32, #tpu.memory_space<vmem>>, vector<1x16x16xf32>
    %37 = vector.shape_cast %36 : vector<1x16x16xf32> to vector<16x16xf32>
    %cst_32 = arith.constant dense<0.000000e+00> : vector<16x16xf32>
    %38 = tpu.matmul %28, %37, %cst_32 {dimension_numbers = #tpu.dot_dimension_numbers<[1], [0], [0], [1], [0, 0, 1, 1], [], []>} : vector<16x16xf32>, vector<16x16xf32>, vector<16x16xf32> -> vector<16x16xf32>
    %c1_33 = arith.constant 1 : index
    %c0_34 = arith.constant 0 : index
    %c0_35 = arith.constant 0 : index
    %39 = vector.load %arg7[%c1_33, %c0_34, %c0_35] : memref<3x1x16xf32, #tpu.memory_space<vmem>>, vector<1x1x16xf32>
    %40 = vector.shape_cast %39 : vector<1x1x16xf32> to vector<1x16xf32>
    %41 = vector.broadcast %40 : vector<1x16xf32> to vector<16x16xf32>
    %42 = arith.addf %38, %41 : vector<16x16xf32>
    %c2_36 = arith.constant 2 : index
    %c0_37 = arith.constant 0 : index
    %c0_38 = arith.constant 0 : index
    %43 = vector.load %arg5[%c2_36, %c0_37, %c0_38] : memref<3x16x16xf32, #tpu.memory_space<vmem>>, vector<1x16x16xf32>
    %44 = vector.shape_cast %43 : vector<1x16x16xf32> to vector<16x16xf32>
    %cst_39 = arith.constant dense<0.000000e+00> : vector<16x16xf32>
    %45 = tpu.matmul %28, %44, %cst_39 {dimension_numbers = #tpu.dot_dimension_numbers<[1], [0], [0], [1], [0, 0, 1, 1], [], []>} : vector<16x16xf32>, vector<16x16xf32>, vector<16x16xf32> -> vector<16x16xf32>
    %c2_40 = arith.constant 2 : index
    %c0_41 = arith.constant 0 : index
    %c0_42 = arith.constant 0 : index
    %46 = vector.load %arg7[%c2_40, %c0_41, %c0_42] : memref<3x1x16xf32, #tpu.memory_space<vmem>>, vector<1x1x16xf32>
    %47 = vector.shape_cast %46 : vector<1x1x16xf32> to vector<1x16xf32>
    %48 = vector.broadcast %47 : vector<1x16xf32> to vector<16x16xf32>
    %49 = arith.addf %45, %48 : vector<16x16xf32>
    %50 = vector.extract_strided_slice %8 {offsets = [0, 0], sizes = [16, 16], strides = [1, 1]} : vector<32x16xf32> to vector<16x16xf32>
    %51 = arith.addf %50, %35 : vector<16x16xf32>
    %52 = arith.negf %51 : vector<16x16xf32>
    %53 = math.exp %52 : vector<16x16xf32>
    %cst_43 = arith.constant 1.000000e+00 : f32
    %54 = vector.broadcast %cst_43 : f32 to vector<16x16xf32>
    %55 = arith.addf %54, %53 : vector<16x16xf32>
    %56 = arith.divf %54, %55 : vector<16x16xf32>
    %57 = vector.extract_strided_slice %15 {offsets = [0, 0], sizes = [16, 16], strides = [1, 1]} : vector<32x16xf32> to vector<16x16xf32>
    %58 = arith.addf %57, %42 : vector<16x16xf32>
    %59 = arith.negf %58 : vector<16x16xf32>
    %60 = math.exp %59 : vector<16x16xf32>
    %cst_44 = arith.constant 1.000000e+00 : f32
    %61 = vector.broadcast %cst_44 : f32 to vector<16x16xf32>
    %62 = arith.addf %61, %60 : vector<16x16xf32>
    %63 = arith.divf %61, %62 : vector<16x16xf32>
    %64 = vector.extract_strided_slice %22 {offsets = [0, 0], sizes = [16, 16], strides = [1, 1]} : vector<32x16xf32> to vector<16x16xf32>
    %65 = arith.mulf %56, %49 : vector<16x16xf32>
    %66 = arith.addf %64, %65 : vector<16x16xf32>
    %67 = math.tanh %66 : vector<16x16xf32>
    %cst_45 = arith.constant 1.000000e+00 : f32
    %68 = vector.broadcast %cst_45 : f32 to vector<16x16xf32>
    %69 = arith.subf %68, %63 : vector<16x16xf32>
    %70 = arith.mulf %69, %67 : vector<16x16xf32>
    %71 = arith.mulf %63, %28 : vector<16x16xf32>
    %72 = arith.addf %70, %71 : vector<16x16xf32>
    %c0_46 = arith.constant 0 : index
    %c0_47 = arith.constant 0 : index
    %73 = vector.load %arg8[%c0_46, %c0_47] : memref<16x16xf32, #tpu.memory_space<vmem>>, vector<16x16xf32>
    %cst_48 = arith.constant dense<0.000000e+00> : vector<16x16xf32>
    %74 = tpu.matmul %72, %73, %cst_48 {dimension_numbers = #tpu.dot_dimension_numbers<[1], [0], [0], [1], [0, 0, 1, 1], [], []>} : vector<16x16xf32>, vector<16x16xf32>, vector<16x16xf32> -> vector<16x16xf32>
    %c0_49 = arith.constant 0 : index
    %c0_50 = arith.constant 0 : index
    %75 = vector.load %arg9[%c0_49, %c0_50] : memref<1x16xf32, #tpu.memory_space<vmem>>, vector<1x16xf32>
    %76 = vector.broadcast %75 : vector<1x16xf32> to vector<16x16xf32>
    %77 = arith.addf %74, %76 : vector<16x16xf32>
    %78 = math.tanh %77 : vector<16x16xf32>
    %c0_51 = arith.constant 0 : index
    %c0_52 = arith.constant 0 : index
    %79 = vector.load %arg10[%c0_51, %c0_52] : memref<16x16xf32, #tpu.memory_space<vmem>>, vector<16x16xf32>
    %cst_53 = arith.constant dense<0.000000e+00> : vector<16x16xf32>
    %80 = tpu.matmul %72, %79, %cst_53 {dimension_numbers = #tpu.dot_dimension_numbers<[1], [0], [0], [1], [0, 0, 1, 1], [], []>} : vector<16x16xf32>, vector<16x16xf32>, vector<16x16xf32> -> vector<16x16xf32>
    %c0_54 = arith.constant 0 : index
    %c0_55 = arith.constant 0 : index
    %81 = vector.load %arg11[%c0_54, %c0_55] : memref<1x16xf32, #tpu.memory_space<vmem>>, vector<1x16xf32>
    %82 = vector.broadcast %81 : vector<1x16xf32> to vector<16x16xf32>
    %83 = arith.addf %80, %82 : vector<16x16xf32>
    %84 = math.tanh %83 : vector<16x16xf32>
    %cst_56 = arith.constant dense<0.000000e+00> : vector<16x16xf32>
    %85 = tpu.matmul %78, %84, %cst_56 {dimension_numbers = #tpu.dot_dimension_numbers<[1], [1], [0], [0], [0, 0, 1, 0], [], []>} : vector<16x16xf32>, vector<16x16xf32>, vector<16x16xf32> -> vector<16x16xf32>
    %cst_57 = arith.constant dense<0.000000e+00> : vector<16x16xf32>
    %86 = tpu.matmul %84, %78, %cst_57 {dimension_numbers = #tpu.dot_dimension_numbers<[1], [1], [0], [0], [0, 0, 1, 0], [], []>} : vector<16x16xf32>, vector<16x16xf32>, vector<16x16xf32> -> vector<16x16xf32>
    %87 = arith.subf %85, %86 : vector<16x16xf32>
    %88 = math.tanh %87 : vector<16x16xf32>
    %cst_58 = arith.constant 0.000000e+00 : f32
    %89 = vector.broadcast %cst_58 : f32 to vector<16x16xf32>
    %90 = arith.maximumf %88, %89 : vector<16x16xf32>
    %91 = arith.addf %90, %27 : vector<16x16xf32>
    %cst_59 = arith.constant dense<0.000000e+00> : vector<16xf32>
    %92 = vector.multi_reduction <add>, %91, %cst_59 [1] : vector<16x16xf32> to vector<16xf32>
    %93 = vector.shape_cast %92 : vector<16xf32> to vector<16x1xf32>
    %94 = tpu.reciprocal %93 {approx = true} : vector<16x1xf32> -> vector<16x1xf32>
    %95 = vector.broadcast %94 : vector<16x1xf32> to vector<16x16xf32>
    %96 = arith.mulf %91, %95 : vector<16x16xf32>
    %c0_60 = arith.constant 0 : index
    %c0_61 = arith.constant 0 : index
    %c0_62 = arith.constant 0 : index
    %c0_63 = arith.constant 0 : index
    %97 = vector.load %arg1[%c0_60, %c0_61, %c0_62, %c0_63] : memref<1x2x16x32xf32, #tpu.memory_space<vmem>>, vector<1x1x16x32xf32>
    %98 = vector.shape_cast %97 : vector<1x1x16x32xf32> to vector<16x32xf32>
    %c0_64 = arith.constant 0 : index
    %c0_65 = arith.constant 0 : index
    %c0_66 = arith.constant 0 : index
    %99 = vector.load %arg12[%c0_64, %c0_65, %c0_66] : memref<3x32x64xf32, #tpu.memory_space<vmem>>, vector<1x32x64xf32>
    %100 = vector.shape_cast %99 : vector<1x32x64xf32> to vector<32x64xf32>
    %cst_67 = arith.constant dense<0.000000e+00> : vector<16x64xf32>
    %101 = tpu.matmul %98, %100, %cst_67 {dimension_numbers = #tpu.dot_dimension_numbers<[1], [0], [0], [1], [0, 0, 1, 1], [], []>} : vector<16x32xf32>, vector<32x64xf32>, vector<16x64xf32> -> vector<16x64xf32>
    %cst_68 = arith.constant dense<0.000000e+00> : vector<16x32xf32>
    %102 = tpu.matmul %96, %98, %cst_68 {dimension_numbers = #tpu.dot_dimension_numbers<[1], [0], [0], [1], [0, 0, 1, 1], [], []>} : vector<16x16xf32>, vector<16x32xf32>, vector<16x32xf32> -> vector<16x32xf32>
    %cst_69 = arith.constant 5.000000e-02 : f32
    %103 = vector.broadcast %cst_69 : f32 to vector<16x32xf32>
    %104 = arith.mulf %103, %98 : vector<16x32xf32>
    %cst_70 = arith.constant 0.949999988 : f32
    %105 = vector.broadcast %cst_70 : f32 to vector<16x32xf32>
    %106 = arith.mulf %105, %102 : vector<16x32xf32>
    %107 = arith.addf %104, %106 : vector<16x32xf32>
    %c1_71 = arith.constant 1 : index
    %c0_72 = arith.constant 0 : index
    %c0_73 = arith.constant 0 : index
    %108 = vector.load %arg12[%c1_71, %c0_72, %c0_73] : memref<3x32x64xf32, #tpu.memory_space<vmem>>, vector<1x32x64xf32>
    %109 = vector.shape_cast %108 : vector<1x32x64xf32> to vector<32x64xf32>
    %cst_74 = arith.constant dense<0.000000e+00> : vector<16x64xf32>
    %110 = tpu.matmul %107, %109, %cst_74 {dimension_numbers = #tpu.dot_dimension_numbers<[1], [0], [0], [1], [0, 0, 1, 1], [], []>} : vector<16x32xf32>, vector<32x64xf32>, vector<16x64xf32> -> vector<16x64xf32>
    %111 = arith.addf %101, %110 : vector<16x64xf32>
    %cst_75 = arith.constant dense<0.000000e+00> : vector<16x32xf32>
    %112 = tpu.matmul %96, %107, %cst_75 {dimension_numbers = #tpu.dot_dimension_numbers<[1], [0], [0], [1], [0, 0, 1, 1], [], []>} : vector<16x16xf32>, vector<16x32xf32>, vector<16x32xf32> -> vector<16x32xf32>
    %cst_76 = arith.constant 5.000000e-02 : f32
    %113 = vector.broadcast %cst_76 : f32 to vector<16x32xf32>
    %114 = arith.mulf %113, %98 : vector<16x32xf32>
    %cst_77 = arith.constant 0.949999988 : f32
    %115 = vector.broadcast %cst_77 : f32 to vector<16x32xf32>
    %116 = arith.mulf %115, %112 : vector<16x32xf32>
    %117 = arith.addf %114, %116 : vector<16x32xf32>
    %c2_78 = arith.constant 2 : index
    %c0_79 = arith.constant 0 : index
    %c0_80 = arith.constant 0 : index
    %118 = vector.load %arg12[%c2_78, %c0_79, %c0_80] : memref<3x32x64xf32, #tpu.memory_space<vmem>>, vector<1x32x64xf32>
    %119 = vector.shape_cast %118 : vector<1x32x64xf32> to vector<32x64xf32>
    %cst_81 = arith.constant dense<0.000000e+00> : vector<16x64xf32>
    %120 = tpu.matmul %117, %119, %cst_81 {dimension_numbers = #tpu.dot_dimension_numbers<[1], [0], [0], [1], [0, 0, 1, 1], [], []>} : vector<16x32xf32>, vector<32x64xf32>, vector<16x64xf32> -> vector<16x64xf32>
    %121 = arith.addf %111, %120 : vector<16x64xf32>
    %c0_82 = arith.constant 0 : index
    %c0_83 = arith.constant 0 : index
    %122 = vector.load %arg13[%c0_82, %c0_83] : memref<1x64xf32, #tpu.memory_space<vmem>>, vector<1x64xf32>
    %123 = vector.broadcast %122 : vector<1x64xf32> to vector<16x64xf32>
    %124 = arith.addf %121, %123 : vector<16x64xf32>
    %c0_84 = arith.constant 0 : index
    %c0_85 = arith.constant 0 : index
    %c0_86 = arith.constant 0 : index
    %125 = vector.load %arg5[%c0_84, %c0_85, %c0_86] : memref<3x16x16xf32, #tpu.memory_space<vmem>>, vector<1x16x16xf32>
    %126 = vector.shape_cast %125 : vector<1x16x16xf32> to vector<16x16xf32>
    %cst_87 = arith.constant dense<0.000000e+00> : vector<16x16xf32>
    %127 = tpu.matmul %72, %126, %cst_87 {dimension_numbers = #tpu.dot_dimension_numbers<[1], [0], [0], [1], [0, 0, 1, 1], [], []>} : vector<16x16xf32>, vector<16x16xf32>, vector<16x16xf32> -> vector<16x16xf32>
    %c0_88 = arith.constant 0 : index
    %c0_89 = arith.constant 0 : index
    %c0_90 = arith.constant 0 : index
    %128 = vector.load %arg7[%c0_88, %c0_89, %c0_90] : memref<3x1x16xf32, #tpu.memory_space<vmem>>, vector<1x1x16xf32>
    %129 = vector.shape_cast %128 : vector<1x1x16xf32> to vector<1x16xf32>
    %130 = vector.broadcast %129 : vector<1x16xf32> to vector<16x16xf32>
    %131 = arith.addf %127, %130 : vector<16x16xf32>
    %c1_91 = arith.constant 1 : index
    %c0_92 = arith.constant 0 : index
    %c0_93 = arith.constant 0 : index
    %132 = vector.load %arg5[%c1_91, %c0_92, %c0_93] : memref<3x16x16xf32, #tpu.memory_space<vmem>>, vector<1x16x16xf32>
    %133 = vector.shape_cast %132 : vector<1x16x16xf32> to vector<16x16xf32>
    %cst_94 = arith.constant dense<0.000000e+00> : vector<16x16xf32>
    %134 = tpu.matmul %72, %133, %cst_94 {dimension_numbers = #tpu.dot_dimension_numbers<[1], [0], [0], [1], [0, 0, 1, 1], [], []>} : vector<16x16xf32>, vector<16x16xf32>, vector<16x16xf32> -> vector<16x16xf32>
    %c1_95 = arith.constant 1 : index
    %c0_96 = arith.constant 0 : index
    %c0_97 = arith.constant 0 : index
    %135 = vector.load %arg7[%c1_95, %c0_96, %c0_97] : memref<3x1x16xf32, #tpu.memory_space<vmem>>, vector<1x1x16xf32>
    %136 = vector.shape_cast %135 : vector<1x1x16xf32> to vector<1x16xf32>
    %137 = vector.broadcast %136 : vector<1x16xf32> to vector<16x16xf32>
    %138 = arith.addf %134, %137 : vector<16x16xf32>
    %c2_98 = arith.constant 2 : index
    %c0_99 = arith.constant 0 : index
    %c0_100 = arith.constant 0 : index
    %139 = vector.load %arg5[%c2_98, %c0_99, %c0_100] : memref<3x16x16xf32, #tpu.memory_space<vmem>>, vector<1x16x16xf32>
    %140 = vector.shape_cast %139 : vector<1x16x16xf32> to vector<16x16xf32>
    %cst_101 = arith.constant dense<0.000000e+00> : vector<16x16xf32>
    %141 = tpu.matmul %72, %140, %cst_101 {dimension_numbers = #tpu.dot_dimension_numbers<[1], [0], [0], [1], [0, 0, 1, 1], [], []>} : vector<16x16xf32>, vector<16x16xf32>, vector<16x16xf32> -> vector<16x16xf32>
    %c2_102 = arith.constant 2 : index
    %c0_103 = arith.constant 0 : index
    %c0_104 = arith.constant 0 : index
    %142 = vector.load %arg7[%c2_102, %c0_103, %c0_104] : memref<3x1x16xf32, #tpu.memory_space<vmem>>, vector<1x1x16xf32>
    %143 = vector.shape_cast %142 : vector<1x1x16xf32> to vector<1x16xf32>
    %144 = vector.broadcast %143 : vector<1x16xf32> to vector<16x16xf32>
    %145 = arith.addf %141, %144 : vector<16x16xf32>
    %146 = vector.extract_strided_slice %8 {offsets = [16, 0], sizes = [16, 16], strides = [1, 1]} : vector<32x16xf32> to vector<16x16xf32>
    %147 = arith.addf %146, %131 : vector<16x16xf32>
    %148 = arith.negf %147 : vector<16x16xf32>
    %149 = math.exp %148 : vector<16x16xf32>
    %cst_105 = arith.constant 1.000000e+00 : f32
    %150 = vector.broadcast %cst_105 : f32 to vector<16x16xf32>
    %151 = arith.addf %150, %149 : vector<16x16xf32>
    %152 = arith.divf %150, %151 : vector<16x16xf32>
    %153 = vector.extract_strided_slice %15 {offsets = [16, 0], sizes = [16, 16], strides = [1, 1]} : vector<32x16xf32> to vector<16x16xf32>
    %154 = arith.addf %153, %138 : vector<16x16xf32>
    %155 = arith.negf %154 : vector<16x16xf32>
    %156 = math.exp %155 : vector<16x16xf32>
    %cst_106 = arith.constant 1.000000e+00 : f32
    %157 = vector.broadcast %cst_106 : f32 to vector<16x16xf32>
    %158 = arith.addf %157, %156 : vector<16x16xf32>
    %159 = arith.divf %157, %158 : vector<16x16xf32>
    %160 = vector.extract_strided_slice %22 {offsets = [16, 0], sizes = [16, 16], strides = [1, 1]} : vector<32x16xf32> to vector<16x16xf32>
    %161 = arith.mulf %152, %145 : vector<16x16xf32>
    %162 = arith.addf %160, %161 : vector<16x16xf32>
    %163 = math.tanh %162 : vector<16x16xf32>
    %cst_107 = arith.constant 1.000000e+00 : f32
    %164 = vector.broadcast %cst_107 : f32 to vector<16x16xf32>
    %165 = arith.subf %164, %159 : vector<16x16xf32>
    %166 = arith.mulf %165, %163 : vector<16x16xf32>
    %167 = arith.mulf %159, %72 : vector<16x16xf32>
    %168 = arith.addf %166, %167 : vector<16x16xf32>
    %c0_108 = arith.constant 0 : index
    %c0_109 = arith.constant 0 : index
    %169 = vector.load %arg8[%c0_108, %c0_109] : memref<16x16xf32, #tpu.memory_space<vmem>>, vector<16x16xf32>
    %cst_110 = arith.constant dense<0.000000e+00> : vector<16x16xf32>
    %170 = tpu.matmul %168, %169, %cst_110 {dimension_numbers = #tpu.dot_dimension_numbers<[1], [0], [0], [1], [0, 0, 1, 1], [], []>} : vector<16x16xf32>, vector<16x16xf32>, vector<16x16xf32> -> vector<16x16xf32>
    %c0_111 = arith.constant 0 : index
    %c0_112 = arith.constant 0 : index
    %171 = vector.load %arg9[%c0_111, %c0_112] : memref<1x16xf32, #tpu.memory_space<vmem>>, vector<1x16xf32>
    %172 = vector.broadcast %171 : vector<1x16xf32> to vector<16x16xf32>
    %173 = arith.addf %170, %172 : vector<16x16xf32>
    %174 = math.tanh %173 : vector<16x16xf32>
    %c0_113 = arith.constant 0 : index
    %c0_114 = arith.constant 0 : index
    %175 = vector.load %arg10[%c0_113, %c0_114] : memref<16x16xf32, #tpu.memory_space<vmem>>, vector<16x16xf32>
    %cst_115 = arith.constant dense<0.000000e+00> : vector<16x16xf32>
    %176 = tpu.matmul %168, %175, %cst_115 {dimension_numbers = #tpu.dot_dimension_numbers<[1], [0], [0], [1], [0, 0, 1, 1], [], []>} : vector<16x16xf32>, vector<16x16xf32>, vector<16x16xf32> -> vector<16x16xf32>
    %c0_116 = arith.constant 0 : index
    %c0_117 = arith.constant 0 : index
    %177 = vector.load %arg11[%c0_116, %c0_117] : memref<1x16xf32, #tpu.memory_space<vmem>>, vector<1x16xf32>
    %178 = vector.broadcast %177 : vector<1x16xf32> to vector<16x16xf32>
    %179 = arith.addf %176, %178 : vector<16x16xf32>
    %180 = math.tanh %179 : vector<16x16xf32>
    %cst_118 = arith.constant dense<0.000000e+00> : vector<16x16xf32>
    %181 = tpu.matmul %174, %180, %cst_118 {dimension_numbers = #tpu.dot_dimension_numbers<[1], [1], [0], [0], [0, 0, 1, 0], [], []>} : vector<16x16xf32>, vector<16x16xf32>, vector<16x16xf32> -> vector<16x16xf32>
    %cst_119 = arith.constant dense<0.000000e+00> : vector<16x16xf32>
    %182 = tpu.matmul %180, %174, %cst_119 {dimension_numbers = #tpu.dot_dimension_numbers<[1], [1], [0], [0], [0, 0, 1, 0], [], []>} : vector<16x16xf32>, vector<16x16xf32>, vector<16x16xf32> -> vector<16x16xf32>
    %183 = arith.subf %181, %182 : vector<16x16xf32>
    %184 = math.tanh %183 : vector<16x16xf32>
    %cst_120 = arith.constant 0.000000e+00 : f32
    %185 = vector.broadcast %cst_120 : f32 to vector<16x16xf32>
    %186 = arith.maximumf %184, %185 : vector<16x16xf32>
    %187 = arith.addf %186, %27 : vector<16x16xf32>
    %cst_121 = arith.constant dense<0.000000e+00> : vector<16xf32>
    %188 = vector.multi_reduction <add>, %187, %cst_121 [1] : vector<16x16xf32> to vector<16xf32>
    %189 = vector.shape_cast %188 : vector<16xf32> to vector<16x1xf32>
    %190 = tpu.reciprocal %189 {approx = true} : vector<16x1xf32> -> vector<16x1xf32>
    %191 = vector.broadcast %190 : vector<16x1xf32> to vector<16x16xf32>
    %192 = arith.mulf %187, %191 : vector<16x16xf32>
    %c0_122 = arith.constant 0 : index
    %c1_123 = arith.constant 1 : index
    %c0_124 = arith.constant 0 : index
    %c0_125 = arith.constant 0 : index
    %193 = vector.load %arg1[%c0_122, %c1_123, %c0_124, %c0_125] : memref<1x2x16x32xf32, #tpu.memory_space<vmem>>, vector<1x1x16x32xf32>
    %194 = vector.shape_cast %193 : vector<1x1x16x32xf32> to vector<16x32xf32>
    %c0_126 = arith.constant 0 : index
    %c0_127 = arith.constant 0 : index
    %c0_128 = arith.constant 0 : index
    %195 = vector.load %arg12[%c0_126, %c0_127, %c0_128] : memref<3x32x64xf32, #tpu.memory_space<vmem>>, vector<1x32x64xf32>
    %196 = vector.shape_cast %195 : vector<1x32x64xf32> to vector<32x64xf32>
    %cst_129 = arith.constant dense<0.000000e+00> : vector<16x64xf32>
    %197 = tpu.matmul %194, %196, %cst_129 {dimension_numbers = #tpu.dot_dimension_numbers<[1], [0], [0], [1], [0, 0, 1, 1], [], []>} : vector<16x32xf32>, vector<32x64xf32>, vector<16x64xf32> -> vector<16x64xf32>
    %cst_130 = arith.constant dense<0.000000e+00> : vector<16x32xf32>
    %198 = tpu.matmul %192, %194, %cst_130 {dimension_numbers = #tpu.dot_dimension_numbers<[1], [0], [0], [1], [0, 0, 1, 1], [], []>} : vector<16x16xf32>, vector<16x32xf32>, vector<16x32xf32> -> vector<16x32xf32>
    %cst_131 = arith.constant 5.000000e-02 : f32
    %199 = vector.broadcast %cst_131 : f32 to vector<16x32xf32>
    %200 = arith.mulf %199, %194 : vector<16x32xf32>
    %cst_132 = arith.constant 0.949999988 : f32
    %201 = vector.broadcast %cst_132 : f32 to vector<16x32xf32>
    %202 = arith.mulf %201, %198 : vector<16x32xf32>
    %203 = arith.addf %200, %202 : vector<16x32xf32>
    %c1_133 = arith.constant 1 : index
    %c0_134 = arith.constant 0 : index
    %c0_135 = arith.constant 0 : index
    %204 = vector.load %arg12[%c1_133, %c0_134, %c0_135] : memref<3x32x64xf32, #tpu.memory_space<vmem>>, vector<1x32x64xf32>
    %205 = vector.shape_cast %204 : vector<1x32x64xf32> to vector<32x64xf32>
    %cst_136 = arith.constant dense<0.000000e+00> : vector<16x64xf32>
    %206 = tpu.matmul %203, %205, %cst_136 {dimension_numbers = #tpu.dot_dimension_numbers<[1], [0], [0], [1], [0, 0, 1, 1], [], []>} : vector<16x32xf32>, vector<32x64xf32>, vector<16x64xf32> -> vector<16x64xf32>
    %207 = arith.addf %197, %206 : vector<16x64xf32>
    %cst_137 = arith.constant dense<0.000000e+00> : vector<16x32xf32>
    %208 = tpu.matmul %192, %203, %cst_137 {dimension_numbers = #tpu.dot_dimension_numbers<[1], [0], [0], [1], [0, 0, 1, 1], [], []>} : vector<16x16xf32>, vector<16x32xf32>, vector<16x32xf32> -> vector<16x32xf32>
    %cst_138 = arith.constant 5.000000e-02 : f32
    %209 = vector.broadcast %cst_138 : f32 to vector<16x32xf32>
    %210 = arith.mulf %209, %194 : vector<16x32xf32>
    %cst_139 = arith.constant 0.949999988 : f32
    %211 = vector.broadcast %cst_139 : f32 to vector<16x32xf32>
    %212 = arith.mulf %211, %208 : vector<16x32xf32>
    %213 = arith.addf %210, %212 : vector<16x32xf32>
    %c2_140 = arith.constant 2 : index
    %c0_141 = arith.constant 0 : index
    %c0_142 = arith.constant 0 : index
    %214 = vector.load %arg12[%c2_140, %c0_141, %c0_142] : memref<3x32x64xf32, #tpu.memory_space<vmem>>, vector<1x32x64xf32>
    %215 = vector.shape_cast %214 : vector<1x32x64xf32> to vector<32x64xf32>
    %cst_143 = arith.constant dense<0.000000e+00> : vector<16x64xf32>
    %216 = tpu.matmul %213, %215, %cst_143 {dimension_numbers = #tpu.dot_dimension_numbers<[1], [0], [0], [1], [0, 0, 1, 1], [], []>} : vector<16x32xf32>, vector<32x64xf32>, vector<16x64xf32> -> vector<16x64xf32>
    %217 = arith.addf %207, %216 : vector<16x64xf32>
    %c0_144 = arith.constant 0 : index
    %c0_145 = arith.constant 0 : index
    %218 = vector.load %arg13[%c0_144, %c0_145] : memref<1x64xf32, #tpu.memory_space<vmem>>, vector<1x64xf32>
    %219 = vector.broadcast %218 : vector<1x64xf32> to vector<16x64xf32>
    %220 = arith.addf %217, %219 : vector<16x64xf32>
    %221 = tpu.concatenate %124, %220 in 1 : vector<16x64xf32>, vector<16x64xf32> -> vector<16x128xf32>
    %c0_146 = arith.constant 0 : index
    %c0_147 = arith.constant 0 : index
    %c0_148 = arith.constant 0 : index
    %222 = vector.load %arg14[%c0_146, %c0_147, %c0_148] : memref<1x16x128xf32, #tpu.memory_space<vmem>>, vector<1x16x128xf32>
    %223 = vector.shape_cast %222 : vector<1x16x128xf32> to vector<16x128xf32>
    %224 = vector.shape_cast %221 : vector<16x128xf32> to vector<1x16x128xf32>
    tpu.vector_store %arg14[%c0_146, %c0_147, %c0_148], %224 {strides = array<i32>} : memref<1x16x128xf32, #tpu.memory_space<vmem>>, vector<1x16x128xf32>,
    return
  }
  func.func @transform_0(%arg0: i32) -> (i32, i32, i32, i32) {
    %c0_i32 = arith.constant 0 : i32
    %c0_i32_0 = arith.constant 0 : i32
    %c0_i32_1 = arith.constant 0 : i32
    %c0_i32_2 = arith.constant 0 : i32
    return %arg0, %c0_i32, %c0_i32_0, %c0_i32_1 : i32, i32, i32, i32
  }
  func.func @transform_1(%arg0: i32) -> (i32, i32, i32) {
    %c0_i32 = arith.constant 0 : i32
    %c0_i32_0 = arith.constant 0 : i32
    %c0_i32_1 = arith.constant 0 : i32
    return %arg0, %c0_i32, %c0_i32_0 : i32, i32, i32
  }
  func.func @transform_2(%arg0: i32) -> (i32, i32) {
    %c0_i32 = arith.constant 0 : i32
    %c0_i32_0 = arith.constant 0 : i32
    %c0_i32_1 = arith.constant 0 : i32
    return %c0_i32, %c0_i32_0 : i32, i32
  }
  func.func @transform_3(%arg0: i32) -> (i32, i32, i32) {
    %c0_i32 = arith.constant 0 : i32
    %c0_i32_0 = arith.constant 0 : i32
    %c0_i32_1 = arith.constant 0 : i32
    %c0_i32_2 = arith.constant 0 : i32
    return %c0_i32, %c0_i32_0, %c0_i32_1 : i32, i32, i32
  }
  func.func @transform_4(%arg0: i32) -> (i32, i32, i32) {
    %c0_i32 = arith.constant 0 : i32
    %c0_i32_0 = arith.constant 0 : i32
    %c0_i32_1 = arith.constant 0 : i32
    %c0_i32_2 = arith.constant 0 : i32
    return %c0_i32, %c0_i32_0, %c0_i32_1 : i32, i32, i32
  }
  func.func @transform_5(%arg0: i32) -> (i32, i32, i32) {
    %c0_i32 = arith.constant 0 : i32
    %c0_i32_0 = arith.constant 0 : i32
    %c0_i32_1 = arith.constant 0 : i32
    %c0_i32_2 = arith.constant 0 : i32
    return %c0_i32, %c0_i32_0, %c0_i32_1 : i32, i32, i32
  }
  func.func @transform_6(%arg0: i32) -> (i32, i32, i32) {
    %c0_i32 = arith.constant 0 : i32
    %c0_i32_0 = arith.constant 0 : i32
    %c0_i32_1 = arith.constant 0 : i32
    %c0_i32_2 = arith.constant 0 : i32
    return %c0_i32, %c0_i32_0, %c0_i32_1 : i32, i32, i32
  }
  func.func @transform_7(%arg0: i32) -> (i32, i32) {
    %c0_i32 = arith.constant 0 : i32
    %c0_i32_0 = arith.constant 0 : i32
    %c0_i32_1 = arith.constant 0 : i32
    return %c0_i32, %c0_i32_0 : i32, i32
  }
  func.func @transform_8(%arg0: i32) -> (i32, i32) {
    %c0_i32 = arith.constant 0 : i32
    %c0_i32_0 = arith.constant 0 : i32
    %c0_i32_1 = arith.constant 0 : i32
    return %c0_i32, %c0_i32_0 : i32, i32
  }
  func.func @transform_9(%arg0: i32) -> (i32, i32) {
    %c0_i32 = arith.constant 0 : i32
    %c0_i32_0 = arith.constant 0 : i32
    %c0_i32_1 = arith.constant 0 : i32
    return %c0_i32, %c0_i32_0 : i32, i32
  }
  func.func @transform_10(%arg0: i32) -> (i32, i32) {
    %c0_i32 = arith.constant 0 : i32
    %c0_i32_0 = arith.constant 0 : i32
    %c0_i32_1 = arith.constant 0 : i32
    return %c0_i32, %c0_i32_0 : i32, i32
  }
  func.func @transform_11(%arg0: i32) -> (i32, i32, i32) {
    %c0_i32 = arith.constant 0 : i32
    %c0_i32_0 = arith.constant 0 : i32
    %c0_i32_1 = arith.constant 0 : i32
    %c0_i32_2 = arith.constant 0 : i32
    return %c0_i32, %c0_i32_0, %c0_i32_1 : i32, i32, i32
  }
  func.func @transform_12(%arg0: i32) -> (i32, i32) {
    %c0_i32 = arith.constant 0 : i32
    %c0_i32_0 = arith.constant 0 : i32
    %c0_i32_1 = arith.constant 0 : i32
    return %c0_i32, %c0_i32_0 : i32, i32
  }
  func.func @transform_13(%arg0: i32) -> (i32, i32, i32) {
    %c0_i32 = arith.constant 0 : i32
    %c0_i32_0 = arith.constant 0 : i32
    %c0_i32_1 = arith.constant 0 : i32
    return %arg0, %c0_i32, %c0_i32_0 : i32, i32, i32
  }
}

</mosaic_0001>

<llo_original>
// kernel: evolving_gconv_forward.1
$region0: #{evolving_gconv_forward.1}
  #allocation0 [shape = 'u32[]', space=smem, size = 0x4, offset = 0x4, fixed_abs, tag = 'smem constant byte address 0x4 - core index']
  #allocation1 [shape = 'u32[144,128]{1,0:T(1,128)}', space=vmem, size = 0x12000, scoped, tag = 'internal scratch']
  %s0 = inlined_call_operand.vmem [shape: f32[2,2,16,32], index: 0, kind: input, shape index: {}]
  %s1 = inlined_call_operand.vmem [shape: f32[2,32,8], index: 1, kind: input, shape index: {}]
  %s2 = inlined_call_operand.vmem [shape: f32[16,16], index: 2, kind: input, shape index: {}]
  %s3 = inlined_call_operand.vmem [shape: f32[3,8,16], index: 3, kind: input, shape index: {}]
  %s4 = inlined_call_operand.vmem [shape: f32[3,16,16], index: 4, kind: input, shape index: {}]
  %s5 = inlined_call_operand.vmem [shape: f32[3,1,16], index: 5, kind: input, shape index: {}]
  %s6 = inlined_call_operand.vmem [shape: f32[3,1,16], index: 6, kind: input, shape index: {}]
  %s7 = inlined_call_operand.vmem [shape: f32[16,16], index: 7, kind: input, shape index: {}]
  %s8 = inlined_call_operand.vmem [shape: f32[1,16], index: 8, kind: input, shape index: {}]
  %s9 = inlined_call_operand.vmem [shape: f32[16,16], index: 9, kind: input, shape index: {}]
  %s10 = inlined_call_operand.vmem [shape: f32[1,16], index: 10, kind: input, shape index: {}]
  %s11 = inlined_call_operand.vmem [shape: f32[3,32,64], index: 11, kind: input, shape index: {}]
  %s12 = inlined_call_operand.vmem [shape: f32[1,64], index: 12, kind: input, shape index: {}]
  %s13 = inlined_call_operand.vmem [shape: f32[2,16,128], index: 13, kind: output, shape index: {}]
  %s14 = sld [smem:[#allocation0]]
  $region85: #{evolving_gconv_forward.1} parent=0
    _
  %s16 = ssub.s32 1, %s14
  %s17 = scalar_select 0, %s16, %s14
  loop: start=0, step=1, limit=4
  $region2: #{evolving_gconv_forward.1} parent=0 // loop_pre_header
    _
  $region3: #{evolving_gconv_forward.1} parent=0 // loop_header
    %s19 = sphi 0, %s23
    %p20 = scmp.ge.s32.totalorder %s19, 4
    %s29 = sphi 0, %s31
    %s32 = sphi 0, %s29
    %s33 = sphi 0, %s32
    %s49 = sphi 0, %s33
    %s55 = sphi 0, %s57
    %s58 = sphi 0, %s55
    %s59 = sphi 0, %s58
    %s75 = sphi 0, %s59
    %s79 = sphi 0, %s79
    %s81 = sphi 0, %s79
    %s82 = sphi 0, %s81
    %s96 = sphi 0, %s82
    %s100 = sphi 0, %s100
    %s102 = sphi 0, %s100
    %s103 = sphi 0, %s102
    %s117 = sphi 0, %s103
    %s121 = sphi 0, %s121
    %s123 = sphi 0, %s121
    %s124 = sphi 0, %s123
    %s138 = sphi 0, %s124
    %s142 = sphi 0, %s142
    %s144 = sphi 0, %s142
    %s145 = sphi 0, %s144
    %s159 = sphi 0, %s145
    %s163 = sphi 0, %s163
    %s165 = sphi 0, %s163
    %s166 = sphi 0, %s165
    %s180 = sphi 0, %s166
    %s184 = sphi 0, %s184
    %s186 = sphi 0, %s184
    %s187 = sphi 0, %s186
    %s201 = sphi 0, %s187
    %s205 = sphi 0, %s205
    %s207 = sphi 0, %s205
    %s208 = sphi 0, %s207
    %s222 = sphi 0, %s208
    %s226 = sphi 0, %s226
    %s228 = sphi 0, %s226
    %s229 = sphi 0, %s228
    %s243 = sphi 0, %s229
    %s247 = sphi 0, %s247
    %s249 = sphi 0, %s247
    %s250 = sphi 0, %s249
    %s264 = sphi 0, %s250
    %s268 = sphi 0, %s268
    %s270 = sphi 0, %s268
    %s271 = sphi 0, %s270
    %s285 = sphi 0, %s271
    %s289 = sphi 0, %s289
    %s291 = sphi 0, %s289
    %s292 = sphi 0, %s291
    %s306 = sphi 0, %s292
    %s312 = sphi 0, %s314
    %s315 = sphi 0, %s312
    %s316 = sphi 0, %s315
    %s332 = sphi 0, %s316
  $region4: #{evolving_gconv_forward.1} parent=0 // loop_header_branch
    %22 = sbr.rel (%p20) target = $region8
  $region5: #{evolving_gconv_forward.1} parent=0 // loop_body
    %s24 = ssub.s32 %s19, 1
    %s25 = ssub.s32 %s19, 2
    %s26 = sadd.s32 %s19, 1
    %s27 = ssub.s32 %s19, %s26
    %p28 = scmp.eq.s32.totalorder %s27, 0
    %s30 = sadd.s32 %s29, 1
    %s31 = scalar_select %p28, %s29, %s30
    %p34 = pneg %p28
    %p35 = scmp.eq.s32.totalorder %s19, 1
    %p36 = por %p34, %p35
    %p37 = scmp.ne.s32.totalorder %s29, %s32
    %p38 = scmp.eq.s32.totalorder %s19, 0
    %p39 = por %p37, %p38
    %p40 = scmp.ne.s32.totalorder %s29, %s32
    %p41 = scmp.eq.s32.totalorder %s24, 1
    %p42 = por %p40, %p41
    %p43 = scmp.ne.s32.totalorder %s32, %s33
    %p44 = scmp.eq.s32.totalorder %s24, 0
    %p45 = por %p43, %p44
    %p46 = scmp.ne.s32.totalorder %s32, %s33
    %p47 = scmp.eq.s32.totalorder %s25, 1
    %p48 = por %p46, %p47
    %p50 = scmp.ne.s32.totalorder %s33, %s49
    %p51 = scmp.eq.s32.totalorder %s25, 0
    %p52 = por %p50, %p51
    %s53 = ssub.s32 %s19, %s26
    %p54 = scmp.eq.s32.totalorder %s53, 0
    %s56 = sadd.s32 %s55, 1
    %s57 = scalar_select %p54, %s55, %s56
    %p60 = pneg %p54
    %p61 = scmp.eq.s32.totalorder %s19, 1
    %p62 = por %p60, %p61
    %p63 = scmp.ne.s32.totalorder %s55, %s58
    %p64 = scmp.eq.s32.totalorder %s19, 0
    %p65 = por %p63, %p64
    %p66 = scmp.ne.s32.totalorder %s55, %s58
    %p67 = scmp.eq.s32.totalorder %s24, 1
    %p68 = por %p66, %p67
    %p69 = scmp.ne.s32.totalorder %s58, %s59
    %p70 = scmp.eq.s32.totalorder %s24, 0
    %p71 = por %p69, %p70
    %p72 = scmp.ne.s32.totalorder %s58, %s59
    %p73 = scmp.eq.s32.totalorder %s25, 1
    %p74 = por %p72, %p73
    %p76 = scmp.ne.s32.totalorder %s59, %s75
    %p77 = scmp.eq.s32.totalorder %s25, 0
    %p78 = por %p76, %p77
    %s80 = sadd.s32 %s79, 1
    %p83 = scmp.eq.s32.totalorder %s19, 1
    %p84 = scmp.ne.s32.totalorder %s79, %s81
    %p85 = scmp.eq.s32.totalorder %s19, 0
    %p86 = por %p84, %p85
    %p87 = scmp.ne.s32.totalorder %s79, %s81
    %p88 = scmp.eq.s32.totalorder %s24, 1
    %p89 = por %p87, %p88
    %p90 = scmp.ne.s32.totalorder %s81, %s82
    %p91 = scmp.eq.s32.totalorder %s24, 0
    %p92 = por %p90, %p91
    %p93 = scmp.ne.s32.totalorder %s81, %s82
    %p94 = scmp.eq.s32.totalorder %s25, 1
    %p95 = por %p93, %p94
    %p97 = scmp.ne.s32.totalorder %s82, %s96
    %p98 = scmp.eq.s32.totalorder %s25, 0
    %p99 = por %p97, %p98
    %s101 = sadd.s32 %s100, 1
    %p104 = scmp.eq.s32.totalorder %s19, 1
    %p105 = scmp.ne.s32.totalorder %s100, %s102
    %p106 = scmp.eq.s32.totalorder %s19, 0
    %p107 = por %p105, %p106
    %p108 = scmp.ne.s32.totalorder %s100, %s102
    %p109 = scmp.eq.s32.totalorder %s24, 1
    %p110 = por %p108, %p109
    %p111 = scmp.ne.s32.totalorder %s102, %s103
    %p112 = scmp.eq.s32.totalorder %s24, 0
    %p113 = por %p111, %p112
    %p114 = scmp.ne.s32.totalorder %s102, %s103
    %p115 = scmp.eq.s32.totalorder %s25, 1
    %p116 = por %p114, %p115
    %p118 = scmp.ne.s32.totalorder %s103, %s117
    %p119 = scmp.eq.s32.totalorder %s25, 0
    %p120 = por %p118, %p119
    %s122 = sadd.s32 %s121, 1
    %p125 = scmp.eq.s32.totalorder %s19, 1
    %p126 = scmp.ne.s32.totalorder %s121, %s123
    %p127 = scmp.eq.s32.totalorder %s19, 0
    %p128 = por %p126, %p127
    %p129 = scmp.ne.s32.totalorder %s121, %s123
    %p130 = scmp.eq.s32.totalorder %s24, 1
    %p131 = por %p129, %p130
    %p132 = scmp.ne.s32.totalorder %s123, %s124
    %p133 = scmp.eq.s32.totalorder %s24, 0
    %p134 = por %p132, %p133
    %p135 = scmp.ne.s32.totalorder %s123, %s124
    %p136 = scmp.eq.s32.totalorder %s25, 1
    %p137 = por %p135, %p136
    %p139 = scmp.ne.s32.totalorder %s124, %s138
    %p140 = scmp.eq.s32.totalorder %s25, 0
    %p141 = por %p139, %p140
    %s143 = sadd.s32 %s142, 1
    %p146 = scmp.eq.s32.totalorder %s19, 1
    %p147 = scmp.ne.s32.totalorder %s142, %s144
    %p148 = scmp.eq.s32.totalorder %s19, 0
    %p149 = por %p147, %p148
    %p150 = scmp.ne.s32.totalorder %s142, %s144
    %p151 = scmp.eq.s32.totalorder %s24, 1
    %p152 = por %p150, %p151
    %p153 = scmp.ne.s32.totalorder %s144, %s145
    %p154 = scmp.eq.s32.totalorder %s24, 0
    %p155 = por %p153, %p154
    %p156 = scmp.ne.s32.totalorder %s144, %s145
    %p157 = scmp.eq.s32.totalorder %s25, 1
    %p158 = por %p156, %p157
    %p160 = scmp.ne.s32.totalorder %s145, %s159
    %p161 = scmp.eq.s32.totalorder %s25, 0
    %p162 = por %p160, %p161
    %s164 = sadd.s32 %s163, 1
    %p167 = scmp.eq.s32.totalorder %s19, 1
    %p168 = scmp.ne.s32.totalorder %s163, %s165
    %p169 = scmp.eq.s32.totalorder %s19, 0
    %p170 = por %p168, %p169
    %p171 = scmp.ne.s32.totalorder %s163, %s165
    %p172 = scmp.eq.s32.totalorder %s24, 1
    %p173 = por %p171, %p172
    %p174 = scmp.ne.s32.totalorder %s165, %s166
    %p175 = scmp.eq.s32.totalorder %s24, 0
    %p176 = por %p174, %p175
    %p177 = scmp.ne.s32.totalorder %s165, %s166
    %p178 = scmp.eq.s32.totalorder %s25, 1
    %p179 = por %p177, %p178
    %p181 = scmp.ne.s32.totalorder %s166, %s180
    %p182 = scmp.eq.s32.totalorder %s25, 0
    %p183 = por %p181, %p182
    %s185 = sadd.s32 %s184, 1
    %p188 = scmp.eq.s32.totalorder %s19, 1
    %p189 = scmp.ne.s32.totalorder %s184, %s186
    %p190 = scmp.eq.s32.totalorder %s19, 0
    %p191 = por %p189, %p190
    %p192 = scmp.ne.s32.totalorder %s184, %s186
    %p193 = scmp.eq.s32.totalorder %s24, 1
    %p194 = por %p192, %p193
    %p195 = scmp.ne.s32.totalorder %s186, %s187
    %p196 = scmp.eq.s32.totalorder %s24, 0
    %p197 = por %p195, %p196
    %p198 = scmp.ne.s32.totalorder %s186, %s187
    %p199 = scmp.eq.s32.totalorder %s25, 1
    %p200 = por %p198, %p199
    %p202 = scmp.ne.s32.totalorder %s187, %s201
    %p203 = scmp.eq.s32.totalorder %s25, 0
    %p204 = por %p202, %p203
    %s206 = sadd.s32 %s205, 1
    %p209 = scmp.eq.s32.totalorder %s19, 1
    %p210 = scmp.ne.s32.totalorder %s205, %s207
    %p211 = scmp.eq.s32.totalorder %s19, 0
    %p212 = por %p210, %p211
    %p213 = scmp.ne.s32.totalorder %s205, %s207
    %p214 = scmp.eq.s32.totalorder %s24, 1
    %p215 = por %p213, %p214
    %p216 = scmp.ne.s32.totalorder %s207, %s208
    %p217 = scmp.eq.s32.totalorder %s24, 0
    %p218 = por %p216, %p217
    %p219 = scmp.ne.s32.totalorder %s207, %s208
    %p220 = scmp.eq.s32.totalorder %s25, 1
    %p221 = por %p219, %p220
    %p223 = scmp.ne.s32.totalorder %s208, %s222
    %p224 = scmp.eq.s32.totalorder %s25, 0
    %p225 = por %p223, %p224
    %s227 = sadd.s32 %s226, 1
    %p230 = scmp.eq.s32.totalorder %s19, 1
    %p231 = scmp.ne.s32.totalorder %s226, %s228
    %p232 = scmp.eq.s32.totalorder %s19, 0
    %p233 = por %p231, %p232
    %p234 = scmp.ne.s32.totalorder %s226, %s228
    %p235 = scmp.eq.s32.totalorder %s24, 1
    %p236 = por %p234, %p235
    %p237 = scmp.ne.s32.totalorder %s228, %s229
    %p238 = scmp.eq.s32.totalorder %s24, 0
    %p239 = por %p237, %p238
    %p240 = scmp.ne.s32.totalorder %s228, %s229
    %p241 = scmp.eq.s32.totalorder %s25, 1
    %p242 = por %p240, %p241
    %p244 = scmp.ne.s32.totalorder %s229, %s243
    %p245 = scmp.eq.s32.totalorder %s25, 0
    %p246 = por %p244, %p245
    %s248 = sadd.s32 %s247, 1
    %p251 = scmp.eq.s32.totalorder %s19, 1
    %p252 = scmp.ne.s32.totalorder %s247, %s249
    %p253 = scmp.eq.s32.totalorder %s19, 0
    %p254 = por %p252, %p253
    %p255 = scmp.ne.s32.totalorder %s247, %s249
    %p256 = scmp.eq.s32.totalorder %s24, 1
    %p257 = por %p255, %p256
    %p258 = scmp.ne.s32.totalorder %s249, %s250
    %p259 = scmp.eq.s32.totalorder %s24, 0
    %p260 = por %p258, %p259
    %p261 = scmp.ne.s32.totalorder %s249, %s250
    %p262 = scmp.eq.s32.totalorder %s25, 1
    %p263 = por %p261, %p262
    %p265 = scmp.ne.s32.totalorder %s250, %s264
    %p266 = scmp.eq.s32.totalorder %s25, 0
    %p267 = por %p265, %p266
    %s269 = sadd.s32 %s268, 1
    %p272 = scmp.eq.s32.totalorder %s19, 1
    %p273 = scmp.ne.s32.totalorder %s268, %s270
    %p274 = scmp.eq.s32.totalorder %s19, 0
    %p275 = por %p273, %p274
    %p276 = scmp.ne.s32.totalorder %s268, %s270
    %p277 = scmp.eq.s32.totalorder %s24, 1
    %p278 = por %p276, %p277
    %p279 = scmp.ne.s32.totalorder %s270, %s271
    %p280 = scmp.eq.s32.totalorder %s24, 0
    %p281 = por %p279, %p280
    %p282 = scmp.ne.s32.totalorder %s270, %s271
    %p283 = scmp.eq.s32.totalorder %s25, 1
    %p284 = por %p282, %p283
    %p286 = scmp.ne.s32.totalorder %s271, %s285
    %p287 = scmp.eq.s32.totalorder %s25, 0
    %p288 = por %p286, %p287
    %s290 = sadd.s32 %s289, 1
    %p293 = scmp.eq.s32.totalorder %s19, 1
    %p294 = scmp.ne.s32.totalorder %s289, %s291
    %p295 = scmp.eq.s32.totalorder %s19, 0
    %p296 = por %p294, %p295
    %p297 = scmp.ne.s32.totalorder %s289, %s291
    %p298 = scmp.eq.s32.totalorder %s24, 1
    %p299 = por %p297, %p298
    %p300 = scmp.ne.s32.totalorder %s291, %s292
    %p301 = scmp.eq.s32.totalorder %s24, 0
    %p302 = por %p300, %p301
    %p303 = scmp.ne.s32.totalorder %s291, %s292
    %p304 = scmp.eq.s32.totalorder %s25, 1
    %p305 = por %p303, %p304
    %p307 = scmp.ne.s32.totalorder %s292, %s306
    %p308 = scmp.eq.s32.totalorder %s25, 0
    %p309 = por %p307, %p308
    %s310 = ssub.s32 %s19, %s26
    %p311 = scmp.eq.s32.totalorder %s310, 0
    %s313 = sadd.s32 %s312, 1
    %s314 = scalar_select %p311, %s312, %s313
    %p317 = pneg %p311
    %p318 = scmp.eq.s32.totalorder %s19, 1
    %p319 = por %p317, %p318
    %p320 = scmp.ne.s32.totalorder %s312, %s315
    %p321 = scmp.eq.s32.totalorder %s19, 0
    %p322 = por %p320, %p321
    %p323 = scmp.ne.s32.totalorder %s312, %s315
    %p324 = scmp.eq.s32.totalorder %s24, 1
    %p325 = por %p323, %p324
    %p326 = scmp.ne.s32.totalorder %s315, %s316
    %p327 = scmp.eq.s32.totalorder %s24, 0
    %p328 = por %p326, %p327
    %p329 = scmp.ne.s32.totalorder %s315, %s316
    %p330 = scmp.eq.s32.totalorder %s25, 1
    %p331 = por %p329, %p330
    %p333 = scmp.ne.s32.totalorder %s316, %s332
    %p334 = scmp.eq.s32.totalorder %s25, 0
    %p335 = por %p333, %p334
    %p336 = scmp.le.s32.totalorder 1, %s19
    %p337 = scmp.lt.s32.totalorder %s19, 3
    %p338 = pnand %p336, %p337
    %p339 = pneg %p338
    // Predicated region
    $region9: #{evolving_gconv_forward.1} parent=5 // pred_check
      _
    $region10: #{evolving_gconv_forward.1} parent=5 // pred_check_branch
      %341 = sbr.rel (%p338) target = $region12
    $region11: #{evolving_gconv_forward.1} parent=5 // pred_region
      %s342 = ssub.s32 %s19, 1
      // Predicated region
      $region13: #{evolving_gconv_forward.1} parent=11 // pred_check
        %p343 = pneg %p92
      $region14: #{evolving_gconv_forward.1} parent=11 // pred_check_branch
        %345 = sbr.rel (%p343) target = $region16
      $region15: #{evolving_gconv_forward.1} parent=11 // pred_region
        _
      $region16: #{evolving_gconv_forward.1} parent=11 // pred_fallthru
        _
      // Predicated region
      $region17: #{evolving_gconv_forward.1} parent=11 // pred_check
        %p346 = pneg %p113
      $region18: #{evolving_gconv_forward.1} parent=11 // pred_check_branch
        %348 = sbr.rel (%p346) target = $region20
      $region19: #{evolving_gconv_forward.1} parent=11 // pred_region
        _
      $region20: #{evolving_gconv_forward.1} parent=11 // pred_fallthru
        _
      // Predicated region
      $region21: #{evolving_gconv_forward.1} parent=11 // pred_check
        %p349 = pneg %p134
      $region22: #{evolving_gconv_forward.1} parent=11 // pred_check_branch
        %351 = sbr.rel (%p349) target = $region24
      $region23: #{evolving_gconv_forward.1} parent=11 // pred_region
        _
      $region24: #{evolving_gconv_forward.1} parent=11 // pred_fallthru
        _
      // Predicated region
      $region25: #{evolving_gconv_forward.1} parent=11 // pred_check
        %p352 = pneg %p155
      $region26: #{evolving_gconv_forward.1} parent=11 // pred_check_branch
        %354 = sbr.rel (%p352) target = $region28
      $region27: #{evolving_gconv_forward.1} parent=11 // pred_region
        _
      $region28: #{evolving_gconv_forward.1} parent=11 // pred_fallthru
        _
      // Predicated region
      $region29: #{evolving_gconv_forward.1} parent=11 // pred_check
        %p355 = pneg %p176
      $region30: #{evolving_gconv_forward.1} parent=11 // pred_check_branch
        %357 = sbr.rel (%p355) target = $region32
      $region31: #{evolving_gconv_forward.1} parent=11 // pred_region
        _
      $region32: #{evolving_gconv_forward.1} parent=11 // pred_fallthru
        _
      // Predicated region
      $region33: #{evolving_gconv_forward.1} parent=11 // pred_check
        %p358 = pneg %p197
      $region34: #{evolving_gconv_forward.1} parent=11 // pred_check_branch
        %360 = sbr.rel (%p358) target = $region36
      $region35: #{evolving_gconv_forward.1} parent=11 // pred_region
        _
      $region36: #{evolving_gconv_forward.1} parent=11 // pred_fallthru
        _
      // Predicated region
      $region37: #{evolving_gconv_forward.1} parent=11 // pred_check
        %p361 = pneg %p218
      $region38: #{evolving_gconv_forward.1} parent=11 // pred_check_branch
        %363 = sbr.rel (%p361) target = $region40
      $region39: #{evolving_gconv_forward.1} parent=11 // pred_region
        _
      $region40: #{evolving_gconv_forward.1} parent=11 // pred_fallthru
        _
      // Predicated region
      $region41: #{evolving_gconv_forward.1} parent=11 // pred_check
        %p364 = pneg %p239
      $region42: #{evolving_gconv_forward.1} parent=11 // pred_check_branch
        %366 = sbr.rel (%p364) target = $region44
      $region43: #{evolving_gconv_forward.1} parent=11 // pred_region
        _
      $region44: #{evolving_gconv_forward.1} parent=11 // pred_fallthru
        _
      // Predicated region
      $region45: #{evolving_gconv_forward.1} parent=11 // pred_check
        %p367 = pneg %p260
      $region46: #{evolving_gconv_forward.1} parent=11 // pred_check_branch
        %369 = sbr.rel (%p367) target = $region48
      $region47: #{evolving_gconv_forward.1} parent=11 // pred_region
        _
      $region48: #{evolving_gconv_forward.1} parent=11 // pred_fallthru
        _
      // Predicated region
      $region49: #{evolving_gconv_forward.1} parent=11 // pred_check
        %p370 = pneg %p281
      $region50: #{evolving_gconv_forward.1} parent=11 // pred_check_branch
        %372 = sbr.rel (%p370) target = $region52
      $region51: #{evolving_gconv_forward.1} parent=11 // pred_region
        _
      $region52: #{evolving_gconv_forward.1} parent=11 // pred_fallthru
        _
      // Predicated region
      $region53: #{evolving_gconv_forward.1} parent=11 // pred_check
        %p373 = pneg %p302
      $region54: #{evolving_gconv_forward.1} parent=11 // pred_check_branch
        %375 = sbr.rel (%p373) target = $region56
      $region55: #{evolving_gconv_forward.1} parent=11 // pred_region
        _
      $region56: #{evolving_gconv_forward.1} parent=11 // pred_fallthru
        _
    $region12: #{evolving_gconv_forward.1} parent=5 // pred_fallthru
      _
    %p376 = scmp.lt.s32.totalorder %s19, 2
    // Predicated region
    $region57: #{evolving_gconv_forward.1} parent=5 // pred_check
      %p377 = pneg %p376
    $region58: #{evolving_gconv_forward.1} parent=5 // pred_check_branch
      %379 = sbr.rel (%p377) target = $region60
    $region59: #{evolving_gconv_forward.1} parent=5 // pred_region
      // Predicated region
      $region61: #{evolving_gconv_forward.1} parent=59 // pred_check
        %p380 = pneg %p39
      $region62: #{evolving_gconv_forward.1} parent=59 // pred_check_branch
        %382 = sbr.rel (%p380) target = $region64
      $region63: #{evolving_gconv_forward.1} parent=59 // pred_region
        %p383 = scmp.lt.s32.totalorder %s19, 1
        %s384 = scalar_select %p383, %s19, 1
        %s385 = smul.addr %s384, 4
        %s386 = smul.addr %s385, 8
        %s387 = scalar_lea.vmem %s0, %s386
      $region64: #{evolving_gconv_forward.1} parent=59 // pred_fallthru
        _
      // Predicated region
      $region65: #{evolving_gconv_forward.1} parent=59 // pred_check
        %p388 = pneg %p65
      $region66: #{evolving_gconv_forward.1} parent=59 // pred_check_branch
        %390 = sbr.rel (%p388) target = $region68
      $region67: #{evolving_gconv_forward.1} parent=59 // pred_region
        %p391 = scmp.lt.s32.totalorder %s19, 1
        %s392 = scalar_select %p391, %s19, 1
        %s393 = smul.addr %s392, 4
        %s394 = smul.addr %s393, 8
        %s395 = scalar_lea.vmem %s1, %s394
      $region68: #{evolving_gconv_forward.1} parent=59 // pred_fallthru
        _
    $region60: #{evolving_gconv_forward.1} parent=5 // pred_fallthru
      _
    %p396 = scmp.le.s32.totalorder 1, %s19
    %p397 = scmp.lt.s32.totalorder %s19, 3
    %p398 = pnand %p396, %p397
    %p399 = pneg %p398
    // Predicated region
    $region69: #{evolving_gconv_forward.1} parent=5 // pred_check
      _
    $region70: #{evolving_gconv_forward.1} parent=5 // pred_check_branch
      %401 = sbr.rel (%p398) target = $region72
    $region71: #{evolving_gconv_forward.1} parent=5 // pred_region
      %s402 = ssub.s32 %s19, 1
      %p403 = scmp.lt.s32.totalorder %s24, 1
      %s404 = scalar_select %p403, %s24, 1
      %s405 = smul.addr %s404, 4
      %s406 = smul.addr %s405, 8
      %s407 = scalar_lea.vmem %s0, %s406
      %p408 = pneg %p45
      %p409 = pneg %p42
      %p410 = scmp.lt.s32.totalorder %s24, 1
      %s411 = scalar_select %p410, %s24, 1
      %s412 = smul.addr %s411, 4
      %s413 = smul.addr %s412, 8
      %s414 = scalar_lea.vmem %s1, %s413
      %p415 = pneg %p71
      %p416 = pneg %p68
      %p417 = pneg %p92
      %p418 = pneg %p89
      %p419 = pneg %p113
      %p420 = pneg %p110
      %p421 = pneg %p134
      %p422 = pneg %p131
      %p423 = pneg %p155
      %p424 = pneg %p152
      %p425 = pneg %p176
      %p426 = pneg %p173
      %p427 = pneg %p197
      %p428 = pneg %p194
      %p429 = pneg %p218
      %p430 = pneg %p215
      %p431 = pneg %p239
      %p432 = pneg %p236
      %p433 = pneg %p260
      %p434 = pneg %p257
      %p435 = pneg %p281
      %p436 = pneg %p278
      %p437 = pneg %p302
      %p438 = pneg %p299
      %p439 = pneg %p328
      %p440 = pneg %p325
      %p441 = scmp.lt.s32.totalorder %s24, 1
      %s442 = scalar_select %p441, %s24, 1
      %s443 = smul.addr %s442, 2
      %s444 = smul.addr %s443, 8
      %s445 = scalar_lea.vmem %s13, %s444
      %p446 = scmp.lt.s32.totalorder %s24, 1
      %s447 = scalar_select %p446, %s24, 1
      %s448 = smul.addr %s447, 4
      %s449 = smul.addr %s448, 8
      %s450 = scalar_lea.vmem %s0, %s449
      %p451 = scmp.lt.s32.totalorder %s24, 1
      %s452 = scalar_select %p451, %s24, 1
      %s453 = smul.addr %s452, 4
      %s454 = smul.addr %s453, 8
      %s455 = scalar_lea.vmem %s1, %s454
      %p456 = scmp.lt.s32.totalorder %s24, 1
      %s457 = scalar_select %p456, %s24, 1
      %s458 = smul.addr %s457, 2
      %s459 = smul.addr %s458, 8
      %s460 = scalar_lea.vmem %s13, %s459
      %v461 = vld [vmem:[%s455] sm:$0xff]
      %v462 = vld [vmem:[%s455 + $0x8] sm:$0xff]
      %v463 = vld [vmem:[%s455 + $0x10] sm:$0xff]
      %v464 = vld [vmem:[%s455 + $0x18] sm:$0xff]
      %v465 = vld [vmem:[%s3] sm:$0xff]
      %v466 = vld [vmem:[%s5] sm:$0x1]
      %v468 = vlaneseq
      %v469 = vshrl.u32 %v468, 7
      %v470 = vsub.s32 0, %v469
      %v471 = vrot.slane %v466, %v470
      %vm473 = vcmask 64512
      %v475 = vsel %vm473, %v461, 0
      %v478 = vsel %vm473, %v462, 0
      %v481 = vsel %vm473, %v463, 0
      %v484 = vsel %vm473, %v464, 0
      %486 = vmatprep.subr.mxu0 0.0
      %487 = vmatpush1.msra.mxu0 %v465
      %488 = vmatprep.subr.mxu0 0.0
      %489 = vmatpush1.msra.mxu0 0.0
      %490 = vmatprep.subr.mxu0 0.0
      %491 = vmatpush1.msra.mxu0 0.0
      %492 = vmatprep.subr.mxu0 0.0
      %493 = vmatpush1.msra.mxu0 0.0
      %494 = vmatprep.subr.mxu0 0.0
      %495 = vmatpush1.msra.mxu0 0.0
      %496 = vmatprep.subr.mxu0 0.0
      %497 = vmatpush1.msra.mxu0 0.0
      %498 = vmatprep.subr.mxu0 0.0
      %499 = vmatpush1.msra.mxu0 0.0
      %500 = vmatprep.subr.mxu0 0.0
      %501 = vmatpush1.msra.mxu0 0.0
      %502 = vmatprep.subr.mxu0 0.0
      %503 = vmatpush1.msra.mxu0 0.0
      %504 = vmatprep.subr.mxu0 0.0
      %505 = vmatpush1.msra.mxu0 0.0
      %506 = vmatprep.subr.mxu0 0.0
      %507 = vmatpush1.msra.mxu0 0.0
      %508 = vmatprep.subr.mxu0 0.0
      %509 = vmatpush1.msra.mxu0 0.0
      %510 = vmatprep.subr.mxu0 0.0
      %511 = vmatpush1.msra.mxu0 0.0
      %512 = vmatprep.subr.mxu0 0.0
      %513 = vmatpush1.msra.mxu0 0.0
      %514 = vmatprep.subr.mxu0 0.0
      %515 = vmatpush1.msra.mxu0 0.0
      %516 = vmatprep.subr.mxu0 0.0
      %517 = vmatpush1.msra.mxu0 0.0
      %518 = vmatprep.subr.mxu0 0.0
      %519 = vmatpush1.msra.mxu0 0.0
      %520 = vmatprep.subr.mxu0 0.0
      %521 = vmatpush1.msra.mxu0 0.0
      %522 = vmatprep.subr.mxu0 0.0
      %523 = vmatpush1.msra.mxu0 0.0
      %524 = vmatprep.subr.mxu0 0.0
      %525 = vmatpush1.msra.mxu0 0.0
      %526 = vmatprep.subr.mxu0 0.0
      %527 = vmatpush1.msra.mxu0 0.0
      %528 = vmatprep.subr.mxu0 0.0
      %529 = vmatpush1.msra.mxu0 0.0
      %530 = vmatprep.subr.mxu0 0.0
      %531 = vmatpush1.msra.mxu0 0.0
      %532 = vmatprep.subr.mxu0 0.0
      %533 = vmatpush1.msra.mxu0 0.0
      %534 = vmatprep.subr.mxu0 0.0
      %535 = vmatpush1.msra.mxu0 0.0
      %536 = vmatprep.subr.mxu0 0.0
      %537 = vmatpush1.msra.mxu0 0.0
      %538 = vmatprep.subr.mxu0 0.0
      %539 = vmatpush1.msra.mxu0 0.0
      %540 = vmatprep.subr.mxu0 0.0
      %541 = vmatpush1.msra.mxu0 0.0
      %542 = vmatprep.subr.mxu0 0.0
      %543 = vmatpush1.msra.mxu0 0.0
      %544 = vmatprep.subr.mxu0 0.0
      %545 = vmatpush1.msra.mxu0 0.0
      %546 = vmatprep.subr.mxu0 0.0
      %547 = vmatpush1.msra.mxu0 0.0
      %548 = vmatprep.subr.mxu0 0.0
      %549 = vmatpush1.msra.mxu0 0.0
      %550 = vmatprep.mubr.f32.mxu0 0.0
      %551 = vmatmul.mubr.f32.gmra.mrb[0].mxu0 %v475
      %v552 = vpop.f32.mrb[0].mxu0
      %v553 = vadd.f32 %v471, %v552
      %v554 = vpop.f32.mrb[0].mxu0
      %555 = vmatprep.mubr.f32.mxu0 0.0
      %556 = vmatmul.mubr.f32.gmra.mrb[0].mxu0 %v478
      %v557 = vpop.f32.mrb[0].mxu0
      %v558 = vadd.f32 %v471, %v557
      %v559 = vpop.f32.mrb[0].mxu0
      %560 = vmatprep.mubr.f32.mxu0 0.0
      %561 = vmatmul.mubr.f32.gmra.mrb[0].mxu0 %v481
      %v562 = vpop.f32.mrb[0].mxu0
      %v563 = vadd.f32 %v471, %v562
      %v564 = vpop.f32.mrb[0].mxu0
      %565 = vmatprep.mubr.f32.mxu0 0.0
      %566 = vmatmul.mubr.f32.gmra.mrb[0].mxu0 %v484
      %v567 = vpop.f32.mrb[0].mxu0
      %v568 = vadd.f32 %v471, %v567
      %v569 = vpop.f32.mrb[0].mxu0
      %570 = vdwg.mxu0
      %s571 = scalar_lea.vmem %s3, 8
      %v572 = vld [vmem:[%s571] sm:$0xff]
      %s573 = scalar_lea.vmem %s5, 1
      %v574 = vld [vmem:[%s573] sm:$0x1]
      %v576 = vlaneseq
      %v577 = vshrl.u32 %v576, 7
      %v578 = vsub.s32 0, %v577
      %v579 = vrot.slane %v574, %v578
      %581 = vmatprep.subr.mxu0 0.0
      %582 = vmatpush1.msra.mxu0 %v572
      %583 = vmatprep.subr.mxu0 0.0
      %584 = vmatpush1.msra.mxu0 0.0
      %585 = vmatprep.subr.mxu0 0.0
      %586 = vmatpush1.msra.mxu0 0.0
      %587 = vmatprep.subr.mxu0 0.0
      %588 = vmatpush1.msra.mxu0 0.0
      %589 = vmatprep.subr.mxu0 0.0
      %590 = vmatpush1.msra.mxu0 0.0
      %591 = vmatprep.subr.mxu0 0.0
      %592 = vmatpush1.msra.mxu0 0.0
      %593 = vmatprep.subr.mxu0 0.0
      %594 = vmatpush1.msra.mxu0 0.0
      %595 = vmatprep.subr.mxu0 0.0
      %596 = vmatpush1.msra.mxu0 0.0
      %597 = vmatprep.subr.mxu0 0.0
      %598 = vmatpush1.msra.mxu0 0.0
      %599 = vmatprep.subr.mxu0 0.0
      %600 = vmatpush1.msra.mxu0 0.0
      %601 = vmatprep.subr.mxu0 0.0
      %602 = vmatpush1.msra.mxu0 0.0
      %603 = vmatprep.subr.mxu0 0.0
      %604 = vmatpush1.msra.mxu0 0.0
      %605 = vmatprep.subr.mxu0 0.0
      %606 = vmatpush1.msra.mxu0 0.0
      %607 = vmatprep.subr.mxu0 0.0
      %608 = vmatpush1.msra.mxu0 0.0
      %609 = vmatprep.subr.mxu0 0.0
      %610 = vmatpush1.msra.mxu0 0.0
      %611 = vmatprep.subr.mxu0 0.0
      %612 = vmatpush1.msra.mxu0 0.0
      %613 = vmatprep.subr.mxu0 0.0
      %614 = vmatpush1.msra.mxu0 0.0
      %615 = vmatprep.subr.mxu0 0.0
      %616 = vmatpush1.msra.mxu0 0.0
      %617 = vmatprep.subr.mxu0 0.0
      %618 = vmatpush1.msra.mxu0 0.0
      %619 = vmatprep.subr.mxu0 0.0
      %620 = vmatpush1.msra.mxu0 0.0
      %621 = vmatprep.subr.mxu0 0.0
      %622 = vmatpush1.msra.mxu0 0.0
      %623 = vmatprep.subr.mxu0 0.0
      %624 = vmatpush1.msra.mxu0 0.0
      %625 = vmatprep.subr.mxu0 0.0
      %626 = vmatpush1.msra.mxu0 0.0
      %627 = vmatprep.subr.mxu0 0.0
      %628 = vmatpush1.msra.mxu0 0.0
      %629 = vmatprep.subr.mxu0 0.0
      %630 = vmatpush1.msra.mxu0 0.0
      %631 = vmatprep.subr.mxu0 0.0
      %632 = vmatpush1.msra.mxu0 0.0
      %633 = vmatprep.subr.mxu0 0.0
      %634 = vmatpush1.msra.mxu0 0.0
      %635 = vmatprep.subr.mxu0 0.0
      %636 = vmatpush1.msra.mxu0 0.0
      %637 = vmatprep.subr.mxu0 0.0
      %638 = vmatpush1.msra.mxu0 0.0
      %639 = vmatprep.subr.mxu0 0.0
      %640 = vmatpush1.msra.mxu0 0.0
      %641 = vmatprep.subr.mxu0 0.0
      %642 = vmatpush1.msra.mxu0 0.0
      %643 = vmatprep.subr.mxu0 0.0
      %644 = vmatpush1.msra.mxu0 0.0
      %645 = vmatprep.mubr.f32.mxu0 0.0
      %646 = vmatmul.mubr.f32.gmra.mrb[0].mxu0 %v475
      %v647 = vpop.f32.mrb[0].mxu0
      %v648 = vadd.f32 %v579, %v647
      %v649 = vpop.f32.mrb[0].mxu0
      %650 = vmatprep.mubr.f32.mxu0 0.0
      %651 = vmatmul.mubr.f32.gmra.mrb[0].mxu0 %v478
      %v652 = vpop.f32.mrb[0].mxu0
      %v653 = vadd.f32 %v579, %v652
      %v654 = vpop.f32.mrb[0].mxu0
      %655 = vmatprep.mubr.f32.mxu0 0.0
      %656 = vmatmul.mubr.f32.gmra.mrb[0].mxu0 %v481
      %v657 = vpop.f32.mrb[0].mxu0
      %v658 = vadd.f32 %v579, %v657
      %v659 = vpop.f32.mrb[0].mxu0
      %660 = vmatprep.mubr.f32.mxu0 0.0
      %661 = vmatmul.mubr.f32.gmra.mrb[0].mxu0 %v484
      %v662 = vpop.f32.mrb[0].mxu0
      %v663 = vadd.f32 %v579, %v662
      %v664 = vpop.f32.mrb[0].mxu0
      %665 = vdwg.mxu0
      %s666 = scalar_lea.vmem %s3, 16
      %v667 = vld [vmem:[%s666] sm:$0xff]
      %s668 = scalar_lea.vmem %s5, 2
      %v669 = vld [vmem:[%s668] sm:$0x1]
      %v671 = vlaneseq
      %v672 = vshrl.u32 %v671, 7
      %v673 = vsub.s32 0, %v672
      %v674 = vrot.slane %v669, %v673
      %676 = vmatprep.subr.mxu0 0.0
      %677 = vmatpush1.msra.mxu0 %v667
      %678 = vmatprep.subr.mxu0 0.0
      %679 = vmatpush1.msra.mxu0 0.0
      %680 = vmatprep.subr.mxu0 0.0
      %681 = vmatpush1.msra.mxu0 0.0
      %682 = vmatprep.subr.mxu0 0.0
      %683 = vmatpush1.msra.mxu0 0.0
      %684 = vmatprep.subr.mxu0 0.0
      %685 = vmatpush1.msra.mxu0 0.0
      %686 = vmatprep.subr.mxu0 0.0
      %687 = vmatpush1.msra.mxu0 0.0
      %688 = vmatprep.subr.mxu0 0.0
      %689 = vmatpush1.msra.mxu0 0.0
      %690 = vmatprep.subr.mxu0 0.0
      %691 = vmatpush1.msra.mxu0 0.0
      %692 = vmatprep.subr.mxu0 0.0
      %693 = vmatpush1.msra.mxu0 0.0
      %694 = vmatprep.subr.mxu0 0.0
      %695 = vmatpush1.msra.mxu0 0.0
      %696 = vmatprep.subr.mxu0 0.0
      %697 = vmatpush1.msra.mxu0 0.0
      %698 = vmatprep.subr.mxu0 0.0
      %699 = vmatpush1.msra.mxu0 0.0
      %700 = vmatprep.subr.mxu0 0.0
      %701 = vmatpush1.msra.mxu0 0.0
      %702 = vmatprep.subr.mxu0 0.0
      %703 = vmatpush1.msra.mxu0 0.0
      %704 = vmatprep.subr.mxu0 0.0
      %705 = vmatpush1.msra.mxu0 0.0
      %706 = vmatprep.subr.mxu0 0.0
      %707 = vmatpush1.msra.mxu0 0.0
      %708 = vmatprep.subr.mxu0 0.0
      %709 = vmatpush1.msra.mxu0 0.0
      %710 = vmatprep.subr.mxu0 0.0
      %711 = vmatpush1.msra.mxu0 0.0
      %712 = vmatprep.subr.mxu0 0.0
      %713 = vmatpush1.msra.mxu0 0.0
      %714 = vmatprep.subr.mxu0 0.0
      %715 = vmatpush1.msra.mxu0 0.0
      %716 = vmatprep.subr.mxu0 0.0
      %717 = vmatpush1.msra.mxu0 0.0
      %718 = vmatprep.subr.mxu0 0.0
      %719 = vmatpush1.msra.mxu0 0.0
      %720 = vmatprep.subr.mxu0 0.0
      %721 = vmatpush1.msra.mxu0 0.0
      %722 = vmatprep.subr.mxu0 0.0
      %723 = vmatpush1.msra.mxu0 0.0
      %724 = vmatprep.subr.mxu0 0.0
      %725 = vmatpush1.msra.mxu0 0.0
      %726 = vmatprep.subr.mxu0 0.0
      %727 = vmatpush1.msra.mxu0 0.0
      %728 = vmatprep.subr.mxu0 0.0
      %729 = vmatpush1.msra.mxu0 0.0
      %730 = vmatprep.subr.mxu0 0.0
      %731 = vmatpush1.msra.mxu0 0.0
      %732 = vmatprep.subr.mxu0 0.0
      %733 = vmatpush1.msra.mxu0 0.0
      %734 = vmatprep.subr.mxu0 0.0
      %735 = vmatpush1.msra.mxu0 0.0
      %736 = vmatprep.subr.mxu0 0.0
      %737 = vmatpush1.msra.mxu0 0.0
      %738 = vmatprep.subr.mxu0 0.0
      %739 = vmatpush1.msra.mxu0 0.0
      %740 = vmatprep.mubr.f32.mxu0 0.0
      %741 = vmatmul.mubr.f32.gmra.mrb[0].mxu0 %v475
      %v742 = vpop.f32.mrb[0].mxu0
      %v743 = vadd.f32 %v674, %v742
      %v744 = vpop.f32.mrb[0].mxu0
      %745 = vmatprep.mubr.f32.mxu0 0.0
      %746 = vmatmul.mubr.f32.gmra.mrb[0].mxu0 %v478
      %v747 = vpop.f32.mrb[0].mxu0
      %v748 = vadd.f32 %v674, %v747
      %v749 = vpop.f32.mrb[0].mxu0
      %750 = vmatprep.mubr.f32.mxu0 0.0
      %751 = vmatmul.mubr.f32.gmra.mrb[0].mxu0 %v481
      %v752 = vpop.f32.mrb[0].mxu0
      %v753 = vadd.f32 %v674, %v752
      %v754 = vpop.f32.mrb[0].mxu0
      %755 = vmatprep.mubr.f32.mxu0 0.0
      %756 = vmatmul.mubr.f32.gmra.mrb[0].mxu0 %v484
      %v757 = vpop.f32.mrb[0].mxu0
      %v758 = vadd.f32 %v674, %v757
      %v759 = vpop.f32.mrb[0].mxu0
      %760 = vdwg.mxu0
      %v761 = vlaneseq
      %v762 = vshrl.u32 %v761, 7
      %v763 = vadd.s32 %v762, 8
      %v764 = vlaneseq
      %v765 = vand.u32 %v764, 127
      %vm766 = vcmp.eq.s32.totalorder %v762, %v765
      %vm767 = vcmp.eq.s32.totalorder %v763, %v765
      %v768 = vsel %vm766, 1, 0
      %v769 = vsel %vm767, 1, 0
      %v770 = vcvt.s32.f32 %v768
      %v771 = vcvt.s32.f32 %v769
      %v772 = vld [vmem:[%s2] sm:$0xff]
      %v773 = vld [vmem:[%s2 + $0x8] sm:$0xff]
      %v774 = vld [vmem:[%s4] sm:$0xff]
      %v775 = vld [vmem:[%s4 + $0x8] sm:$0xff]
      %v776 = vld [vmem:[%s6] sm:$0x1]
      %v778 = vlaneseq
      %v779 = vshrl.u32 %v778, 7
      %v780 = vsub.s32 0, %v779
      %v781 = vrot.slane %v776, %v780
      %vm783 = vcmask 130048
      %v785 = vsel %vm783, %v772, 0
      %v788 = vsel %vm783, %v773, 0
      %790 = vmatprep.subr.mxu0 0.0
      %791 = vmatpush1.msra.mxu0 %v774
      %792 = vmatprep.subr.mxu0 0.0
      %793 = vmatpush1.msra.mxu0 %v775
      %794 = vmatprep.subr.mxu0 0.0
      %795 = vmatpush1.msra.mxu0 0.0
      %796 = vmatprep.subr.mxu0 0.0
      %797 = vmatpush1.msra.mxu0 0.0
      %798 = vmatprep.subr.mxu0 0.0
      %799 = vmatpush1.msra.mxu0 0.0
      %800 = vmatprep.subr.mxu0 0.0
      %801 = vmatpush1.msra.mxu0 0.0
      %802 = vmatprep.subr.mxu0 0.0
      %803 = vmatpush1.msra.mxu0 0.0
      %804 = vmatprep.subr.mxu0 0.0
      %805 = vmatpush1.msra.mxu0 0.0
      %806 = vmatprep.subr.mxu0 0.0
      %807 = vmatpush1.msra.mxu0 0.0
      %808 = vmatprep.subr.mxu0 0.0
      %809 = vmatpush1.msra.mxu0 0.0
      %810 = vmatprep.subr.mxu0 0.0
      %811 = vmatpush1.msra.mxu0 0.0
      %812 = vmatprep.subr.mxu0 0.0
      %813 = vmatpush1.msra.mxu0 0.0
      %814 = vmatprep.subr.mxu0 0.0
      %815 = vmatpush1.msra.mxu0 0.0
      %816 = vmatprep.subr.mxu0 0.0
      %817 = vmatpush1.msra.mxu0 0.0
      %818 = vmatprep.subr.mxu0 0.0
      %819 = vmatpush1.msra.mxu0 0.0
      %820 = vmatprep.subr.mxu0 0.0
      %821 = vmatpush1.msra.mxu0 0.0
      %822 = vmatprep.subr.mxu0 0.0
      %823 = vmatpush1.msra.mxu0 0.0
      %824 = vmatprep.subr.mxu0 0.0
      %825 = vmatpush1.msra.mxu0 0.0
      %826 = vmatprep.subr.mxu0 0.0
      %827 = vmatpush1.msra.mxu0 0.0
      %828 = vmatprep.subr.mxu0 0.0
      %829 = vmatpush1.msra.mxu0 0.0
      %830 = vmatprep.subr.mxu0 0.0
      %831 = vmatpush1.msra.mxu0 0.0
      %832 = vmatprep.subr.mxu0 0.0
      %833 = vmatpush1.msra.mxu0 0.0
      %834 = vmatprep.subr.mxu0 0.0
      %835 = vmatpush1.msra.mxu0 0.0
      %836 = vmatprep.subr.mxu0 0.0
      %837 = vmatpush1.msra.mxu0 0.0
      %838 = vmatprep.subr.mxu0 0.0
      %839 = vmatpush1.msra.mxu0 0.0
      %840 = vmatprep.subr.mxu0 0.0
      %841 = vmatpush1.msra.mxu0 0.0
      %842 = vmatprep.subr.mxu0 0.0
      %843 = vmatpush1.msra.mxu0 0.0
      %844 = vmatprep.subr.mxu0 0.0
      %845 = vmatpush1.msra.mxu0 0.0
      %846 = vmatprep.subr.mxu0 0.0
      %847 = vmatpush1.msra.mxu0 0.0
      %848 = vmatprep.subr.mxu0 0.0
      %849 = vmatpush1.msra.mxu0 0.0
      %850 = vmatprep.subr.mxu0 0.0
      %851 = vmatpush1.msra.mxu0 0.0
      %852 = vmatprep.subr.mxu0 0.0
      %853 = vmatpush1.msra.mxu0 0.0
      %854 = vmatprep.mubr.f32.mxu0 0.0
      %855 = vmatmul.mubr.f32.gmra.mrb[0].mxu0 %v785
      %v856 = vpop.f32.mrb[0].mxu0
      %v857 = vadd.f32 %v781, %v856
      %v858 = vpop.f32.mrb[0].mxu0
      %859 = vmatprep.mubr.f32.mxu0 0.0
      %860 = vmatmul.mubr.f32.gmra.mrb[0].mxu0 %v788
      %v861 = vpop.f32.mrb[0].mxu0
      %v862 = vadd.f32 %v781, %v861
      %v863 = vpop.f32.mrb[0].mxu0
      %864 = vdwg.mxu0
      %s865 = scalar_lea.vmem %s4, 16
      %v866 = vld [vmem:[%s865] sm:$0xff]
      %v867 = vld [vmem:[%s865 + $0x8] sm:$0xff]
      %s868 = scalar_lea.vmem %s6, 1
      %v869 = vld [vmem:[%s868] sm:$0x1]
      %v871 = vlaneseq
      %v872 = vshrl.u32 %v871, 7
      %v873 = vsub.s32 0, %v872
      %v874 = vrot.slane %v869, %v873
      %876 = vmatprep.subr.mxu0 0.0
      %877 = vmatpush1.msra.mxu0 %v866
      %878 = vmatprep.subr.mxu0 0.0
      %879 = vmatpush1.msra.mxu0 %v867
      %880 = vmatprep.subr.mxu0 0.0
      %881 = vmatpush1.msra.mxu0 0.0
      %882 = vmatprep.subr.mxu0 0.0
      %883 = vmatpush1.msra.mxu0 0.0
      %884 = vmatprep.subr.mxu0 0.0
      %885 = vmatpush1.msra.mxu0 0.0
      %886 = vmatprep.subr.mxu0 0.0
      %887 = vmatpush1.msra.mxu0 0.0
      %888 = vmatprep.subr.mxu0 0.0
      %889 = vmatpush1.msra.mxu0 0.0
      %890 = vmatprep.subr.mxu0 0.0
      %891 = vmatpush1.msra.mxu0 0.0
      %892 = vmatprep.subr.mxu0 0.0
      %893 = vmatpush1.msra.mxu0 0.0
      %894 = vmatprep.subr.mxu0 0.0
      %895 = vmatpush1.msra.mxu0 0.0
      %896 = vmatprep.subr.mxu0 0.0
      %897 = vmatpush1.msra.mxu0 0.0
      %898 = vmatprep.subr.mxu0 0.0
      %899 = vmatpush1.msra.mxu0 0.0
      %900 = vmatprep.subr.mxu0 0.0
      %901 = vmatpush1.msra.mxu0 0.0
      %902 = vmatprep.subr.mxu0 0.0
      %903 = vmatpush1.msra.mxu0 0.0
      %904 = vmatprep.subr.mxu0 0.0
      %905 = vmatpush1.msra.mxu0 0.0
      %906 = vmatprep.subr.mxu0 0.0
      %907 = vmatpush1.msra.mxu0 0.0
      %908 = vmatprep.subr.mxu0 0.0
      %909 = vmatpush1.msra.mxu0 0.0
      %910 = vmatprep.subr.mxu0 0.0
      %911 = vmatpush1.msra.mxu0 0.0
      %912 = vmatprep.subr.mxu0 0.0
      %913 = vmatpush1.msra.mxu0 0.0
      %914 = vmatprep.subr.mxu0 0.0
      %915 = vmatpush1.msra.mxu0 0.0
      %916 = vmatprep.subr.mxu0 0.0
      %917 = vmatpush1.msra.mxu0 0.0
      %918 = vmatprep.subr.mxu0 0.0
      %919 = vmatpush1.msra.mxu0 0.0
      %920 = vmatprep.subr.mxu0 0.0
      %921 = vmatpush1.msra.mxu0 0.0
      %922 = vmatprep.subr.mxu0 0.0
      %923 = vmatpush1.msra.mxu0 0.0
      %924 = vmatprep.subr.mxu0 0.0
      %925 = vmatpush1.msra.mxu0 0.0
      %926 = vmatprep.subr.mxu0 0.0
      %927 = vmatpush1.msra.mxu0 0.0
      %928 = vmatprep.subr.mxu0 0.0
      %929 = vmatpush1.msra.mxu0 0.0
      %930 = vmatprep.subr.mxu0 0.0
      %931 = vmatpush1.msra.mxu0 0.0
      %932 = vmatprep.subr.mxu0 0.0
      %933 = vmatpush1.msra.mxu0 0.0
      %934 = vmatprep.subr.mxu0 0.0
      %935 = vmatpush1.msra.mxu0 0.0
      %936 = vmatprep.subr.mxu0 0.0
      %937 = vmatpush1.msra.mxu0 0.0
      %938 = vmatprep.subr.mxu0 0.0
      %939 = vmatpush1.msra.mxu0 0.0
      %940 = vmatprep.mubr.f32.mxu0 0.0
      %941 = vmatmul.mubr.f32.gmra.mrb[0].mxu0 %v785
      %v942 = vpop.f32.mrb[0].mxu0
      %v943 = vadd.f32 %v874, %v942
      %v944 = vpop.f32.mrb[0].mxu0
      %945 = vmatprep.mubr.f32.mxu0 0.0
      %946 = vmatmul.mubr.f32.gmra.mrb[0].mxu0 %v788
      %v947 = vpop.f32.mrb[0].mxu0
      %v948 = vadd.f32 %v874, %v947
      %v949 = vpop.f32.mrb[0].mxu0
      %950 = vdwg.mxu0
      %s951 = scalar_lea.vmem %s4, 32
      %v952 = vld [vmem:[%s951] sm:$0xff]
      %v953 = vld [vmem:[%s951 + $0x8] sm:$0xff]
      %s954 = scalar_lea.vmem %s6, 2
      %v955 = vld [vmem:[%s954] sm:$0x1]
      %v957 = vlaneseq
      %v958 = vshrl.u32 %v957, 7
      %v959 = vsub.s32 0, %v958
      %v960 = vrot.slane %v955, %v959
      %962 = vmatprep.subr.mxu0 0.0
      %963 = vmatpush1.msra.mxu0 %v952
      %964 = vmatprep.subr.mxu0 0.0
      %965 = vmatpush1.msra.mxu0 %v953
      %966 = vmatprep.subr.mxu0 0.0
      %967 = vmatpush1.msra.mxu0 0.0
      %968 = vmatprep.subr.mxu0 0.0
      %969 = vmatpush1.msra.mxu0 0.0
      %970 = vmatprep.subr.mxu0 0.0
      %971 = vmatpush1.msra.mxu0 0.0
      %972 = vmatprep.subr.mxu0 0.0
      %973 = vmatpush1.msra.mxu0 0.0
      %974 = vmatprep.subr.mxu0 0.0
      %975 = vmatpush1.msra.mxu0 0.0
      %976 = vmatprep.subr.mxu0 0.0
      %977 = vmatpush1.msra.mxu0 0.0
      %978 = vmatprep.subr.mxu0 0.0
      %979 = vmatpush1.msra.mxu0 0.0
      %980 = vmatprep.subr.mxu0 0.0
      %981 = vmatpush1.msra.mxu0 0.0
      %982 = vmatprep.subr.mxu0 0.0
      %983 = vmatpush1.msra.mxu0 0.0
      %984 = vmatprep.subr.mxu0 0.0
      %985 = vmatpush1.msra.mxu0 0.0
      %986 = vmatprep.subr.mxu0 0.0
      %987 = vmatpush1.msra.mxu0 0.0
      %988 = vmatprep.subr.mxu0 0.0
      %989 = vmatpush1.msra.mxu0 0.0
      %990 = vmatprep.subr.mxu0 0.0
      %991 = vmatpush1.msra.mxu0 0.0
      %992 = vmatprep.subr.mxu0 0.0
      %993 = vmatpush1.msra.mxu0 0.0
      %994 = vmatprep.subr.mxu0 0.0
      %995 = vmatpush1.msra.mxu0 0.0
      %996 = vmatprep.subr.mxu0 0.0
      %997 = vmatpush1.msra.mxu0 0.0
      %998 = vmatprep.subr.mxu0 0.0
      %999 = vmatpush1.msra.mxu0 0.0
      %1000 = vmatprep.subr.mxu0 0.0
      %1001 = vmatpush1.msra.mxu0 0.0
      %1002 = vmatprep.subr.mxu0 0.0
      %1003 = vmatpush1.msra.mxu0 0.0
      %1004 = vmatprep.subr.mxu0 0.0
      %1005 = vmatpush1.msra.mxu0 0.0
      %1006 = vmatprep.subr.mxu0 0.0
      %1007 = vmatpush1.msra.mxu0 0.0
      %1008 = vmatprep.subr.mxu0 0.0
      %1009 = vmatpush1.msra.mxu0 0.0
      %1010 = vmatprep.subr.mxu0 0.0
      %1011 = vmatpush1.msra.mxu0 0.0
      %1012 = vmatprep.subr.mxu0 0.0
      %1013 = vmatpush1.msra.mxu0 0.0
      %1014 = vmatprep.subr.mxu0 0.0
      %1015 = vmatpush1.msra.mxu0 0.0
      %1016 = vmatprep.subr.mxu0 0.0
      %1017 = vmatpush1.msra.mxu0 0.0
      %1018 = vmatprep.subr.mxu0 0.0
      %1019 = vmatpush1.msra.mxu0 0.0
      %1020 = vmatprep.subr.mxu0 0.0
      %1021 = vmatpush1.msra.mxu0 0.0
      %1022 = vmatprep.subr.mxu0 0.0
      %1023 = vmatpush1.msra.mxu0 0.0
      %1024 = vmatprep.subr.mxu0 0.0
      %1025 = vmatpush1.msra.mxu0 0.0
      %1026 = vmatprep.mubr.f32.mxu0 0.0
      %1027 = vmatmul.mubr.f32.gmra.mrb[0].mxu0 %v785
      %v1028 = vpop.f32.mrb[0].mxu0
      %v1029 = vadd.f32 %v960, %v1028
      %v1030 = vpop.f32.mrb[0].mxu0
      %1031 = vmatprep.mubr.f32.mxu0 0.0
      %1032 = vmatmul.mubr.f32.gmra.mrb[0].mxu0 %v788
      %v1033 = vpop.f32.mrb[0].mxu0
      %v1034 = vadd.f32 %v960, %v1033
      %v1035 = vpop.f32.mrb[0].mxu0
      %1036 = vdwg.mxu0
      %v1037 = vadd.f32 %v553, %v857
      %v1038 = vadd.f32 %v558, %v862
      %v1039 = vxor.u32 %v1037, 2147483648
      %v1040 = vxor.u32 %v1038, 2147483648
      %v1041 = vmul.f32 %v1039, 1.442695
      %v1042 = vpow.pop %v1041
      %v1043 = vmul.f32 %v1040, 1.442695
      %v1044 = vpow.pop %v1043
      %v1045 = vadd.f32 %v1042, 1.0
      %v1046 = vadd.f32 %v1044, 1.0
      %v1047 = vrcp.pop %v1045
      %v1048 = vmul.f32 1.0, %v1047
      %v1049 = vrcp.pop %v1046
      %v1050 = vmul.f32 1.0, %v1049
      %v1051 = vadd.f32 %v648, %v943
      %v1052 = vadd.f32 %v653, %v948
      %v1053 = vxor.u32 %v1051, 2147483648
      %v1054 = vxor.u32 %v1052, 2147483648
      %v1055 = vmul.f32 %v1053, 1.442695
      %v1056 = vpow.pop %v1055
      %v1057 = vmul.f32 %v1054, 1.442695
      %v1058 = vpow.pop %v1057
      %v1059 = vadd.f32 %v1056, 1.0
      %v1060 = vadd.f32 %v1058, 1.0
      %v1061 = vrcp.pop %v1059
      %v1062 = vmul.f32 1.0, %v1061
      %v1063 = vrcp.pop %v1060
      %v1064 = vmul.f32 1.0, %v1063
      %v1065 = vmul.f32 %v1048, %v1029
      %v1066 = vmul.f32 %v1050, %v1034
      %v1067 = vadd.f32 %v743, %v1065
      %v1068 = vadd.f32 %v748, %v1066
      %v1069 = vtanh.pop %v1067
      %v1070 = vtanh.pop %v1068
      %v1071 = vsub.f32 1.0, %v1062
      %v1072 = vsub.f32 1.0, %v1064
      %v1073 = vmul.f32 %v1071, %v1069
      %v1074 = vmul.f32 %v1072, %v1070
      %v1075 = vmul.f32 %v1062, %v772
      %v1076 = vmul.f32 %v1064, %v773
      %v1077 = vadd.f32 %v1073, %v1075
      %v1078 = vadd.f32 %v1074, %v1076
      %v1079 = vld [vmem:[%s7] sm:$0xff]
      %v1080 = vld [vmem:[%s7 + $0x8] sm:$0xff]
      %v1081 = vld [vmem:[%s8] sm:$0x1]
      %v1083 = vlaneseq
      %v1084 = vshrl.u32 %v1083, 7
      %v1085 = vsub.s32 0, %v1084
      %v1086 = vrot.slane %v1081, %v1085
      %v1089 = vsel %vm783, %v1077, 0
      %v1092 = vsel %vm783, %v1078, 0
      %1094 = vmatprep.subr.mxu0 0.0
      %1095 = vmatpush1.msra.mxu0 %v1079
      %1096 = vmatprep.subr.mxu0 0.0
      %1097 = vmatpush1.msra.mxu0 %v1080
      %1098 = vmatprep.subr.mxu0 0.0
      %1099 = vmatpush1.msra.mxu0 0.0
      %1100 = vmatprep.subr.mxu0 0.0
      %1101 = vmatpush1.msra.mxu0 0.0
      %1102 = vmatprep.subr.mxu0 0.0
      %1103 = vmatpush1.msra.mxu0 0.0
      %1104 = vmatprep.subr.mxu0 0.0
      %1105 = vmatpush1.msra.mxu0 0.0
      %1106 = vmatprep.subr.mxu0 0.0
      %1107 = vmatpush1.msra.mxu0 0.0
      %1108 = vmatprep.subr.mxu0 0.0
      %1109 = vmatpush1.msra.mxu0 0.0
      %1110 = vmatprep.subr.mxu0 0.0
      %1111 = vmatpush1.msra.mxu0 0.0
      %1112 = vmatprep.subr.mxu0 0.0
      %1113 = vmatpush1.msra.mxu0 0.0
      %1114 = vmatprep.subr.mxu0 0.0
      %1115 = vmatpush1.msra.mxu0 0.0
      %1116 = vmatprep.subr.mxu0 0.0
      %1117 = vmatpush1.msra.mxu0 0.0
      %1118 = vmatprep.subr.mxu0 0.0
      %1119 = vmatpush1.msra.mxu0 0.0
      %1120 = vmatprep.subr.mxu0 0.0
      %1121 = vmatpush1.msra.mxu0 0.0
      %1122 = vmatprep.subr.mxu0 0.0
      %1123 = vmatpush1.msra.mxu0 0.0
      %1124 = vmatprep.subr.mxu0 0.0
      %1125 = vmatpush1.msra.mxu0 0.0
      %1126 = vmatprep.subr.mxu0 0.0
      %1127 = vmatpush1.msra.mxu0 0.0
      %1128 = vmatprep.subr.mxu0 0.0
      %1129 = vmatpush1.msra.mxu0 0.0
      %1130 = vmatprep.subr.mxu0 0.0
      %1131 = vmatpush1.msra.mxu0 0.0
      %1132 = vmatprep.subr.mxu0 0.0
      %1133 = vmatpush1.msra.mxu0 0.0
      %1134 = vmatprep.subr.mxu0 0.0
      %1135 = vmatpush1.msra.mxu0 0.0
      %1136 = vmatprep.subr.mxu0 0.0
      %1137 = vmatpush1.msra.mxu0 0.0
      %1138 = vmatprep.subr.mxu0 0.0
      %1139 = vmatpush1.msra.mxu0 0.0
      %1140 = vmatprep.subr.mxu0 0.0
      %1141 = vmatpush1.msra.mxu0 0.0
      %1142 = vmatprep.subr.mxu0 0.0
      %1143 = vmatpush1.msra.mxu0 0.0
      %1144 = vmatprep.subr.mxu0 0.0
      %1145 = vmatpush1.msra.mxu0 0.0
      %1146 = vmatprep.subr.mxu0 0.0
      %1147 = vmatpush1.msra.mxu0 0.0
      %1148 = vmatprep.subr.mxu0 0.0
      %1149 = vmatpush1.msra.mxu0 0.0
      %1150 = vmatprep.subr.mxu0 0.0
      %1151 = vmatpush1.msra.mxu0 0.0
      %1152 = vmatprep.subr.mxu0 0.0
      %1153 = vmatpush1.msra.mxu0 0.0
      %1154 = vmatprep.subr.mxu0 0.0
      %1155 = vmatpush1.msra.mxu0 0.0
      %1156 = vmatprep.subr.mxu0 0.0
      %1157 = vmatpush1.msra.mxu0 0.0
      %1158 = vmatprep.mubr.f32.mxu0 0.0
      %1159 = vmatmul.mubr.f32.gmra.mrb[0].mxu0 %v1089
      %v1160 = vpop.f32.mrb[0].mxu0
      %v1161 = vadd.f32 %v1086, %v1160
      %v1162 = vpop.f32.mrb[0].mxu0
      %1163 = vmatprep.mubr.f32.mxu0 0.0
      %1164 = vmatmul.mubr.f32.gmra.mrb[0].mxu0 %v1092
      %v1165 = vpop.f32.mrb[0].mxu0
      %v1166 = vadd.f32 %v1086, %v1165
      %v1167 = vpop.f32.mrb[0].mxu0
      %1168 = vdwg.mxu0
      %v1169 = vtanh.pop %v1161
      %v1170 = vtanh.pop %v1166
      %v1171 = vld [vmem:[%s9] sm:$0xff]
      %v1172 = vld [vmem:[%s9 + $0x8] sm:$0xff]
      %v1173 = vld [vmem:[%s10] sm:$0x1]
      %v1175 = vlaneseq
      %v1176 = vshrl.u32 %v1175, 7
      %v1177 = vsub.s32 0, %v1176
      %v1178 = vrot.slane %v1173, %v1177
      %1180 = vmatprep.subr.mxu0 0.0
      %1181 = vmatpush1.msra.mxu0 %v1171
      %1182 = vmatprep.subr.mxu0 0.0
      %1183 = vmatpush1.msra.mxu0 %v1172
      %1184 = vmatprep.subr.mxu0 0.0
      %1185 = vmatpush1.msra.mxu0 0.0
      %1186 = vmatprep.subr.mxu0 0.0
      %1187 = vmatpush1.msra.mxu0 0.0
      %1188 = vmatprep.subr.mxu0 0.0
      %1189 = vmatpush1.msra.mxu0 0.0
      %1190 = vmatprep.subr.mxu0 0.0
      %1191 = vmatpush1.msra.mxu0 0.0
      %1192 = vmatprep.subr.mxu0 0.0
      %1193 = vmatpush1.msra.mxu0 0.0
      %1194 = vmatprep.subr.mxu0 0.0
      %1195 = vmatpush1.msra.mxu0 0.0
      %1196 = vmatprep.subr.mxu0 0.0
      %1197 = vmatpush1.msra.mxu0 0.0
      %1198 = vmatprep.subr.mxu0 0.0
      %1199 = vmatpush1.msra.mxu0 0.0
      %1200 = vmatprep.subr.mxu0 0.0
      %1201 = vmatpush1.msra.mxu0 0.0
      %1202 = vmatprep.subr.mxu0 0.0
      %1203 = vmatpush1.msra.mxu0 0.0
      %1204 = vmatprep.subr.mxu0 0.0
      %1205 = vmatpush1.msra.mxu0 0.0
      %1206 = vmatprep.subr.mxu0 0.0
      %1207 = vmatpush1.msra.mxu0 0.0
      %1208 = vmatprep.subr.mxu0 0.0
      %1209 = vmatpush1.msra.mxu0 0.0
      %1210 = vmatprep.subr.mxu0 0.0
      %1211 = vmatpush1.msra.mxu0 0.0
      %1212 = vmatprep.subr.mxu0 0.0
      %1213 = vmatpush1.msra.mxu0 0.0
      %1214 = vmatprep.subr.mxu0 0.0
      %1215 = vmatpush1.msra.mxu0 0.0
      %1216 = vmatprep.subr.mxu0 0.0
      %1217 = vmatpush1.msra.mxu0 0.0
      %1218 = vmatprep.subr.mxu0 0.0
      %1219 = vmatpush1.msra.mxu0 0.0
      %1220 = vmatprep.subr.mxu0 0.0
      %1221 = vmatpush1.msra.mxu0 0.0
      %1222 = vmatprep.subr.mxu0 0.0
      %1223 = vmatpush1.msra.mxu0 0.0
      %1224 = vmatprep.subr.mxu0 0.0
      %1225 = vmatpush1.msra.mxu0 0.0
      %1226 = vmatprep.subr.mxu0 0.0
      %1227 = vmatpush1.msra.mxu0 0.0
      %1228 = vmatprep.subr.mxu0 0.0
      %1229 = vmatpush1.msra.mxu0 0.0
      %1230 = vmatprep.subr.mxu0 0.0
      %1231 = vmatpush1.msra.mxu0 0.0
      %1232 = vmatprep.subr.mxu0 0.0
      %1233 = vmatpush1.msra.mxu0 0.0
      %1234 = vmatprep.subr.mxu0 0.0
      %1235 = vmatpush1.msra.mxu0 0.0
      %1236 = vmatprep.subr.mxu0 0.0
      %1237 = vmatpush1.msra.mxu0 0.0
      %1238 = vmatprep.subr.mxu0 0.0
      %1239 = vmatpush1.msra.mxu0 0.0
      %1240 = vmatprep.subr.mxu0 0.0
      %1241 = vmatpush1.msra.mxu0 0.0
      %1242 = vmatprep.subr.mxu0 0.0
      %1243 = vmatpush1.msra.mxu0 0.0
      %1244 = vmatprep.mubr.f32.mxu0 0.0
      %1245 = vmatmul.mubr.f32.gmra.mrb[0].mxu0 %v1089
      %v1246 = vpop.f32.mrb[0].mxu0
      %v1247 = vadd.f32 %v1178, %v1246
      %v1248 = vpop.f32.mrb[0].mxu0
      %1249 = vmatprep.mubr.f32.mxu0 0.0
      %1250 = vmatmul.mubr.f32.gmra.mrb[0].mxu0 %v1092
      %v1251 = vpop.f32.mrb[0].mxu0
      %v1252 = vadd.f32 %v1178, %v1251
      %v1253 = vpop.f32.mrb[0].mxu0
      %1254 = vdwg.mxu0
      %v1255 = vtanh.pop %v1247
      %v1256 = vtanh.pop %v1252
      %v1258 = vsel %vm783, %v1169, 0
      %v1261 = vsel %vm783, %v1170, 0
      %v1264 = vsel %vm783, %v1255, 0
      %v1267 = vsel %vm783, %v1256, 0
      %1269 = vmatprep.subr.mxu0 0.0
      %1270 = vmatpush1.xpose.msra.mxu0 %v1264
      %1271 = vmatprep.subr.mxu0 0.0
      %1272 = vmatpush1.xpose.msra.mxu0 %v1267
      %1273 = vmatprep.subr.mxu0 0.0
      %1274 = vmatpush1.xpose.msra.mxu0 0.0
      %1275 = vmatprep.subr.mxu0 0.0
      %1276 = vmatpush1.xpose.msra.mxu0 0.0
      %1277 = vmatprep.subr.mxu0 0.0
      %1278 = vmatpush1.xpose.msra.mxu0 0.0
      %1279 = vmatprep.subr.mxu0 0.0
      %1280 = vmatpush1.xpose.msra.mxu0 0.0
      %1281 = vmatprep.subr.mxu0 0.0
      %1282 = vmatpush1.xpose.msra.mxu0 0.0
      %1283 = vmatprep.subr.mxu0 0.0
      %1284 = vmatpush1.xpose.msra.mxu0 0.0
      %1285 = vmatprep.subr.mxu0 0.0
      %1286 = vmatpush1.xpose.msra.mxu0 0.0
      %1287 = vmatprep.subr.mxu0 0.0
      %1288 = vmatpush1.xpose.msra.mxu0 0.0
      %1289 = vmatprep.subr.mxu0 0.0
      %1290 = vmatpush1.xpose.msra.mxu0 0.0
      %1291 = vmatprep.subr.mxu0 0.0
      %1292 = vmatpush1.xpose.msra.mxu0 0.0
      %1293 = vmatprep.subr.mxu0 0.0
      %1294 = vmatpush1.xpose.msra.mxu0 0.0
      %1295 = vmatprep.subr.mxu0 0.0
      %1296 = vmatpush1.xpose.msra.mxu0 0.0
      %1297 = vmatprep.subr.mxu0 0.0
      %1298 = vmatpush1.xpose.msra.mxu0 0.0
      %1299 = vmatprep.subr.mxu0 0.0
      %1300 = vmatpush1.xpose.msra.mxu0 0.0
      %1301 = vmatprep.subr.mxu0 0.0
      %1302 = vmatpush1.xpose.msra.mxu0 0.0
      %1303 = vmatprep.subr.mxu0 0.0
      %1304 = vmatpush1.xpose.msra.mxu0 0.0
      %1305 = vmatprep.subr.mxu0 0.0
      %1306 = vmatpush1.xpose.msra.mxu0 0.0
      %1307 = vmatprep.subr.mxu0 0.0
      %1308 = vmatpush1.xpose.msra.mxu0 0.0
      %1309 = vmatprep.subr.mxu0 0.0
      %1310 = vmatpush1.xpose.msra.mxu0 0.0
      %1311 = vmatprep.subr.mxu0 0.0
      %1312 = vmatpush1.xpose.msra.mxu0 0.0
      %1313 = vmatprep.subr.mxu0 0.0
      %1314 = vmatpush1.xpose.msra.mxu0 0.0
      %1315 = vmatprep.subr.mxu0 0.0
      %1316 = vmatpush1.xpose.msra.mxu0 0.0
      %1317 = vmatprep.subr.mxu0 0.0
      %1318 = vmatpush1.xpose.msra.mxu0 0.0
      %1319 = vmatprep.subr.mxu0 0.0
      %1320 = vmatpush1.xpose.msra.mxu0 0.0
      %1321 = vmatprep.subr.mxu0 0.0
      %1322 = vmatpush1.xpose.msra.mxu0 0.0
      %1323 = vmatprep.subr.mxu0 0.0
      %1324 = vmatpush1.xpose.msra.mxu0 0.0
      %1325 = vmatprep.subr.mxu0 0.0
      %1326 = vmatpush1.xpose.msra.mxu0 0.0
      %1327 = vmatprep.subr.mxu0 0.0
      %1328 = vmatpush1.xpose.msra.mxu0 0.0
      %1329 = vmatprep.subr.mxu0 0.0
      %1330 = vmatpush1.xpose.msra.mxu0 0.0
      %1331 = vmatprep.subr.mxu0 0.0
      %1332 = vmatpush1.xpose.msra.mxu0 0.0
      %1333 = vmatprep.mubr.f32.mxu0 0.0
      %1334 = vmatmul.mubr.f32.gmra.mrb[0].mxu0 %v1258
      %v1335 = vpop.f32.mrb[0].mxu0
      %v1336 = vadd.f32 0.0, %v1335
      %v1337 = vpop.f32.mrb[0].mxu0
      %1338 = vmatprep.mubr.f32.mxu0 0.0
      %1339 = vmatmul.mubr.f32.gmra.mrb[0].mxu0 %v1261
      %v1340 = vpop.f32.mrb[0].mxu0
      %v1341 = vadd.f32 0.0, %v1340
      %v1342 = vpop.f32.mrb[0].mxu0
      %1343 = vdwg.mxu0
      %1344 = vmatprep.subr.mxu0 0.0
      %1345 = vmatpush1.xpose.msra.mxu0 %v1258
      %1346 = vmatprep.subr.mxu0 0.0
      %1347 = vmatpush1.xpose.msra.mxu0 %v1261
      %1348 = vmatprep.subr.mxu0 0.0
      %1349 = vmatpush1.xpose.msra.mxu0 0.0
      %1350 = vmatprep.subr.mxu0 0.0
      %1351 = vmatpush1.xpose.msra.mxu0 0.0
      %1352 = vmatprep.subr.mxu0 0.0
      %1353 = vmatpush1.xpose.msra.mxu0 0.0
      %1354 = vmatprep.subr.mxu0 0.0
      %1355 = vmatpush1.xpose.msra.mxu0 0.0
      %1356 = vmatprep.subr.mxu0 0.0
      %1357 = vmatpush1.xpose.msra.mxu0 0.0
      %1358 = vmatprep.subr.mxu0 0.0
      %1359 = vmatpush1.xpose.msra.mxu0 0.0
      %1360 = vmatprep.subr.mxu0 0.0
      %1361 = vmatpush1.xpose.msra.mxu0 0.0
      %1362 = vmatprep.subr.mxu0 0.0
      %1363 = vmatpush1.xpose.msra.mxu0 0.0
      %1364 = vmatprep.subr.mxu0 0.0
      %1365 = vmatpush1.xpose.msra.mxu0 0.0
      %1366 = vmatprep.subr.mxu0 0.0
      %1367 = vmatpush1.xpose.msra.mxu0 0.0
      %1368 = vmatprep.subr.mxu0 0.0
      %1369 = vmatpush1.xpose.msra.mxu0 0.0
      %1370 = vmatprep.subr.mxu0 0.0
      %1371 = vmatpush1.xpose.msra.mxu0 0.0
      %1372 = vmatprep.subr.mxu0 0.0
      %1373 = vmatpush1.xpose.msra.mxu0 0.0
      %1374 = vmatprep.subr.mxu0 0.0
      %1375 = vmatpush1.xpose.msra.mxu0 0.0
      %1376 = vmatprep.subr.mxu0 0.0
      %1377 = vmatpush1.xpose.msra.mxu0 0.0
      %1378 = vmatprep.subr.mxu0 0.0
      %1379 = vmatpush1.xpose.msra.mxu0 0.0
      %1380 = vmatprep.subr.mxu0 0.0
      %1381 = vmatpush1.xpose.msra.mxu0 0.0
      %1382 = vmatprep.subr.mxu0 0.0
      %1383 = vmatpush1.xpose.msra.mxu0 0.0
      %1384 = vmatprep.subr.mxu0 0.0
      %1385 = vmatpush1.xpose.msra.mxu0 0.0
      %1386 = vmatprep.subr.mxu0 0.0
      %1387 = vmatpush1.xpose.msra.mxu0 0.0
      %1388 = vmatprep.subr.mxu0 0.0
      %1389 = vmatpush1.xpose.msra.mxu0 0.0
      %1390 = vmatprep.subr.mxu0 0.0
      %1391 = vmatpush1.xpose.msra.mxu0 0.0
      %1392 = vmatprep.subr.mxu0 0.0
      %1393 = vmatpush1.xpose.msra.mxu0 0.0
      %1394 = vmatprep.subr.mxu0 0.0
      %1395 = vmatpush1.xpose.msra.mxu0 0.0
      %1396 = vmatprep.subr.mxu0 0.0
      %1397 = vmatpush1.xpose.msra.mxu0 0.0
      %1398 = vmatprep.subr.mxu0 0.0
      %1399 = vmatpush1.xpose.msra.mxu0 0.0
      %1400 = vmatprep.subr.mxu0 0.0
      %1401 = vmatpush1.xpose.msra.mxu0 0.0
      %1402 = vmatprep.subr.mxu0 0.0
      %1403 = vmatpush1.xpose.msra.mxu0 0.0
      %1404 = vmatprep.subr.mxu0 0.0
      %1405 = vmatpush1.xpose.msra.mxu0 0.0
      %1406 = vmatprep.subr.mxu0 0.0
      %1407 = vmatpush1.xpose.msra.mxu0 0.0
      %1408 = vmatprep.mubr.f32.mxu0 0.0
      %1409 = vmatmul.mubr.f32.gmra.mrb[0].mxu0 %v1264
      %v1410 = vpop.f32.mrb[0].mxu0
      %v1411 = vadd.f32 0.0, %v1410
      %v1412 = vpop.f32.mrb[0].mxu0
      %1413 = vmatprep.mubr.f32.mxu0 0.0
      %1414 = vmatmul.mubr.f32.gmra.mrb[0].mxu0 %v1267
      %v1415 = vpop.f32.mrb[0].mxu0
      %v1416 = vadd.f32 0.0, %v1415
      %v1417 = vpop.f32.mrb[0].mxu0
      %1418 = vdwg.mxu0
      %v1419 = vsub.f32 %v1336, %v1411
      %v1420 = vsub.f32 %v1341, %v1416
      %v1421 = vtanh.pop %v1419
      %v1422 = vtanh.pop %v1420
      %v1423 = vmax.f32 %v1421, 0.0
      %v1424 = vmax.f32 %v1422, 0.0
      %v1425 = vadd.f32 %v1423, %v770
      %v1426 = vadd.f32 %v1424, %v771
      %v1427 = vsel %vm783, %v1425, 0.0
      %1428 = vadd.xlane.f32.xlu0 %v1427
      %v1429 = vpop.xlane.xlu0 %1428
      %v1430 = vsel %vm783, %v1426, 0.0
      %1431 = vadd.xlane.f32.xlu0 %v1430
      %v1432 = vpop.xlane.xlu0 %1431
      %v1433 = vrcp.pop %v1429
      %v1434 = vrcp.pop %v1432
      %v1435 = vmul.f32 %v1425, %v1433
      %v1436 = vmul.f32 %v1426, %v1434
      %v1437 = vld [vmem:[%s450] sm:$0xff]
      %v1438 = vld [vmem:[%s450 + $0x8] sm:$0xff]
      %v1439 = vld [vmem:[%s11] sm:$0xff]
      %v1440 = vld [vmem:[%s11 + $0x8] sm:$0xff]
      %v1441 = vld [vmem:[%s11 + $0x10] sm:$0xff]
      %v1442 = vld [vmem:[%s11 + $0x18] sm:$0xff]
      %v1444 = vsel %vm783, %v1435, 0
      %v1447 = vsel %vm783, %v1436, 0
      %1449 = vmatprep.subr.mxu0 0.0
      %1450 = vmatpush1.msra.mxu0 %v1437
      %1451 = vmatprep.subr.mxu0 0.0
      %1452 = vmatpush1.msra.mxu0 %v1438
      %1453 = vmatprep.subr.mxu0 0.0
      %1454 = vmatpush1.msra.mxu0 0.0
      %1455 = vmatprep.subr.mxu0 0.0
      %1456 = vmatpush1.msra.mxu0 0.0
      %1457 = vmatprep.subr.mxu0 0.0
      %1458 = vmatpush1.msra.mxu0 0.0
      %1459 = vmatprep.subr.mxu0 0.0
      %1460 = vmatpush1.msra.mxu0 0.0
      %1461 = vmatprep.subr.mxu0 0.0
      %1462 = vmatpush1.msra.mxu0 0.0
      %1463 = vmatprep.subr.mxu0 0.0
      %1464 = vmatpush1.msra.mxu0 0.0
      %1465 = vmatprep.subr.mxu0 0.0
      %1466 = vmatpush1.msra.mxu0 0.0
      %1467 = vmatprep.subr.mxu0 0.0
      %1468 = vmatpush1.msra.mxu0 0.0
      %1469 = vmatprep.subr.mxu0 0.0
      %1470 = vmatpush1.msra.mxu0 0.0
      %1471 = vmatprep.subr.mxu0 0.0
      %1472 = vmatpush1.msra.mxu0 0.0
      %1473 = vmatprep.subr.mxu0 0.0
      %1474 = vmatpush1.msra.mxu0 0.0
      %1475 = vmatprep.subr.mxu0 0.0
      %1476 = vmatpush1.msra.mxu0 0.0
      %1477 = vmatprep.subr.mxu0 0.0
      %1478 = vmatpush1.msra.mxu0 0.0
      %1479 = vmatprep.subr.mxu0 0.0
      %1480 = vmatpush1.msra.mxu0 0.0
      %1481 = vmatprep.subr.mxu0 0.0
      %1482 = vmatpush1.msra.mxu0 0.0
      %1483 = vmatprep.subr.mxu0 0.0
      %1484 = vmatpush1.msra.mxu0 0.0
      %1485 = vmatprep.subr.mxu0 0.0
      %1486 = vmatpush1.msra.mxu0 0.0
      %1487 = vmatprep.subr.mxu0 0.0
      %1488 = vmatpush1.msra.mxu0 0.0
      %1489 = vmatprep.subr.mxu0 0.0
      %1490 = vmatpush1.msra.mxu0 0.0
      %1491 = vmatprep.subr.mxu0 0.0
      %1492 = vmatpush1.msra.mxu0 0.0
      %1493 = vmatprep.subr.mxu0 0.0
      %1494 = vmatpush1.msra.mxu0 0.0
      %1495 = vmatprep.subr.mxu0 0.0
      %1496 = vmatpush1.msra.mxu0 0.0
      %1497 = vmatprep.subr.mxu0 0.0
      %1498 = vmatpush1.msra.mxu0 0.0
      %1499 = vmatprep.subr.mxu0 0.0
      %1500 = vmatpush1.msra.mxu0 0.0
      %1501 = vmatprep.subr.mxu0 0.0
      %1502 = vmatpush1.msra.mxu0 0.0
      %1503 = vmatprep.subr.mxu0 0.0
      %1504 = vmatpush1.msra.mxu0 0.0
      %1505 = vmatprep.subr.mxu0 0.0
      %1506 = vmatpush1.msra.mxu0 0.0
      %1507 = vmatprep.subr.mxu0 0.0
      %1508 = vmatpush1.msra.mxu0 0.0
      %1509 = vmatprep.subr.mxu0 0.0
      %1510 = vmatpush1.msra.mxu0 0.0
      %1511 = vmatprep.subr.mxu0 0.0
      %1512 = vmatpush1.msra.mxu0 0.0
      %1513 = vmatprep.mubr.f32.mxu0 0.0
      %1514 = vmatmul.mubr.f32.gmra.mrb[0].mxu0 %v1444
      %v1515 = vpop.f32.mrb[0].mxu0
      %v1516 = vadd.f32 0.0, %v1515
      %v1517 = vpop.f32.mrb[0].mxu0
      %1518 = vmatprep.mubr.f32.mxu0 0.0
      %1519 = vmatmul.mubr.f32.gmra.mrb[0].mxu0 %v1447
      %v1520 = vpop.f32.mrb[0].mxu0
      %v1521 = vadd.f32 0.0, %v1520
      %v1522 = vpop.f32.mrb[0].mxu0
      %1523 = vdwg.mxu0
      %v1524 = vmul.f32 %v1437, 0.05
      %v1525 = vmul.f32 %v1438, 0.05
      %v1526 = vmul.f32 %v1516, 0.95
      %v1527 = vmul.f32 %v1521, 0.95
      %v1528 = vadd.f32 %v1524, %v1526
      %v1529 = vadd.f32 %v1525, %v1527
      %s1530 = scalar_lea.vmem %s11, 32
      %v1531 = vld [vmem:[%s1530] sm:$0xff]
      %v1532 = vld [vmem:[%s1530 + $0x8] sm:$0xff]
      %v1533 = vld [vmem:[%s1530 + $0x10] sm:$0xff]
      %v1534 = vld [vmem:[%s1530 + $0x18] sm:$0xff]
      %vm1535 = vcmask 261120
      %v1537 = vsel %vm1535, %v1528, 0
      %v1540 = vsel %vm1535, %v1529, 0
      %1542 = vmatprep.subr.mxu0 0.0
      %1543 = vmatpush1.msra.mxu0 %v1531
      %1544 = vmatprep.subr.mxu0 0.0
      %1545 = vmatpush1.msra.mxu0 %v1532
      %1546 = vmatprep.subr.mxu0 0.0
      %1547 = vmatpush1.msra.mxu0 %v1533
      %1548 = vmatprep.subr.mxu0 0.0
      %1549 = vmatpush1.msra.mxu0 %v1534
      %1550 = vmatprep.subr.mxu0 0.0
      %1551 = vmatpush1.msra.mxu0 0.0
      %1552 = vmatprep.subr.mxu0 0.0
      %1553 = vmatpush1.msra.mxu0 0.0
      %1554 = vmatprep.subr.mxu0 0.0
      %1555 = vmatpush1.msra.mxu0 0.0
      %1556 = vmatprep.subr.mxu0 0.0
      %1557 = vmatpush1.msra.mxu0 0.0
      %1558 = vmatprep.subr.mxu0 0.0
      %1559 = vmatpush1.msra.mxu0 0.0
      %1560 = vmatprep.subr.mxu0 0.0
      %1561 = vmatpush1.msra.mxu0 0.0
      %1562 = vmatprep.subr.mxu0 0.0
      %1563 = vmatpush1.msra.mxu0 0.0
      %1564 = vmatprep.subr.mxu0 0.0
      %1565 = vmatpush1.msra.mxu0 0.0
      %1566 = vmatprep.subr.mxu0 0.0
      %1567 = vmatpush1.msra.mxu0 0.0
      %1568 = vmatprep.subr.mxu0 0.0
      %1569 = vmatpush1.msra.mxu0 0.0
      %1570 = vmatprep.subr.mxu0 0.0
      %1571 = vmatpush1.msra.mxu0 0.0
      %1572 = vmatprep.subr.mxu0 0.0
      %1573 = vmatpush1.msra.mxu0 0.0
      %1574 = vmatprep.subr.mxu0 0.0
      %1575 = vmatpush1.msra.mxu0 0.0
      %1576 = vmatprep.subr.mxu0 0.0
      %1577 = vmatpush1.msra.mxu0 0.0
      %1578 = vmatprep.subr.mxu0 0.0
      %1579 = vmatpush1.msra.mxu0 0.0
      %1580 = vmatprep.subr.mxu0 0.0
      %1581 = vmatpush1.msra.mxu0 0.0
      %1582 = vmatprep.subr.mxu0 0.0
      %1583 = vmatpush1.msra.mxu0 0.0
      %1584 = vmatprep.subr.mxu0 0.0
      %1585 = vmatpush1.msra.mxu0 0.0
      %1586 = vmatprep.subr.mxu0 0.0
      %1587 = vmatpush1.msra.mxu0 0.0
      %1588 = vmatprep.subr.mxu0 0.0
      %1589 = vmatpush1.msra.mxu0 0.0
      %1590 = vmatprep.subr.mxu0 0.0
      %1591 = vmatpush1.msra.mxu0 0.0
      %1592 = vmatprep.subr.mxu0 0.0
      %1593 = vmatpush1.msra.mxu0 0.0
      %1594 = vmatprep.subr.mxu0 0.0
      %1595 = vmatpush1.msra.mxu0 0.0
      %1596 = vmatprep.subr.mxu0 0.0
      %1597 = vmatpush1.msra.mxu0 0.0
      %1598 = vmatprep.subr.mxu0 0.0
      %1599 = vmatpush1.msra.mxu0 0.0
      %1600 = vmatprep.subr.mxu0 0.0
      %1601 = vmatpush1.msra.mxu0 0.0
      %1602 = vmatprep.subr.mxu0 0.0
      %1603 = vmatpush1.msra.mxu0 0.0
      %1604 = vmatprep.subr.mxu0 0.0
      %1605 = vmatpush1.msra.mxu0 0.0
      %1606 = vmatprep.mubr.f32.mxu0 0.0
      %1607 = vmatmul.mubr.f32.gmra.mrb[0].mxu0 %v1537
      %v1608 = vpop.f32.mrb[0].mxu0
      %v1609 = vadd.f32 0.0, %v1608
      %v1610 = vpop.f32.mrb[0].mxu0
      %1611 = vmatprep.mubr.f32.mxu0 0.0
      %1612 = vmatmul.mubr.f32.gmra.mrb[0].mxu0 %v1540
      %v1613 = vpop.f32.mrb[0].mxu0
      %v1614 = vadd.f32 0.0, %v1613
      %v1615 = vpop.f32.mrb[0].mxu0
      %1616 = vdwg.mxu0
      %v1618 = vsel %vm1535, %v1437, 0
      %v1621 = vsel %vm1535, %v1438, 0
      %1623 = vmatprep.subr.mxu0 0.0
      %1624 = vmatpush1.msra.mxu0 %v1439
      %1625 = vmatprep.subr.mxu0 0.0
      %1626 = vmatpush1.msra.mxu0 %v1440
      %1627 = vmatprep.subr.mxu0 0.0
      %1628 = vmatpush1.msra.mxu0 %v1441
      %1629 = vmatprep.subr.mxu0 0.0
      %1630 = vmatpush1.msra.mxu0 %v1442
      %1631 = vmatprep.subr.mxu0 0.0
      %1632 = vmatpush1.msra.mxu0 0.0
      %1633 = vmatprep.subr.mxu0 0.0
      %1634 = vmatpush1.msra.mxu0 0.0
      %1635 = vmatprep.subr.mxu0 0.0
      %1636 = vmatpush1.msra.mxu0 0.0
      %1637 = vmatprep.subr.mxu0 0.0
      %1638 = vmatpush1.msra.mxu0 0.0
      %1639 = vmatprep.subr.mxu0 0.0
      %1640 = vmatpush1.msra.mxu0 0.0
      %1641 = vmatprep.subr.mxu0 0.0
      %1642 = vmatpush1.msra.mxu0 0.0
      %1643 = vmatprep.subr.mxu0 0.0
      %1644 = vmatpush1.msra.mxu0 0.0
      %1645 = vmatprep.subr.mxu0 0.0
      %1646 = vmatpush1.msra.mxu0 0.0
      %1647 = vmatprep.subr.mxu0 0.0
      %1648 = vmatpush1.msra.mxu0 0.0
      %1649 = vmatprep.subr.mxu0 0.0
      %1650 = vmatpush1.msra.mxu0 0.0
      %1651 = vmatprep.subr.mxu0 0.0
      %1652 = vmatpush1.msra.mxu0 0.0
      %1653 = vmatprep.subr.mxu0 0.0
      %1654 = vmatpush1.msra.mxu0 0.0
      %1655 = vmatprep.subr.mxu0 0.0
      %1656 = vmatpush1.msra.mxu0 0.0
      %1657 = vmatprep.subr.mxu0 0.0
      %1658 = vmatpush1.msra.mxu0 0.0
      %1659 = vmatprep.subr.mxu0 0.0
      %1660 = vmatpush1.msra.mxu0 0.0
      %1661 = vmatprep.subr.mxu0 0.0
      %1662 = vmatpush1.msra.mxu0 0.0
      %1663 = vmatprep.subr.mxu0 0.0
      %1664 = vmatpush1.msra.mxu0 0.0
      %1665 = vmatprep.subr.mxu0 0.0
      %1666 = vmatpush1.msra.mxu0 0.0
      %1667 = vmatprep.subr.mxu0 0.0
      %1668 = vmatpush1.msra.mxu0 0.0
      %1669 = vmatprep.subr.mxu0 0.0
      %1670 = vmatpush1.msra.mxu0 0.0
      %1671 = vmatprep.subr.mxu0 0.0
      %1672 = vmatpush1.msra.mxu0 0.0
      %1673 = vmatprep.subr.mxu0 0.0
      %1674 = vmatpush1.msra.mxu0 0.0
      %1675 = vmatprep.subr.mxu0 0.0
      %1676 = vmatpush1.msra.mxu0 0.0
      %1677 = vmatprep.subr.mxu0 0.0
      %1678 = vmatpush1.msra.mxu0 0.0
      %1679 = vmatprep.subr.mxu0 0.0
      %1680 = vmatpush1.msra.mxu0 0.0
      %1681 = vmatprep.subr.mxu0 0.0
      %1682 = vmatpush1.msra.mxu0 0.0
      %1683 = vmatprep.subr.mxu0 0.0
      %1684 = vmatpush1.msra.mxu0 0.0
      %1685 = vmatprep.subr.mxu0 0.0
      %1686 = vmatpush1.msra.mxu0 0.0
      %1687 = vmatprep.mubr.f32.mxu0 0.0
      %1688 = vmatmul.mubr.f32.gmra.mrb[0].mxu0 %v1618
      %v1689 = vpop.f32.mrb[0].mxu0
      %v1690 = vadd.f32 %v1609, %v1689
      %v1691 = vpop.f32.mrb[0].mxu0
      %1692 = vmatprep.mubr.f32.mxu0 0.0
      %1693 = vmatmul.mubr.f32.gmra.mrb[0].mxu0 %v1621
      %v1694 = vpop.f32.mrb[0].mxu0
      %v1695 = vadd.f32 %v1614, %v1694
      %v1696 = vpop.f32.mrb[0].mxu0
      %1697 = vdwg.mxu0
      %1698 = vmatprep.subr.mxu0 0.0
      %1699 = vmatpush1.msra.mxu0 %v1528
      %1700 = vmatprep.subr.mxu0 0.0
      %1701 = vmatpush1.msra.mxu0 %v1529
      %1702 = vmatprep.subr.mxu0 0.0
      %1703 = vmatpush1.msra.mxu0 0.0
      %1704 = vmatprep.subr.mxu0 0.0
      %1705 = vmatpush1.msra.mxu0 0.0
      %1706 = vmatprep.subr.mxu0 0.0
      %1707 = vmatpush1.msra.mxu0 0.0
      %1708 = vmatprep.subr.mxu0 0.0
      %1709 = vmatpush1.msra.mxu0 0.0
      %1710 = vmatprep.subr.mxu0 0.0
      %1711 = vmatpush1.msra.mxu0 0.0
      %1712 = vmatprep.subr.mxu0 0.0
      %1713 = vmatpush1.msra.mxu0 0.0
      %1714 = vmatprep.subr.mxu0 0.0
      %1715 = vmatpush1.msra.mxu0 0.0
      %1716 = vmatprep.subr.mxu0 0.0
      %1717 = vmatpush1.msra.mxu0 0.0
      %1718 = vmatprep.subr.mxu0 0.0
      %1719 = vmatpush1.msra.mxu0 0.0
      %1720 = vmatprep.subr.mxu0 0.0
      %1721 = vmatpush1.msra.mxu0 0.0
      %1722 = vmatprep.subr.mxu0 0.0
      %1723 = vmatpush1.msra.mxu0 0.0
      %1724 = vmatprep.subr.mxu0 0.0
      %1725 = vmatpush1.msra.mxu0 0.0
      %1726 = vmatprep.subr.mxu0 0.0
      %1727 = vmatpush1.msra.mxu0 0.0
      %1728 = vmatprep.subr.mxu0 0.0
      %1729 = vmatpush1.msra.mxu0 0.0
      %1730 = vmatprep.subr.mxu0 0.0
      %1731 = vmatpush1.msra.mxu0 0.0
      %1732 = vmatprep.subr.mxu0 0.0
      %1733 = vmatpush1.msra.mxu0 0.0
      %1734 = vmatprep.subr.mxu0 0.0
      %1735 = vmatpush1.msra.mxu0 0.0
      %1736 = vmatprep.subr.mxu0 0.0
      %1737 = vmatpush1.msra.mxu0 0.0
      %1738 = vmatprep.subr.mxu0 0.0
      %1739 = vmatpush1.msra.mxu0 0.0
      %1740 = vmatprep.subr.mxu0 0.0
      %1741 = vmatpush1.msra.mxu0 0.0
      %1742 = vmatprep.subr.mxu0 0.0
      %1743 = vmatpush1.msra.mxu0 0.0
      %1744 = vmatprep.subr.mxu0 0.0
      %1745 = vmatpush1.msra.mxu0 0.0
      %1746 = vmatprep.subr.mxu0 0.0
      %1747 = vmatpush1.msra.mxu0 0.0
      %1748 = vmatprep.subr.mxu0 0.0
      %1749 = vmatpush1.msra.mxu0 0.0
      %1750 = vmatprep.subr.mxu0 0.0
      %1751 = vmatpush1.msra.mxu0 0.0
      %1752 = vmatprep.subr.mxu0 0.0
      %1753 = vmatpush1.msra.mxu0 0.0
      %1754 = vmatprep.subr.mxu0 0.0
      %1755 = vmatpush1.msra.mxu0 0.0
      %1756 = vmatprep.subr.mxu0 0.0
      %1757 = vmatpush1.msra.mxu0 0.0
      %1758 = vmatprep.subr.mxu0 0.0
      %1759 = vmatpush1.msra.mxu0 0.0
      %1760 = vmatprep.subr.mxu0 0.0
      %1761 = vmatpush1.msra.mxu0 0.0
      %1762 = vmatprep.mubr.f32.mxu0 0.0
      %1763 = vmatmul.mubr.f32.gmra.mrb[0].mxu0 %v1444
      %v1764 = vpop.f32.mrb[0].mxu0
      %v1765 = vadd.f32 0.0, %v1764
      %v1766 = vpop.f32.mrb[0].mxu0
      %1767 = vmatprep.mubr.f32.mxu0 0.0
      %1768 = vmatmul.mubr.f32.gmra.mrb[0].mxu0 %v1447
      %v1769 = vpop.f32.mrb[0].mxu0
      %v1770 = vadd.f32 0.0, %v1769
      %v1771 = vpop.f32.mrb[0].mxu0
      %1772 = vdwg.mxu0
      %v1773 = vmul.f32 %v1765, 0.95
      %v1774 = vmul.f32 %v1770, 0.95
      %v1775 = vadd.f32 %v1524, %v1773
      %v1776 = vadd.f32 %v1525, %v1774
      %s1777 = scalar_lea.vmem %s11, 64
      %v1778 = vld [vmem:[%s1777] sm:$0xff]
      %v1779 = vld [vmem:[%s1777 + $0x8] sm:$0xff]
      %v1780 = vld [vmem:[%s1777 + $0x10] sm:$0xff]
      %v1781 = vld [vmem:[%s1777 + $0x18] sm:$0xff]
      %v1783 = vsel %vm1535, %v1775, 0
      %v1786 = vsel %vm1535, %v1776, 0
      %1788 = vmatprep.subr.mxu0 0.0
      %1789 = vmatpush1.msra.mxu0 %v1778
      %1790 = vmatprep.subr.mxu0 0.0
      %1791 = vmatpush1.msra.mxu0 %v1779
      %1792 = vmatprep.subr.mxu0 0.0
      %1793 = vmatpush1.msra.mxu0 %v1780
      %1794 = vmatprep.subr.mxu0 0.0
      %1795 = vmatpush1.msra.mxu0 %v1781
      %1796 = vmatprep.subr.mxu0 0.0
      %1797 = vmatpush1.msra.mxu0 0.0
      %1798 = vmatprep.subr.mxu0 0.0
      %1799 = vmatpush1.msra.mxu0 0.0
      %1800 = vmatprep.subr.mxu0 0.0
      %1801 = vmatpush1.msra.mxu0 0.0
      %1802 = vmatprep.subr.mxu0 0.0
      %1803 = vmatpush1.msra.mxu0 0.0
      %1804 = vmatprep.subr.mxu0 0.0
      %1805 = vmatpush1.msra.mxu0 0.0
      %1806 = vmatprep.subr.mxu0 0.0
      %1807 = vmatpush1.msra.mxu0 0.0
      %1808 = vmatprep.subr.mxu0 0.0
      %1809 = vmatpush1.msra.mxu0 0.0
      %1810 = vmatprep.subr.mxu0 0.0
      %1811 = vmatpush1.msra.mxu0 0.0
      %1812 = vmatprep.subr.mxu0 0.0
      %1813 = vmatpush1.msra.mxu0 0.0
      %1814 = vmatprep.subr.mxu0 0.0
      %1815 = vmatpush1.msra.mxu0 0.0
      %1816 = vmatprep.subr.mxu0 0.0
      %1817 = vmatpush1.msra.mxu0 0.0
      %1818 = vmatprep.subr.mxu0 0.0
      %1819 = vmatpush1.msra.mxu0 0.0
      %1820 = vmatprep.subr.mxu0 0.0
      %1821 = vmatpush1.msra.mxu0 0.0
      %1822 = vmatprep.subr.mxu0 0.0
      %1823 = vmatpush1.msra.mxu0 0.0
      %1824 = vmatprep.subr.mxu0 0.0
      %1825 = vmatpush1.msra.mxu0 0.0
      %1826 = vmatprep.subr.mxu0 0.0
      %1827 = vmatpush1.msra.mxu0 0.0
      %1828 = vmatprep.subr.mxu0 0.0
      %1829 = vmatpush1.msra.mxu0 0.0
      %1830 = vmatprep.subr.mxu0 0.0
      %1831 = vmatpush1.msra.mxu0 0.0
      %1832 = vmatprep.subr.mxu0 0.0
      %1833 = vmatpush1.msra.mxu0 0.0
      %1834 = vmatprep.subr.mxu0 0.0
      %1835 = vmatpush1.msra.mxu0 0.0
      %1836 = vmatprep.subr.mxu0 0.0
      %1837 = vmatpush1.msra.mxu0 0.0
      %1838 = vmatprep.subr.mxu0 0.0
      %1839 = vmatpush1.msra.mxu0 0.0
      %1840 = vmatprep.subr.mxu0 0.0
      %1841 = vmatpush1.msra.mxu0 0.0
      %1842 = vmatprep.subr.mxu0 0.0
      %1843 = vmatpush1.msra.mxu0 0.0
      %1844 = vmatprep.subr.mxu0 0.0
      %1845 = vmatpush1.msra.mxu0 0.0
      %1846 = vmatprep.subr.mxu0 0.0
      %1847 = vmatpush1.msra.mxu0 0.0
      %1848 = vmatprep.subr.mxu0 0.0
      %1849 = vmatpush1.msra.mxu0 0.0
      %1850 = vmatprep.subr.mxu0 0.0
      %1851 = vmatpush1.msra.mxu0 0.0
      %1852 = vmatprep.mubr.f32.mxu0 0.0
      %1853 = vmatmul.mubr.f32.gmra.mrb[0].mxu0 %v1783
      %v1854 = vpop.f32.mrb[0].mxu0
      %v1855 = vadd.f32 0.0, %v1854
      %v1856 = vpop.f32.mrb[0].mxu0
      %1857 = vmatprep.mubr.f32.mxu0 0.0
      %1858 = vmatmul.mubr.f32.gmra.mrb[0].mxu0 %v1786
      %v1859 = vpop.f32.mrb[0].mxu0
      %v1860 = vadd.f32 0.0, %v1859
      %v1861 = vpop.f32.mrb[0].mxu0
      %1862 = vdwg.mxu0
      %v1863 = vadd.f32 %v1690, %v1855
      %v1864 = vadd.f32 %v1695, %v1860
      %v1865 = vld [vmem:[%s12] sm:$0x1]
      %v1867 = vlaneseq
      %v1868 = vshrl.u32 %v1867, 7
      %v1869 = vsub.s32 0, %v1868
      %v1870 = vrot.slane %v1865, %v1869
      %v1872 = vadd.f32 %v1863, %v1870
      %v1873 = vadd.f32 %v1864, %v1870
      %1874 = vmatprep.subr.mxu0 0.0
      %1875 = vmatpush1.msra.mxu0 %v774
      %1876 = vmatprep.subr.mxu0 0.0
      %1877 = vmatpush1.msra.mxu0 %v775
      %1878 = vmatprep.subr.mxu0 0.0
      %1879 = vmatpush1.msra.mxu0 0.0
      %1880 = vmatprep.subr.mxu0 0.0
      %1881 = vmatpush1.msra.mxu0 0.0
      %1882 = vmatprep.subr.mxu0 0.0
      %1883 = vmatpush1.msra.mxu0 0.0
      %1884 = vmatprep.subr.mxu0 0.0
      %1885 = vmatpush1.msra.mxu0 0.0
      %1886 = vmatprep.subr.mxu0 0.0
      %1887 = vmatpush1.msra.mxu0 0.0
      %1888 = vmatprep.subr.mxu0 0.0
      %1889 = vmatpush1.msra.mxu0 0.0
      %1890 = vmatprep.subr.mxu0 0.0
      %1891 = vmatpush1.msra.mxu0 0.0
      %1892 = vmatprep.subr.mxu0 0.0
      %1893 = vmatpush1.msra.mxu0 0.0
      %1894 = vmatprep.subr.mxu0 0.0
      %1895 = vmatpush1.msra.mxu0 0.0
      %1896 = vmatprep.subr.mxu0 0.0
      %1897 = vmatpush1.msra.mxu0 0.0
      %1898 = vmatprep.subr.mxu0 0.0
      %1899 = vmatpush1.msra.mxu0 0.0
      %1900 = vmatprep.subr.mxu0 0.0
      %1901 = vmatpush1.msra.mxu0 0.0
      %1902 = vmatprep.subr.mxu0 0.0
      %1903 = vmatpush1.msra.mxu0 0.0
      %1904 = vmatprep.subr.mxu0 0.0
      %1905 = vmatpush1.msra.mxu0 0.0
      %1906 = vmatprep.subr.mxu0 0.0
      %1907 = vmatpush1.msra.mxu0 0.0
      %1908 = vmatprep.subr.mxu0 0.0
      %1909 = vmatpush1.msra.mxu0 0.0
      %1910 = vmatprep.subr.mxu0 0.0
      %1911 = vmatpush1.msra.mxu0 0.0
      %1912 = vmatprep.subr.mxu0 0.0
      %1913 = vmatpush1.msra.mxu0 0.0
      %1914 = vmatprep.subr.mxu0 0.0
      %1915 = vmatpush1.msra.mxu0 0.0
      %1916 = vmatprep.subr.mxu0 0.0
      %1917 = vmatpush1.msra.mxu0 0.0
      %1918 = vmatprep.subr.mxu0 0.0
      %1919 = vmatpush1.msra.mxu0 0.0
      %1920 = vmatprep.subr.mxu0 0.0
      %1921 = vmatpush1.msra.mxu0 0.0
      %1922 = vmatprep.subr.mxu0 0.0
      %1923 = vmatpush1.msra.mxu0 0.0
      %1924 = vmatprep.subr.mxu0 0.0
      %1925 = vmatpush1.msra.mxu0 0.0
      %1926 = vmatprep.subr.mxu0 0.0
      %1927 = vmatpush1.msra.mxu0 0.0
      %1928 = vmatprep.subr.mxu0 0.0
      %1929 = vmatpush1.msra.mxu0 0.0
      %1930 = vmatprep.subr.mxu0 0.0
      %1931 = vmatpush1.msra.mxu0 0.0
      %1932 = vmatprep.subr.mxu0 0.0
      %1933 = vmatpush1.msra.mxu0 0.0
      %1934 = vmatprep.subr.mxu0 0.0
      %1935 = vmatpush1.msra.mxu0 0.0
      %1936 = vmatprep.subr.mxu0 0.0
      %1937 = vmatpush1.msra.mxu0 0.0
      %1938 = vmatprep.mubr.f32.mxu0 0.0
      %1939 = vmatmul.mubr.f32.gmra.mrb[0].mxu0 %v1089
      %v1940 = vpop.f32.mrb[0].mxu0
      %v1941 = vadd.f32 %v781, %v1940
      %v1942 = vpop.f32.mrb[0].mxu0
      %1943 = vmatprep.mubr.f32.mxu0 0.0
      %1944 = vmatmul.mubr.f32.gmra.mrb[0].mxu0 %v1092
      %v1945 = vpop.f32.mrb[0].mxu0
      %v1946 = vadd.f32 %v781, %v1945
      %v1947 = vpop.f32.mrb[0].mxu0
      %1948 = vdwg.mxu0
      %1949 = vmatprep.subr.mxu0 0.0
      %1950 = vmatpush1.msra.mxu0 %v866
      %1951 = vmatprep.subr.mxu0 0.0
      %1952 = vmatpush1.msra.mxu0 %v867
      %1953 = vmatprep.subr.mxu0 0.0
      %1954 = vmatpush1.msra.mxu0 0.0
      %1955 = vmatprep.subr.mxu0 0.0
      %1956 = vmatpush1.msra.mxu0 0.0
      %1957 = vmatprep.subr.mxu0 0.0
      %1958 = vmatpush1.msra.mxu0 0.0
      %1959 = vmatprep.subr.mxu0 0.0
      %1960 = vmatpush1.msra.mxu0 0.0
      %1961 = vmatprep.subr.mxu0 0.0
      %1962 = vmatpush1.msra.mxu0 0.0
      %1963 = vmatprep.subr.mxu0 0.0
      %1964 = vmatpush1.msra.mxu0 0.0
      %1965 = vmatprep.subr.mxu0 0.0
      %1966 = vmatpush1.msra.mxu0 0.0
      %1967 = vmatprep.subr.mxu0 0.0
      %1968 = vmatpush1.msra.mxu0 0.0
      %1969 = vmatprep.subr.mxu0 0.0
      %1970 = vmatpush1.msra.mxu0 0.0
      %1971 = vmatprep.subr.mxu0 0.0
      %1972 = vmatpush1.msra.mxu0 0.0
      %1973 = vmatprep.subr.mxu0 0.0
      %1974 = vmatpush1.msra.mxu0 0.0
      %1975 = vmatprep.subr.mxu0 0.0
      %1976 = vmatpush1.msra.mxu0 0.0
      %1977 = vmatprep.subr.mxu0 0.0
      %1978 = vmatpush1.msra.mxu0 0.0
      %1979 = vmatprep.subr.mxu0 0.0
      %1980 = vmatpush1.msra.mxu0 0.0
      %1981 = vmatprep.subr.mxu0 0.0
      %1982 = vmatpush1.msra.mxu0 0.0
      %1983 = vmatprep.subr.mxu0 0.0
      %1984 = vmatpush1.msra.mxu0 0.0
      %1985 = vmatprep.subr.mxu0 0.0
      %1986 = vmatpush1.msra.mxu0 0.0
      %1987 = vmatprep.subr.mxu0 0.0
      %1988 = vmatpush1.msra.mxu0 0.0
      %1989 = vmatprep.subr.mxu0 0.0
      %1990 = vmatpush1.msra.mxu0 0.0
      %1991 = vmatprep.subr.mxu0 0.0
      %1992 = vmatpush1.msra.mxu0 0.0
      %1993 = vmatprep.subr.mxu0 0.0
      %1994 = vmatpush1.msra.mxu0 0.0
      %1995 = vmatprep.subr.mxu0 0.0
      %1996 = vmatpush1.msra.mxu0 0.0
      %1997 = vmatprep.subr.mxu0 0.0
      %1998 = vmatpush1.msra.mxu0 0.0
      %1999 = vmatprep.subr.mxu0 0.0
      %2000 = vmatpush1.msra.mxu0 0.0
      %2001 = vmatprep.subr.mxu0 0.0
      %2002 = vmatpush1.msra.mxu0 0.0
      %2003 = vmatprep.subr.mxu0 0.0
      %2004 = vmatpush1.msra.mxu0 0.0
      %2005 = vmatprep.subr.mxu0 0.0
      %2006 = vmatpush1.msra.mxu0 0.0
      %2007 = vmatprep.subr.mxu0 0.0
      %2008 = vmatpush1.msra.mxu0 0.0
      %2009 = vmatprep.subr.mxu0 0.0
      %2010 = vmatpush1.msra.mxu0 0.0
      %2011 = vmatprep.subr.mxu0 0.0
      %2012 = vmatpush1.msra.mxu0 0.0
      %2013 = vmatprep.mubr.f32.mxu0 0.0
      %2014 = vmatmul.mubr.f32.gmra.mrb[0].mxu0 %v1089
      %v2015 = vpop.f32.mrb[0].mxu0
      %v2016 = vadd.f32 %v874, %v2015
      %v2017 = vpop.f32.mrb[0].mxu0
      %2018 = vmatprep.mubr.f32.mxu0 0.0
      %2019 = vmatmul.mubr.f32.gmra.mrb[0].mxu0 %v1092
      %v2020 = vpop.f32.mrb[0].mxu0
      %v2021 = vadd.f32 %v874, %v2020
      %v2022 = vpop.f32.mrb[0].mxu0
      %2023 = vdwg.mxu0
      %2024 = vmatprep.subr.mxu0 0.0
      %2025 = vmatpush1.msra.mxu0 %v952
      %2026 = vmatprep.subr.mxu0 0.0
      %2027 = vmatpush1.msra.mxu0 %v953
      %2028 = vmatprep.subr.mxu0 0.0
      %2029 = vmatpush1.msra.mxu0 0.0
      %2030 = vmatprep.subr.mxu0 0.0
      %2031 = vmatpush1.msra.mxu0 0.0
      %2032 = vmatprep.subr.mxu0 0.0
      %2033 = vmatpush1.msra.mxu0 0.0
      %2034 = vmatprep.subr.mxu0 0.0
      %2035 = vmatpush1.msra.mxu0 0.0
      %2036 = vmatprep.subr.mxu0 0.0
      %2037 = vmatpush1.msra.mxu0 0.0
      %2038 = vmatprep.subr.mxu0 0.0
      %2039 = vmatpush1.msra.mxu0 0.0
      %2040 = vmatprep.subr.mxu0 0.0
      %2041 = vmatpush1.msra.mxu0 0.0
      %2042 = vmatprep.subr.mxu0 0.0
      %2043 = vmatpush1.msra.mxu0 0.0
      %2044 = vmatprep.subr.mxu0 0.0
      %2045 = vmatpush1.msra.mxu0 0.0
      %2046 = vmatprep.subr.mxu0 0.0
      %2047 = vmatpush1.msra.mxu0 0.0
      %2048 = vmatprep.subr.mxu0 0.0
      %2049 = vmatpush1.msra.mxu0 0.0
      %2050 = vmatprep.subr.mxu0 0.0
      %2051 = vmatpush1.msra.mxu0 0.0
      %2052 = vmatprep.subr.mxu0 0.0
      %2053 = vmatpush1.msra.mxu0 0.0
      %2054 = vmatprep.subr.mxu0 0.0
      %2055 = vmatpush1.msra.mxu0 0.0
      %2056 = vmatprep.subr.mxu0 0.0
      %2057 = vmatpush1.msra.mxu0 0.0
      %2058 = vmatprep.subr.mxu0 0.0
      %2059 = vmatpush1.msra.mxu0 0.0
      %2060 = vmatprep.subr.mxu0 0.0
      %2061 = vmatpush1.msra.mxu0 0.0
      %2062 = vmatprep.subr.mxu0 0.0
      %2063 = vmatpush1.msra.mxu0 0.0
      %2064 = vmatprep.subr.mxu0 0.0
      %2065 = vmatpush1.msra.mxu0 0.0
      %2066 = vmatprep.subr.mxu0 0.0
      %2067 = vmatpush1.msra.mxu0 0.0
      %2068 = vmatprep.subr.mxu0 0.0
      %2069 = vmatpush1.msra.mxu0 0.0
      %2070 = vmatprep.subr.mxu0 0.0
      %2071 = vmatpush1.msra.mxu0 0.0
      %2072 = vmatprep.subr.mxu0 0.0
      %2073 = vmatpush1.msra.mxu0 0.0
      %2074 = vmatprep.subr.mxu0 0.0
      %2075 = vmatpush1.msra.mxu0 0.0
      %2076 = vmatprep.subr.mxu0 0.0
      %2077 = vmatpush1.msra.mxu0 0.0
      %2078 = vmatprep.subr.mxu0 0.0
      %2079 = vmatpush1.msra.mxu0 0.0
      %2080 = vmatprep.subr.mxu0 0.0
      %2081 = vmatpush1.msra.mxu0 0.0
      %2082 = vmatprep.subr.mxu0 0.0
      %2083 = vmatpush1.msra.mxu0 0.0
      %2084 = vmatprep.subr.mxu0 0.0
      %2085 = vmatpush1.msra.mxu0 0.0
      %2086 = vmatprep.subr.mxu0 0.0
      %2087 = vmatpush1.msra.mxu0 0.0
      %2088 = vmatprep.mubr.f32.mxu0 0.0
      %2089 = vmatmul.mubr.f32.gmra.mrb[0].mxu0 %v1089
      %v2090 = vpop.f32.mrb[0].mxu0
      %v2091 = vadd.f32 %v960, %v2090
      %v2092 = vpop.f32.mrb[0].mxu0
      %2093 = vmatprep.mubr.f32.mxu0 0.0
      %2094 = vmatmul.mubr.f32.gmra.mrb[0].mxu0 %v1092
      %v2095 = vpop.f32.mrb[0].mxu0
      %v2096 = vadd.f32 %v960, %v2095
      %v2097 = vpop.f32.mrb[0].mxu0
      %2098 = vdwg.mxu0
      %v2099 = vadd.f32 %v563, %v1941
      %v2100 = vadd.f32 %v568, %v1946
      %v2101 = vxor.u32 %v2099, 2147483648
      %v2102 = vxor.u32 %v2100, 2147483648
      %v2103 = vmul.f32 %v2101, 1.442695
      %v2104 = vpow.pop %v2103
      %v2105 = vmul.f32 %v2102, 1.442695
      %v2106 = vpow.pop %v2105
      %v2107 = vadd.f32 %v2104, 1.0
      %v2108 = vadd.f32 %v2106, 1.0
      %v2109 = vrcp.pop %v2107
      %v2110 = vmul.f32 1.0, %v2109
      %v2111 = vrcp.pop %v2108
      %v2112 = vmul.f32 1.0, %v2111
      %v2113 = vadd.f32 %v658, %v2016
      %v2114 = vadd.f32 %v663, %v2021
      %v2115 = vxor.u32 %v2113, 2147483648
      %v2116 = vxor.u32 %v2114, 2147483648
      %v2117 = vmul.f32 %v2115, 1.442695
      %v2118 = vpow.pop %v2117
      %v2119 = vmul.f32 %v2116, 1.442695
      %v2120 = vpow.pop %v2119
      %v2121 = vadd.f32 %v2118, 1.0
      %v2122 = vadd.f32 %v2120, 1.0
      %v2123 = vrcp.pop %v2121
      %v2124 = vmul.f32 1.0, %v2123
      %v2125 = vrcp.pop %v2122
      %v2126 = vmul.f32 1.0, %v2125
      %v2127 = vmul.f32 %v2110, %v2091
      %v2128 = vmul.f32 %v2112, %v2096
      %v2129 = vadd.f32 %v753, %v2127
      %v2130 = vadd.f32 %v758, %v2128
      %v2131 = vtanh.pop %v2129
      %v2132 = vtanh.pop %v2130
      %v2133 = vsub.f32 1.0, %v2124
      %v2134 = vsub.f32 1.0, %v2126
      %v2135 = vmul.f32 %v2133, %v2131
      %v2136 = vmul.f32 %v2134, %v2132
      %v2137 = vmul.f32 %v2124, %v1077
      %v2138 = vmul.f32 %v2126, %v1078
      %v2139 = vadd.f32 %v2135, %v2137
      %v2140 = vadd.f32 %v2136, %v2138
      %v2142 = vsel %vm783, %v2139, 0
      %v2145 = vsel %vm783, %v2140, 0
      %2147 = vmatprep.subr.mxu0 0.0
      %2148 = vmatpush1.msra.mxu0 %v1079
      %2149 = vmatprep.subr.mxu0 0.0
      %2150 = vmatpush1.msra.mxu0 %v1080
      %2151 = vmatprep.subr.mxu0 0.0
      %2152 = vmatpush1.msra.mxu0 0.0
      %2153 = vmatprep.subr.mxu0 0.0
      %2154 = vmatpush1.msra.mxu0 0.0
      %2155 = vmatprep.subr.mxu0 0.0
      %2156 = vmatpush1.msra.mxu0 0.0
      %2157 = vmatprep.subr.mxu0 0.0
      %2158 = vmatpush1.msra.mxu0 0.0
      %2159 = vmatprep.subr.mxu0 0.0
      %2160 = vmatpush1.msra.mxu0 0.0
      %2161 = vmatprep.subr.mxu0 0.0
      %2162 = vmatpush1.msra.mxu0 0.0
      %2163 = vmatprep.subr.mxu0 0.0
      %2164 = vmatpush1.msra.mxu0 0.0
      %2165 = vmatprep.subr.mxu0 0.0
      %2166 = vmatpush1.msra.mxu0 0.0
      %2167 = vmatprep.subr.mxu0 0.0
      %2168 = vmatpush1.msra.mxu0 0.0
      %2169 = vmatprep.subr.mxu0 0.0
      %2170 = vmatpush1.msra.mxu0 0.0
      %2171 = vmatprep.subr.mxu0 0.0
      %2172 = vmatpush1.msra.mxu0 0.0
      %2173 = vmatprep.subr.mxu0 0.0
      %2174 = vmatpush1.msra.mxu0 0.0
      %2175 = vmatprep.subr.mxu0 0.0
      %2176 = vmatpush1.msra.mxu0 0.0
      %2177 = vmatprep.subr.mxu0 0.0
      %2178 = vmatpush1.msra.mxu0 0.0
      %2179 = vmatprep.subr.mxu0 0.0
      %2180 = vmatpush1.msra.mxu0 0.0
      %2181 = vmatprep.subr.mxu0 0.0
      %2182 = vmatpush1.msra.mxu0 0.0
      %2183 = vmatprep.subr.mxu0 0.0
      %2184 = vmatpush1.msra.mxu0 0.0
      %2185 = vmatprep.subr.mxu0 0.0
      %2186 = vmatpush1.msra.mxu0 0.0
      %2187 = vmatprep.subr.mxu0 0.0
      %2188 = vmatpush1.msra.mxu0 0.0
      %2189 = vmatprep.subr.mxu0 0.0
      %2190 = vmatpush1.msra.mxu0 0.0
      %2191 = vmatprep.subr.mxu0 0.0
      %2192 = vmatpush1.msra.mxu0 0.0
      %2193 = vmatprep.subr.mxu0 0.0
      %2194 = vmatpush1.msra.mxu0 0.0
      %2195 = vmatprep.subr.mxu0 0.0
      %2196 = vmatpush1.msra.mxu0 0.0
      %2197 = vmatprep.subr.mxu0 0.0
      %2198 = vmatpush1.msra.mxu0 0.0
      %2199 = vmatprep.subr.mxu0 0.0
      %2200 = vmatpush1.msra.mxu0 0.0
      %2201 = vmatprep.subr.mxu0 0.0
      %2202 = vmatpush1.msra.mxu0 0.0
      %2203 = vmatprep.subr.mxu0 0.0
      %2204 = vmatpush1.msra.mxu0 0.0
      %2205 = vmatprep.subr.mxu0 0.0
      %2206 = vmatpush1.msra.mxu0 0.0
      %2207 = vmatprep.subr.mxu0 0.0
      %2208 = vmatpush1.msra.mxu0 0.0
      %2209 = vmatprep.subr.mxu0 0.0
      %2210 = vmatpush1.msra.mxu0 0.0
      %2211 = vmatprep.mubr.f32.mxu0 0.0
      %2212 = vmatmul.mubr.f32.gmra.mrb[0].mxu0 %v2142
      %v2213 = vpop.f32.mrb[0].mxu0
      %v2214 = vadd.f32 %v1086, %v2213
      %v2215 = vpop.f32.mrb[0].mxu0
      %2216 = vmatprep.mubr.f32.mxu0 0.0
      %2217 = vmatmul.mubr.f32.gmra.mrb[0].mxu0 %v2145
      %v2218 = vpop.f32.mrb[0].mxu0
      %v2219 = vadd.f32 %v1086, %v2218
      %v2220 = vpop.f32.mrb[0].mxu0
      %2221 = vdwg.mxu0
      %v2222 = vtanh.pop %v2214
      %v2223 = vtanh.pop %v2219
      %2224 = vmatprep.subr.mxu0 0.0
      %2225 = vmatpush1.msra.mxu0 %v1171
      %2226 = vmatprep.subr.mxu0 0.0
      %2227 = vmatpush1.msra.mxu0 %v1172
      %2228 = vmatprep.subr.mxu0 0.0
      %2229 = vmatpush1.msra.mxu0 0.0
      %2230 = vmatprep.subr.mxu0 0.0
      %2231 = vmatpush1.msra.mxu0 0.0
      %2232 = vmatprep.subr.mxu0 0.0
      %2233 = vmatpush1.msra.mxu0 0.0
      %2234 = vmatprep.subr.mxu0 0.0
      %2235 = vmatpush1.msra.mxu0 0.0
      %2236 = vmatprep.subr.mxu0 0.0
      %2237 = vmatpush1.msra.mxu0 0.0
      %2238 = vmatprep.subr.mxu0 0.0
      %2239 = vmatpush1.msra.mxu0 0.0
      %2240 = vmatprep.subr.mxu0 0.0
      %2241 = vmatpush1.msra.mxu0 0.0
      %2242 = vmatprep.subr.mxu0 0.0
      %2243 = vmatpush1.msra.mxu0 0.0
      %2244 = vmatprep.subr.mxu0 0.0
      %2245 = vmatpush1.msra.mxu0 0.0
      %2246 = vmatprep.subr.mxu0 0.0
      %2247 = vmatpush1.msra.mxu0 0.0
      %2248 = vmatprep.subr.mxu0 0.0
      %2249 = vmatpush1.msra.mxu0 0.0
      %2250 = vmatprep.subr.mxu0 0.0
      %2251 = vmatpush1.msra.mxu0 0.0
      %2252 = vmatprep.subr.mxu0 0.0
      %2253 = vmatpush1.msra.mxu0 0.0
      %2254 = vmatprep.subr.mxu0 0.0
      %2255 = vmatpush1.msra.mxu0 0.0
      %2256 = vmatprep.subr.mxu0 0.0
      %2257 = vmatpush1.msra.mxu0 0.0
      %2258 = vmatprep.subr.mxu0 0.0
      %2259 = vmatpush1.msra.mxu0 0.0
      %2260 = vmatprep.subr.mxu0 0.0
      %2261 = vmatpush1.msra.mxu0 0.0
      %2262 = vmatprep.subr.mxu0 0.0
      %2263 = vmatpush1.msra.mxu0 0.0
      %2264 = vmatprep.subr.mxu0 0.0
      %2265 = vmatpush1.msra.mxu0 0.0
      %2266 = vmatprep.subr.mxu0 0.0
      %2267 = vmatpush1.msra.mxu0 0.0
      %2268 = vmatprep.subr.mxu0 0.0
      %2269 = vmatpush1.msra.mxu0 0.0
      %2270 = vmatprep.subr.mxu0 0.0
      %2271 = vmatpush1.msra.mxu0 0.0
      %2272 = vmatprep.subr.mxu0 0.0
      %2273 = vmatpush1.msra.mxu0 0.0
      %2274 = vmatprep.subr.mxu0 0.0
      %2275 = vmatpush1.msra.mxu0 0.0
      %2276 = vmatprep.subr.mxu0 0.0
      %2277 = vmatpush1.msra.mxu0 0.0
      %2278 = vmatprep.subr.mxu0 0.0
      %2279 = vmatpush1.msra.mxu0 0.0
      %2280 = vmatprep.subr.mxu0 0.0
      %2281 = vmatpush1.msra.mxu0 0.0
      %2282 = vmatprep.subr.mxu0 0.0
      %2283 = vmatpush1.msra.mxu0 0.0
      %2284 = vmatprep.subr.mxu0 0.0
      %2285 = vmatpush1.msra.mxu0 0.0
      %2286 = vmatprep.subr.mxu0 0.0
      %2287 = vmatpush1.msra.mxu0 0.0
      %2288 = vmatprep.mubr.f32.mxu0 0.0
      %2289 = vmatmul.mubr.f32.gmra.mrb[0].mxu0 %v2142
      %v2290 = vpop.f32.mrb[0].mxu0
      %v2291 = vadd.f32 %v1178, %v2290
      %v2292 = vpop.f32.mrb[0].mxu0
      %2293 = vmatprep.mubr.f32.mxu0 0.0
      %2294 = vmatmul.mubr.f32.gmra.mrb[0].mxu0 %v2145
      %v2295 = vpop.f32.mrb[0].mxu0
      %v2296 = vadd.f32 %v1178, %v2295
      %v2297 = vpop.f32.mrb[0].mxu0
      %2298 = vdwg.mxu0
      %v2299 = vtanh.pop %v2291
      %v2300 = vtanh.pop %v2296
      %v2302 = vsel %vm783, %v2222, 0
      %v2305 = vsel %vm783, %v2223, 0
      %v2308 = vsel %vm783, %v2299, 0
      %v2311 = vsel %vm783, %v2300, 0
      %2313 = vmatprep.subr.mxu0 0.0
      %2314 = vmatpush1.xpose.msra.mxu0 %v2308
      %2315 = vmatprep.subr.mxu0 0.0
      %2316 = vmatpush1.xpose.msra.mxu0 %v2311
      %2317 = vmatprep.subr.mxu0 0.0
      %2318 = vmatpush1.xpose.msra.mxu0 0.0
      %2319 = vmatprep.subr.mxu0 0.0
      %2320 = vmatpush1.xpose.msra.mxu0 0.0
      %2321 = vmatprep.subr.mxu0 0.0
      %2322 = vmatpush1.xpose.msra.mxu0 0.0
      %2323 = vmatprep.subr.mxu0 0.0
      %2324 = vmatpush1.xpose.msra.mxu0 0.0
      %2325 = vmatprep.subr.mxu0 0.0
      %2326 = vmatpush1.xpose.msra.mxu0 0.0
      %2327 = vmatprep.subr.mxu0 0.0
      %2328 = vmatpush1.xpose.msra.mxu0 0.0
      %2329 = vmatprep.subr.mxu0 0.0
      %2330 = vmatpush1.xpose.msra.mxu0 0.0
      %2331 = vmatprep.subr.mxu0 0.0
      %2332 = vmatpush1.xpose.msra.mxu0 0.0
      %2333 = vmatprep.subr.mxu0 0.0
      %2334 = vmatpush1.xpose.msra.mxu0 0.0
      %2335 = vmatprep.subr.mxu0 0.0
      %2336 = vmatpush1.xpose.msra.mxu0 0.0
      %2337 = vmatprep.subr.mxu0 0.0
      %2338 = vmatpush1.xpose.msra.mxu0 0.0
      %2339 = vmatprep.subr.mxu0 0.0
      %2340 = vmatpush1.xpose.msra.mxu0 0.0
      %2341 = vmatprep.subr.mxu0 0.0
      %2342 = vmatpush1.xpose.msra.mxu0 0.0
      %2343 = vmatprep.subr.mxu0 0.0
      %2344 = vmatpush1.xpose.msra.mxu0 0.0
      %2345 = vmatprep.subr.mxu0 0.0
      %2346 = vmatpush1.xpose.msra.mxu0 0.0
      %2347 = vmatprep.subr.mxu0 0.0
      %2348 = vmatpush1.xpose.msra.mxu0 0.0
      %2349 = vmatprep.subr.mxu0 0.0
      %2350 = vmatpush1.xpose.msra.mxu0 0.0
      %2351 = vmatprep.subr.mxu0 0.0
      %2352 = vmatpush1.xpose.msra.mxu0 0.0
      %2353 = vmatprep.subr.mxu0 0.0
      %2354 = vmatpush1.xpose.msra.mxu0 0.0
      %2355 = vmatprep.subr.mxu0 0.0
      %2356 = vmatpush1.xpose.msra.mxu0 0.0
      %2357 = vmatprep.subr.mxu0 0.0
      %2358 = vmatpush1.xpose.msra.mxu0 0.0
      %2359 = vmatprep.subr.mxu0 0.0
      %2360 = vmatpush1.xpose.msra.mxu0 0.0
      %2361 = vmatprep.subr.mxu0 0.0
      %2362 = vmatpush1.xpose.msra.mxu0 0.0
      %2363 = vmatprep.subr.mxu0 0.0
      %2364 = vmatpush1.xpose.msra.mxu0 0.0
      %2365 = vmatprep.subr.mxu0 0.0
      %2366 = vmatpush1.xpose.msra.mxu0 0.0
      %2367 = vmatprep.subr.mxu0 0.0
      %2368 = vmatpush1.xpose.msra.mxu0 0.0
      %2369 = vmatprep.subr.mxu0 0.0
      %2370 = vmatpush1.xpose.msra.mxu0 0.0
      %2371 = vmatprep.subr.mxu0 0.0
      %2372 = vmatpush1.xpose.msra.mxu0 0.0
      %2373 = vmatprep.subr.mxu0 0.0
      %2374 = vmatpush1.xpose.msra.mxu0 0.0
      %2375 = vmatprep.subr.mxu0 0.0
      %2376 = vmatpush1.xpose.msra.mxu0 0.0
      %2377 = vmatprep.mubr.f32.mxu0 0.0
      %2378 = vmatmul.mubr.f32.gmra.mrb[0].mxu0 %v2302
      %v2379 = vpop.f32.mrb[0].mxu0
      %v2380 = vadd.f32 0.0, %v2379
      %v2381 = vpop.f32.mrb[0].mxu0
      %2382 = vmatprep.mubr.f32.mxu0 0.0
      %2383 = vmatmul.mubr.f32.gmra.mrb[0].mxu0 %v2305
      %v2384 = vpop.f32.mrb[0].mxu0
      %v2385 = vadd.f32 0.0, %v2384
      %v2386 = vpop.f32.mrb[0].mxu0
      %2387 = vdwg.mxu0
      %2388 = vmatprep.subr.mxu0 0.0
      %2389 = vmatpush1.xpose.msra.mxu0 %v2302
      %2390 = vmatprep.subr.mxu0 0.0
      %2391 = vmatpush1.xpose.msra.mxu0 %v2305
      %2392 = vmatprep.subr.mxu0 0.0
      %2393 = vmatpush1.xpose.msra.mxu0 0.0
      %2394 = vmatprep.subr.mxu0 0.0
      %2395 = vmatpush1.xpose.msra.mxu0 0.0
      %2396 = vmatprep.subr.mxu0 0.0
      %2397 = vmatpush1.xpose.msra.mxu0 0.0
      %2398 = vmatprep.subr.mxu0 0.0
      %2399 = vmatpush1.xpose.msra.mxu0 0.0
      %2400 = vmatprep.subr.mxu0 0.0
      %2401 = vmatpush1.xpose.msra.mxu0 0.0
      %2402 = vmatprep.subr.mxu0 0.0
      %2403 = vmatpush1.xpose.msra.mxu0 0.0
      %2404 = vmatprep.subr.mxu0 0.0
      %2405 = vmatpush1.xpose.msra.mxu0 0.0
      %2406 = vmatprep.subr.mxu0 0.0
      %2407 = vmatpush1.xpose.msra.mxu0 0.0
      %2408 = vmatprep.subr.mxu0 0.0
      %2409 = vmatpush1.xpose.msra.mxu0 0.0
      %2410 = vmatprep.subr.mxu0 0.0
      %2411 = vmatpush1.xpose.msra.mxu0 0.0
      %2412 = vmatprep.subr.mxu0 0.0
      %2413 = vmatpush1.xpose.msra.mxu0 0.0
      %2414 = vmatprep.subr.mxu0 0.0
      %2415 = vmatpush1.xpose.msra.mxu0 0.0
      %2416 = vmatprep.subr.mxu0 0.0
      %2417 = vmatpush1.xpose.msra.mxu0 0.0
      %2418 = vmatprep.subr.mxu0 0.0
      %2419 = vmatpush1.xpose.msra.mxu0 0.0
      %2420 = vmatprep.subr.mxu0 0.0
      %2421 = vmatpush1.xpose.msra.mxu0 0.0
      %2422 = vmatprep.subr.mxu0 0.0
      %2423 = vmatpush1.xpose.msra.mxu0 0.0
      %2424 = vmatprep.subr.mxu0 0.0
      %2425 = vmatpush1.xpose.msra.mxu0 0.0
      %2426 = vmatprep.subr.mxu0 0.0
      %2427 = vmatpush1.xpose.msra.mxu0 0.0
      %2428 = vmatprep.subr.mxu0 0.0
      %2429 = vmatpush1.xpose.msra.mxu0 0.0
      %2430 = vmatprep.subr.mxu0 0.0
      %2431 = vmatpush1.xpose.msra.mxu0 0.0
      %2432 = vmatprep.subr.mxu0 0.0
      %2433 = vmatpush1.xpose.msra.mxu0 0.0
      %2434 = vmatprep.subr.mxu0 0.0
      %2435 = vmatpush1.xpose.msra.mxu0 0.0
      %2436 = vmatprep.subr.mxu0 0.0
      %2437 = vmatpush1.xpose.msra.mxu0 0.0
      %2438 = vmatprep.subr.mxu0 0.0
      %2439 = vmatpush1.xpose.msra.mxu0 0.0
      %2440 = vmatprep.subr.mxu0 0.0
      %2441 = vmatpush1.xpose.msra.mxu0 0.0
      %2442 = vmatprep.subr.mxu0 0.0
      %2443 = vmatpush1.xpose.msra.mxu0 0.0
      %2444 = vmatprep.subr.mxu0 0.0
      %2445 = vmatpush1.xpose.msra.mxu0 0.0
      %2446 = vmatprep.subr.mxu0 0.0
      %2447 = vmatpush1.xpose.msra.mxu0 0.0
      %2448 = vmatprep.subr.mxu0 0.0
      %2449 = vmatpush1.xpose.msra.mxu0 0.0
      %2450 = vmatprep.subr.mxu0 0.0
      %2451 = vmatpush1.xpose.msra.mxu0 0.0
      %2452 = vmatprep.mubr.f32.mxu0 0.0
      %2453 = vmatmul.mubr.f32.gmra.mrb[0].mxu0 %v2308
      %v2454 = vpop.f32.mrb[0].mxu0
      %v2455 = vadd.f32 0.0, %v2454
      %v2456 = vpop.f32.mrb[0].mxu0
      %2457 = vmatprep.mubr.f32.mxu0 0.0
      %2458 = vmatmul.mubr.f32.gmra.mrb[0].mxu0 %v2311
      %v2459 = vpop.f32.mrb[0].mxu0
      %v2460 = vadd.f32 0.0, %v2459
      %v2461 = vpop.f32.mrb[0].mxu0
      %2462 = vdwg.mxu0
      %v2463 = vsub.f32 %v2380, %v2455
      %v2464 = vsub.f32 %v2385, %v2460
      %v2465 = vtanh.pop %v2463
      %v2466 = vtanh.pop %v2464
      %v2467 = vmax.f32 %v2465, 0.0
      %v2468 = vmax.f32 %v2466, 0.0
      %v2469 = vadd.f32 %v2467, %v770
      %v2470 = vadd.f32 %v2468, %v771
      %v2471 = vsel %vm783, %v2469, 0.0
      %2472 = vadd.xlane.f32.xlu0 %v2471
      %v2473 = vpop.xlane.xlu0 %2472
      %v2474 = vsel %vm783, %v2470, 0.0
      %2475 = vadd.xlane.f32.xlu0 %v2474
      %v2476 = vpop.xlane.xlu0 %2475
      %v2477 = vrcp.pop %v2473
      %v2478 = vrcp.pop %v2476
      %v2479 = vmul.f32 %v2469, %v2477
      %v2480 = vmul.f32 %v2470, %v2478
      %s2481 = scalar_lea.vmem %s450, 16
      %v2482 = vld [vmem:[%s2481] sm:$0xff]
      %v2483 = vld [vmem:[%s2481 + $0x8] sm:$0xff]
      %v2485 = vsel %vm783, %v2479, 0
      %v2488 = vsel %vm783, %v2480, 0
      %2490 = vmatprep.subr.mxu0 0.0
      %2491 = vmatpush1.msra.mxu0 %v2482
      %2492 = vmatprep.subr.mxu0 0.0
      %2493 = vmatpush1.msra.mxu0 %v2483
      %2494 = vmatprep.subr.mxu0 0.0
      %2495 = vmatpush1.msra.mxu0 0.0
      %2496 = vmatprep.subr.mxu0 0.0
      %2497 = vmatpush1.msra.mxu0 0.0
      %2498 = vmatprep.subr.mxu0 0.0
      %2499 = vmatpush1.msra.mxu0 0.0
      %2500 = vmatprep.subr.mxu0 0.0
      %2501 = vmatpush1.msra.mxu0 0.0
      %2502 = vmatprep.subr.mxu0 0.0
      %2503 = vmatpush1.msra.mxu0 0.0
      %2504 = vmatprep.subr.mxu0 0.0
      %2505 = vmatpush1.msra.mxu0 0.0
      %2506 = vmatprep.subr.mxu0 0.0
      %2507 = vmatpush1.msra.mxu0 0.0
      %2508 = vmatprep.subr.mxu0 0.0
      %2509 = vmatpush1.msra.mxu0 0.0
      %2510 = vmatprep.subr.mxu0 0.0
      %2511 = vmatpush1.msra.mxu0 0.0
      %2512 = vmatprep.subr.mxu0 0.0
      %2513 = vmatpush1.msra.mxu0 0.0
      %2514 = vmatprep.subr.mxu0 0.0
      %2515 = vmatpush1.msra.mxu0 0.0
      %2516 = vmatprep.subr.mxu0 0.0
      %2517 = vmatpush1.msra.mxu0 0.0
      %2518 = vmatprep.subr.mxu0 0.0
      %2519 = vmatpush1.msra.mxu0 0.0
      %2520 = vmatprep.subr.mxu0 0.0
      %2521 = vmatpush1.msra.mxu0 0.0
      %2522 = vmatprep.subr.mxu0 0.0
      %2523 = vmatpush1.msra.mxu0 0.0
      %2524 = vmatprep.subr.mxu0 0.0
      %2525 = vmatpush1.msra.mxu0 0.0
      %2526 = vmatprep.subr.mxu0 0.0
      %2527 = vmatpush1.msra.mxu0 0.0
      %2528 = vmatprep.subr.mxu0 0.0
      %2529 = vmatpush1.msra.mxu0 0.0
      %2530 = vmatprep.subr.mxu0 0.0
      %2531 = vmatpush1.msra.mxu0 0.0
      %2532 = vmatprep.subr.mxu0 0.0
      %2533 = vmatpush1.msra.mxu0 0.0
      %2534 = vmatprep.subr.mxu0 0.0
      %2535 = vmatpush1.msra.mxu0 0.0
      %2536 = vmatprep.subr.mxu0 0.0
      %2537 = vmatpush1.msra.mxu0 0.0
      %2538 = vmatprep.subr.mxu0 0.0
      %2539 = vmatpush1.msra.mxu0 0.0
      %2540 = vmatprep.subr.mxu0 0.0
      %2541 = vmatpush1.msra.mxu0 0.0
      %2542 = vmatprep.subr.mxu0 0.0
      %2543 = vmatpush1.msra.mxu0 0.0
      %2544 = vmatprep.subr.mxu0 0.0
      %2545 = vmatpush1.msra.mxu0 0.0
      %2546 = vmatprep.subr.mxu0 0.0
      %2547 = vmatpush1.msra.mxu0 0.0
      %2548 = vmatprep.subr.mxu0 0.0
      %2549 = vmatpush1.msra.mxu0 0.0
      %2550 = vmatprep.subr.mxu0 0.0
      %2551 = vmatpush1.msra.mxu0 0.0
      %2552 = vmatprep.subr.mxu0 0.0
      %2553 = vmatpush1.msra.mxu0 0.0
      %2554 = vmatprep.mubr.f32.mxu0 0.0
      %2555 = vmatmul.mubr.f32.gmra.mrb[0].mxu0 %v2485
      %v2556 = vpop.f32.mrb[0].mxu0
      %v2557 = vadd.f32 0.0, %v2556
      %v2558 = vpop.f32.mrb[0].mxu0
      %2559 = vmatprep.mubr.f32.mxu0 0.0
      %2560 = vmatmul.mubr.f32.gmra.mrb[0].mxu0 %v2488
      %v2561 = vpop.f32.mrb[0].mxu0
      %v2562 = vadd.f32 0.0, %v2561
      %v2563 = vpop.f32.mrb[0].mxu0
      %2564 = vdwg.mxu0
      %v2565 = vmul.f32 %v2482, 0.05
      %v2566 = vmul.f32 %v2483, 0.05
      %v2567 = vmul.f32 %v2557, 0.95
      %v2568 = vmul.f32 %v2562, 0.95
      %v2569 = vadd.f32 %v2565, %v2567
      %v2570 = vadd.f32 %v2566, %v2568
      %v2572 = vsel %vm1535, %v2569, 0
      %v2575 = vsel %vm1535, %v2570, 0
      %2577 = vmatprep.subr.mxu0 0.0
      %2578 = vmatpush1.msra.mxu0 %v1531
      %2579 = vmatprep.subr.mxu0 0.0
      %2580 = vmatpush1.msra.mxu0 %v1532
      %2581 = vmatprep.subr.mxu0 0.0
      %2582 = vmatpush1.msra.mxu0 %v1533
      %2583 = vmatprep.subr.mxu0 0.0
      %2584 = vmatpush1.msra.mxu0 %v1534
      %2585 = vmatprep.subr.mxu0 0.0
      %2586 = vmatpush1.msra.mxu0 0.0
      %2587 = vmatprep.subr.mxu0 0.0
      %2588 = vmatpush1.msra.mxu0 0.0
      %2589 = vmatprep.subr.mxu0 0.0
      %2590 = vmatpush1.msra.mxu0 0.0
      %2591 = vmatprep.subr.mxu0 0.0
      %2592 = vmatpush1.msra.mxu0 0.0
      %2593 = vmatprep.subr.mxu0 0.0
      %2594 = vmatpush1.msra.mxu0 0.0
      %2595 = vmatprep.subr.mxu0 0.0
      %2596 = vmatpush1.msra.mxu0 0.0
      %2597 = vmatprep.subr.mxu0 0.0
      %2598 = vmatpush1.msra.mxu0 0.0
      %2599 = vmatprep.subr.mxu0 0.0
      %2600 = vmatpush1.msra.mxu0 0.0
      %2601 = vmatprep.subr.mxu0 0.0
      %2602 = vmatpush1.msra.mxu0 0.0
      %2603 = vmatprep.subr.mxu0 0.0
      %2604 = vmatpush1.msra.mxu0 0.0
      %2605 = vmatprep.subr.mxu0 0.0
      %2606 = vmatpush1.msra.mxu0 0.0
      %2607 = vmatprep.subr.mxu0 0.0
      %2608 = vmatpush1.msra.mxu0 0.0
      %2609 = vmatprep.subr.mxu0 0.0
      %2610 = vmatpush1.msra.mxu0 0.0
      %2611 = vmatprep.subr.mxu0 0.0
      %2612 = vmatpush1.msra.mxu0 0.0
      %2613 = vmatprep.subr.mxu0 0.0
      %2614 = vmatpush1.msra.mxu0 0.0
      %2615 = vmatprep.subr.mxu0 0.0
      %2616 = vmatpush1.msra.mxu0 0.0
      %2617 = vmatprep.subr.mxu0 0.0
      %2618 = vmatpush1.msra.mxu0 0.0
      %2619 = vmatprep.subr.mxu0 0.0
      %2620 = vmatpush1.msra.mxu0 0.0
      %2621 = vmatprep.subr.mxu0 0.0
      %2622 = vmatpush1.msra.mxu0 0.0
      %2623 = vmatprep.subr.mxu0 0.0
      %2624 = vmatpush1.msra.mxu0 0.0
      %2625 = vmatprep.subr.mxu0 0.0
      %2626 = vmatpush1.msra.mxu0 0.0
      %2627 = vmatprep.subr.mxu0 0.0
      %2628 = vmatpush1.msra.mxu0 0.0
      %2629 = vmatprep.subr.mxu0 0.0
      %2630 = vmatpush1.msra.mxu0 0.0
      %2631 = vmatprep.subr.mxu0 0.0
      %2632 = vmatpush1.msra.mxu0 0.0
      %2633 = vmatprep.subr.mxu0 0.0
      %2634 = vmatpush1.msra.mxu0 0.0
      %2635 = vmatprep.subr.mxu0 0.0
      %2636 = vmatpush1.msra.mxu0 0.0
      %2637 = vmatprep.subr.mxu0 0.0
      %2638 = vmatpush1.msra.mxu0 0.0
      %2639 = vmatprep.subr.mxu0 0.0
      %2640 = vmatpush1.msra.mxu0 0.0
      %2641 = vmatprep.mubr.f32.mxu0 0.0
      %2642 = vmatmul.mubr.f32.gmra.mrb[0].mxu0 %v2572
      %v2643 = vpop.f32.mrb[0].mxu0
      %v2644 = vadd.f32 0.0, %v2643
      %v2645 = vpop.f32.mrb[0].mxu0
      %2646 = vmatprep.mubr.f32.mxu0 0.0
      %2647 = vmatmul.mubr.f32.gmra.mrb[0].mxu0 %v2575
      %v2648 = vpop.f32.mrb[0].mxu0
      %v2649 = vadd.f32 0.0, %v2648
      %v2650 = vpop.f32.mrb[0].mxu0
      %2651 = vdwg.mxu0
      %v2653 = vsel %vm1535, %v2482, 0
      %v2656 = vsel %vm1535, %v2483, 0
      %2658 = vmatprep.subr.mxu0 0.0
      %2659 = vmatpush1.msra.mxu0 %v1439
      %2660 = vmatprep.subr.mxu0 0.0
      %2661 = vmatpush1.msra.mxu0 %v1440
      %2662 = vmatprep.subr.mxu0 0.0
      %2663 = vmatpush1.msra.mxu0 %v1441
      %2664 = vmatprep.subr.mxu0 0.0
      %2665 = vmatpush1.msra.mxu0 %v1442
      %2666 = vmatprep.subr.mxu0 0.0
      %2667 = vmatpush1.msra.mxu0 0.0
      %2668 = vmatprep.subr.mxu0 0.0
      %2669 = vmatpush1.msra.mxu0 0.0
      %2670 = vmatprep.subr.mxu0 0.0
      %2671 = vmatpush1.msra.mxu0 0.0
      %2672 = vmatprep.subr.mxu0 0.0
      %2673 = vmatpush1.msra.mxu0 0.0
      %2674 = vmatprep.subr.mxu0 0.0
      %2675 = vmatpush1.msra.mxu0 0.0
      %2676 = vmatprep.subr.mxu0 0.0
      %2677 = vmatpush1.msra.mxu0 0.0
      %2678 = vmatprep.subr.mxu0 0.0
      %2679 = vmatpush1.msra.mxu0 0.0
      %2680 = vmatprep.subr.mxu0 0.0
      %2681 = vmatpush1.msra.mxu0 0.0
      %2682 = vmatprep.subr.mxu0 0.0
      %2683 = vmatpush1.msra.mxu0 0.0
      %2684 = vmatprep.subr.mxu0 0.0
      %2685 = vmatpush1.msra.mxu0 0.0
      %2686 = vmatprep.subr.mxu0 0.0
      %2687 = vmatpush1.msra.mxu0 0.0
      %2688 = vmatprep.subr.mxu0 0.0
      %2689 = vmatpush1.msra.mxu0 0.0
      %2690 = vmatprep.subr.mxu0 0.0
      %2691 = vmatpush1.msra.mxu0 0.0
      %2692 = vmatprep.subr.mxu0 0.0
      %2693 = vmatpush1.msra.mxu0 0.0
      %2694 = vmatprep.subr.mxu0 0.0
      %2695 = vmatpush1.msra.mxu0 0.0
      %2696 = vmatprep.subr.mxu0 0.0
      %2697 = vmatpush1.msra.mxu0 0.0
      %2698 = vmatprep.subr.mxu0 0.0
      %2699 = vmatpush1.msra.mxu0 0.0
      %2700 = vmatprep.subr.mxu0 0.0
      %2701 = vmatpush1.msra.mxu0 0.0
      %2702 = vmatprep.subr.mxu0 0.0
      %2703 = vmatpush1.msra.mxu0 0.0
      %2704 = vmatprep.subr.mxu0 0.0
      %2705 = vmatpush1.msra.mxu0 0.0
      %2706 = vmatprep.subr.mxu0 0.0
      %2707 = vmatpush1.msra.mxu0 0.0
      %2708 = vmatprep.subr.mxu0 0.0
      %2709 = vmatpush1.msra.mxu0 0.0
      %2710 = vmatprep.subr.mxu0 0.0
      %2711 = vmatpush1.msra.mxu0 0.0
      %2712 = vmatprep.subr.mxu0 0.0
      %2713 = vmatpush1.msra.mxu0 0.0
      %2714 = vmatprep.subr.mxu0 0.0
      %2715 = vmatpush1.msra.mxu0 0.0
      %2716 = vmatprep.subr.mxu0 0.0
      %2717 = vmatpush1.msra.mxu0 0.0
      %2718 = vmatprep.subr.mxu0 0.0
      %2719 = vmatpush1.msra.mxu0 0.0
      %2720 = vmatprep.subr.mxu0 0.0
      %2721 = vmatpush1.msra.mxu0 0.0
      %2722 = vmatprep.mubr.f32.mxu0 0.0
      %2723 = vmatmul.mubr.f32.gmra.mrb[0].mxu0 %v2653
      %v2724 = vpop.f32.mrb[0].mxu0
      %v2725 = vadd.f32 %v2644, %v2724
      %v2726 = vpop.f32.mrb[0].mxu0
      %2727 = vmatprep.mubr.f32.mxu0 0.0
      %2728 = vmatmul.mubr.f32.gmra.mrb[0].mxu0 %v2656
      %v2729 = vpop.f32.mrb[0].mxu0
      %v2730 = vadd.f32 %v2649, %v2729
      %v2731 = vpop.f32.mrb[0].mxu0
      %2732 = vdwg.mxu0
      %2733 = vmatprep.subr.mxu0 0.0
      %2734 = vmatpush1.msra.mxu0 %v2569
      %2735 = vmatprep.subr.mxu0 0.0
      %2736 = vmatpush1.msra.mxu0 %v2570
      %2737 = vmatprep.subr.mxu0 0.0
      %2738 = vmatpush1.msra.mxu0 0.0
      %2739 = vmatprep.subr.mxu0 0.0
      %2740 = vmatpush1.msra.mxu0 0.0
      %2741 = vmatprep.subr.mxu0 0.0
      %2742 = vmatpush1.msra.mxu0 0.0
      %2743 = vmatprep.subr.mxu0 0.0
      %2744 = vmatpush1.msra.mxu0 0.0
      %2745 = vmatprep.subr.mxu0 0.0
      %2746 = vmatpush1.msra.mxu0 0.0
      %2747 = vmatprep.subr.mxu0 0.0
      %2748 = vmatpush1.msra.mxu0 0.0
      %2749 = vmatprep.subr.mxu0 0.0
      %2750 = vmatpush1.msra.mxu0 0.0
      %2751 = vmatprep.subr.mxu0 0.0
      %2752 = vmatpush1.msra.mxu0 0.0
      %2753 = vmatprep.subr.mxu0 0.0
      %2754 = vmatpush1.msra.mxu0 0.0
      %2755 = vmatprep.subr.mxu0 0.0
      %2756 = vmatpush1.msra.mxu0 0.0
      %2757 = vmatprep.subr.mxu0 0.0
      %2758 = vmatpush1.msra.mxu0 0.0
      %2759 = vmatprep.subr.mxu0 0.0
      %2760 = vmatpush1.msra.mxu0 0.0
      %2761 = vmatprep.subr.mxu0 0.0
      %2762 = vmatpush1.msra.mxu0 0.0
      %2763 = vmatprep.subr.mxu0 0.0
      %2764 = vmatpush1.msra.mxu0 0.0
      %2765 = vmatprep.subr.mxu0 0.0
      %2766 = vmatpush1.msra.mxu0 0.0
      %2767 = vmatprep.subr.mxu0 0.0
      %2768 = vmatpush1.msra.mxu0 0.0
      %2769 = vmatprep.subr.mxu0 0.0
      %2770 = vmatpush1.msra.mxu0 0.0
      %2771 = vmatprep.subr.mxu0 0.0
      %2772 = vmatpush1.msra.mxu0 0.0
      %2773 = vmatprep.subr.mxu0 0.0
      %2774 = vmatpush1.msra.mxu0 0.0
      %2775 = vmatprep.subr.mxu0 0.0
      %2776 = vmatpush1.msra.mxu0 0.0
      %2777 = vmatprep.subr.mxu0 0.0
      %2778 = vmatpush1.msra.mxu0 0.0
      %2779 = vmatprep.subr.mxu0 0.0
      %2780 = vmatpush1.msra.mxu0 0.0
      %2781 = vmatprep.subr.mxu0 0.0
      %2782 = vmatpush1.msra.mxu0 0.0
      %2783 = vmatprep.subr.mxu0 0.0
      %2784 = vmatpush1.msra.mxu0 0.0
      %2785 = vmatprep.subr.mxu0 0.0
      %2786 = vmatpush1.msra.mxu0 0.0
      %2787 = vmatprep.subr.mxu0 0.0
      %2788 = vmatpush1.msra.mxu0 0.0
      %2789 = vmatprep.subr.mxu0 0.0
      %2790 = vmatpush1.msra.mxu0 0.0
      %2791 = vmatprep.subr.mxu0 0.0
      %2792 = vmatpush1.msra.mxu0 0.0
      %2793 = vmatprep.subr.mxu0 0.0
      %2794 = vmatpush1.msra.mxu0 0.0
      %2795 = vmatprep.subr.mxu0 0.0
      %2796 = vmatpush1.msra.mxu0 0.0
      %2797 = vmatprep.mubr.f32.mxu0 0.0
      %2798 = vmatmul.mubr.f32.gmra.mrb[0].mxu0 %v2485
      %v2799 = vpop.f32.mrb[0].mxu0
      %v2800 = vadd.f32 0.0, %v2799
      %v2801 = vpop.f32.mrb[0].mxu0
      %2802 = vmatprep.mubr.f32.mxu0 0.0
      %2803 = vmatmul.mubr.f32.gmra.mrb[0].mxu0 %v2488
      %v2804 = vpop.f32.mrb[0].mxu0
      %v2805 = vadd.f32 0.0, %v2804
      %v2806 = vpop.f32.mrb[0].mxu0
      %2807 = vdwg.mxu0
      %v2808 = vmul.f32 %v2800, 0.95
      %v2809 = vmul.f32 %v2805, 0.95
      %v2810 = vadd.f32 %v2565, %v2808
      %v2811 = vadd.f32 %v2566, %v2809
      %v2813 = vsel %vm1535, %v2810, 0
      %v2816 = vsel %vm1535, %v2811, 0
      %2818 = vmatprep.subr.mxu0 0.0
      %2819 = vmatpush1.msra.mxu0 %v1778
      %2820 = vmatprep.subr.mxu0 0.0
      %2821 = vmatpush1.msra.mxu0 %v1779
      %2822 = vmatprep.subr.mxu0 0.0
      %2823 = vmatpush1.msra.mxu0 %v1780
      %2824 = vmatprep.subr.mxu0 0.0
      %2825 = vmatpush1.msra.mxu0 %v1781
      %2826 = vmatprep.subr.mxu0 0.0
      %2827 = vmatpush1.msra.mxu0 0.0
      %2828 = vmatprep.subr.mxu0 0.0
      %2829 = vmatpush1.msra.mxu0 0.0
      %2830 = vmatprep.subr.mxu0 0.0
      %2831 = vmatpush1.msra.mxu0 0.0
      %2832 = vmatprep.subr.mxu0 0.0
      %2833 = vmatpush1.msra.mxu0 0.0
      %2834 = vmatprep.subr.mxu0 0.0
      %2835 = vmatpush1.msra.mxu0 0.0
      %2836 = vmatprep.subr.mxu0 0.0
      %2837 = vmatpush1.msra.mxu0 0.0
      %2838 = vmatprep.subr.mxu0 0.0
      %2839 = vmatpush1.msra.mxu0 0.0
      %2840 = vmatprep.subr.mxu0 0.0
      %2841 = vmatpush1.msra.mxu0 0.0
      %2842 = vmatprep.subr.mxu0 0.0
      %2843 = vmatpush1.msra.mxu0 0.0
      %2844 = vmatprep.subr.mxu0 0.0
      %2845 = vmatpush1.msra.mxu0 0.0
      %2846 = vmatprep.subr.mxu0 0.0
      %2847 = vmatpush1.msra.mxu0 0.0
      %2848 = vmatprep.subr.mxu0 0.0
      %2849 = vmatpush1.msra.mxu0 0.0
      %2850 = vmatprep.subr.mxu0 0.0
      %2851 = vmatpush1.msra.mxu0 0.0
      %2852 = vmatprep.subr.mxu0 0.0
      %2853 = vmatpush1.msra.mxu0 0.0
      %2854 = vmatprep.subr.mxu0 0.0
      %2855 = vmatpush1.msra.mxu0 0.0
      %2856 = vmatprep.subr.mxu0 0.0
      %2857 = vmatpush1.msra.mxu0 0.0
      %2858 = vmatprep.subr.mxu0 0.0
      %2859 = vmatpush1.msra.mxu0 0.0
      %2860 = vmatprep.subr.mxu0 0.0
      %2861 = vmatpush1.msra.mxu0 0.0
      %2862 = vmatprep.subr.mxu0 0.0
      %2863 = vmatpush1.msra.mxu0 0.0
      %2864 = vmatprep.subr.mxu0 0.0
      %2865 = vmatpush1.msra.mxu0 0.0
      %2866 = vmatprep.subr.mxu0 0.0
      %2867 = vmatpush1.msra.mxu0 0.0
      %2868 = vmatprep.subr.mxu0 0.0
      %2869 = vmatpush1.msra.mxu0 0.0
      %2870 = vmatprep.subr.mxu0 0.0
      %2871 = vmatpush1.msra.mxu0 0.0
      %2872 = vmatprep.subr.mxu0 0.0
      %2873 = vmatpush1.msra.mxu0 0.0
      %2874 = vmatprep.subr.mxu0 0.0
      %2875 = vmatpush1.msra.mxu0 0.0
      %2876 = vmatprep.subr.mxu0 0.0
      %2877 = vmatpush1.msra.mxu0 0.0
      %2878 = vmatprep.subr.mxu0 0.0
      %2879 = vmatpush1.msra.mxu0 0.0
      %2880 = vmatprep.subr.mxu0 0.0
      %2881 = vmatpush1.msra.mxu0 0.0
      %2882 = vmatprep.mubr.f32.mxu0 0.0
      %2883 = vmatmul.mubr.f32.gmra.mrb[0].mxu0 %v2813
      %v2884 = vpop.f32.mrb[0].mxu0
      %v2885 = vadd.f32 0.0, %v2884
      %v2886 = vpop.f32.mrb[0].mxu0
      %2887 = vmatprep.mubr.f32.mxu0 0.0
      %2888 = vmatmul.mubr.f32.gmra.mrb[0].mxu0 %v2816
      %v2889 = vpop.f32.mrb[0].mxu0
      %v2890 = vadd.f32 0.0, %v2889
      %v2891 = vpop.f32.mrb[0].mxu0
      %2892 = vdwg.mxu0
      %v2893 = vadd.f32 %v2725, %v2885
      %v2894 = vadd.f32 %v2730, %v2890
      %v2895 = vadd.f32 %v2893, %v1870
      %v2896 = vadd.f32 %v2894, %v1870
      %2899 = vrot.lane.b32.xlu0 %v2895, 64
      %v2900 = vpop.permute.xlu0 %2899
      %2901 = vrot.lane.b32.xlu0 %v2896, 64
      %v2902 = vpop.permute.xlu0 %2901
      %vm2905 = vcmask 523264
      %v2906 = vsel %vm2905, %v1872, %v2900
      %v2907 = vsel %vm2905, %v1873, %v2902
      %2908 = vst [vmem:[%s460] sm:$0xff] %v2906
      %2909 = vst [vmem:[%s460 + $0x8] sm:$0xff] %v2907
      %p2910 = scmp.lt.s32.totalorder %s24, 1
      %s2911 = scalar_select %p2910, %s24, 1
      %s2912 = smul.addr %s2911, 2
      %s2913 = smul.addr %s2912, 8
      %s2914 = scalar_lea.vmem %s13, %s2913
      // Predicated region
      $region73: #{evolving_gconv_forward.1} parent=71 // pred_check
        %p2915 = pneg %p325
      $region74: #{evolving_gconv_forward.1} parent=71 // pred_check_branch
        %2917 = sbr.rel (%p2915) target = $region76
      $region75: #{evolving_gconv_forward.1} parent=71 // pred_region
        _
      $region76: #{evolving_gconv_forward.1} parent=71 // pred_fallthru
        _
    $region72: #{evolving_gconv_forward.1} parent=5 // pred_fallthru
      _
    %p2918 = scmp.le.s32.totalorder 2, %s19
    // Predicated region
    $region77: #{evolving_gconv_forward.1} parent=5 // pred_check
      %p2919 = pneg %p2918
    $region78: #{evolving_gconv_forward.1} parent=5 // pred_check_branch
      %2921 = sbr.rel (%p2919) target = $region80
    $region79: #{evolving_gconv_forward.1} parent=5 // pred_region
      %s2922 = ssub.s32 %s19, 2
      // Predicated region
      $region81: #{evolving_gconv_forward.1} parent=79 // pred_check
        %p2923 = pneg %p331
      $region82: #{evolving_gconv_forward.1} parent=79 // pred_check_branch
        %2925 = sbr.rel (%p2923) target = $region84
      $region83: #{evolving_gconv_forward.1} parent=79 // pred_region
        %p2926 = scmp.lt.s32.totalorder %s25, 1
        %s2927 = scalar_select %p2926, %s25, 1
        %s2928 = smul.addr %s2927, 2
        %s2929 = smul.addr %s2928, 8
        %s2930 = scalar_lea.vmem %s13, %s2929
      $region84: #{evolving_gconv_forward.1} parent=79 // pred_fallthru
        _
    $region80: #{evolving_gconv_forward.1} parent=5 // pred_fallthru
      _
  $region6: #{evolving_gconv_forward.1} parent=0 // loop_footer
    %s23 = sadd.s32 1, %s19
  $region7: #{evolving_gconv_forward.1} parent=0 // loop_footer_branch
    %18 = sbr.rel target = $region3
  $region8: #{evolving_gconv_forward.1} parent=0 // loop_exit
    _

</llo_original>
